<compile_context>
chip_gen: v7x
topology: tpu7x:2x2x1
jax: 0.10.0
libtpu: 0.0.40
codegen_flags: <defaults>
</compile_context>

<pallas_src>
import jax
import jax.numpy as jnp
from jax.experimental import pallas as pl
from jax.experimental.pallas import tpu as pltpu


def _round_up(x, m):
    return ((x + m - 1) // m) * m


# ---------------------------------------------------------------------------
# Fused HCAN forward kernel (no grid: N, hid, M are tiny -> everything fits
# in VMEM; a grid would only add per-step pipeline overhead).
# ---------------------------------------------------------------------------
def make_hcan_kernel(M, num_layers, N, hid):
    inv_n = 1.0 / float(N)
    bf16 = jnp.bfloat16

    def kernel(*refs):
        adjs_ref, h_ref = refs[0], refs[1]
        w_refs = refs[2:2 + num_layers]          # per-layer (M, d_in, hid) bf16
        sw1_ref = refs[2 + num_layers]           # (L, hid, hid) bf16
        vecs_ref = refs[3 + num_layers]          # (L, M+2, hid) f32: b_0..b_{M-1}, sb1, q
        pw1_ref, pw2_ref, pw3_ref, pbias_ref = refs[4 + num_layers:8 + num_layers]
        o_ref = refs[-1]

        h_bf = h_ref[...]                        # (N, d_in) bf16

        for l in range(num_layers):
            w_ref = w_refs[l]
            sw1_bf = sw1_ref[l]                  # (hid, hid) bf16
            vecs = vecs_ref[l]                   # (M+2, hid) f32
            sb1 = vecs[M:M + 1, :]               # (1, hid)
            q = vecs[M + 1:M + 2, :]             # (1, hid)

            zs = []
            pmean_rows = []
            for m in range(M):
                # ---- per-meta-path GraphConv: h @ W_m, then A_m @ (hW) -----
                hw_m = jnp.dot(h_bf, w_ref[m],
                               preferred_element_type=jnp.float32)      # (N, hid)
                agg = jnp.dot(adjs_ref[m], hw_m.astype(bf16),
                              preferred_element_type=jnp.float32) \
                      + vecs[m:m + 1, :]                                 # (N, hid)
                # ELU(alpha=1), overflow-safe: exp only of the clamped neg branch
                neg = jnp.exp(jnp.minimum(agg, 0.0)) - 1.0
                z_m = jnp.where(agg > 0, agg, neg)
                zs.append(z_m)

                # ---- semantic attention projection (per meta-path, no concat)
                p_m = jnp.tanh(jnp.dot(z_m.astype(bf16), sw1_bf,
                                       preferred_element_type=jnp.float32) + sb1)
                # reduce over nodes BEFORE the q dot (exact: q dot is linear)
                pmean_rows.append(jnp.sum(p_m, axis=0, keepdims=True) * inv_n)

            # ---- softmax over the M meta-path scores, on one (M, 1) vreg ----
            p_mean = jnp.concatenate(pmean_rows, axis=0)                 # (M, hid)
            scores = jnp.sum(p_mean * q, axis=-1, keepdims=True)         # (M, 1)
            scores = scores - jnp.max(scores, axis=0, keepdims=True)
            e = jnp.exp(scores)
            beta = e / jnp.sum(e, axis=0, keepdims=True)                 # exact softmax

            h_new = beta[0:1, 0:1] * zs[0]
            for m in range(1, M):
                h_new = h_new + beta[m:m + 1, 0:1] * zs[m]               # (N, hid)
            h_bf = h_new.astype(bf16)

        # ---- prediction head (numscale folded into pw1, widths lane-padded) --
        x = jnp.dot(h_bf, pw1_ref[...],
                    preferred_element_type=jnp.float32) + pbias_ref[0:1, :]
        x = jnp.maximum(x, 0.0)
        x = jnp.dot(x.astype(bf16), pw2_ref[...],
                    preferred_element_type=jnp.float32) \
            + pbias_ref[1:2, :pw2_ref.shape[1]]
        x = jnp.maximum(x, 0.0)
        o_ref[...] = jnp.dot(x.astype(bf16), pw3_ref[...],
                             preferred_element_type=jnp.float32) \
            + pbias_ref[2:3, :pw3_ref.shape[1]]

    return kernel


# ---------------------------------------------------------------------------
# Parameter init + full forward (glue)
# ---------------------------------------------------------------------------
def init_params(key, M, in_size, hidden_size, num_layers, out_size):
    params = {"layers": []}
    dims = [in_size] + [hidden_size] * num_layers
    for l in range(num_layers):
        key, k1, k2, k3, k4 = jax.random.split(key, 5)
        d_in = dims[l]
        params["layers"].append(dict(
            W=jax.random.normal(k1, (M, d_in, hidden_size), jnp.float32)
              / jnp.sqrt(float(d_in)),
            b=jnp.zeros((M, hidden_size), jnp.float32),
            sw1=jax.random.normal(k2, (hidden_size, hidden_size), jnp.float32)
                / jnp.sqrt(float(hidden_size)),
            sb1=jax.random.normal(k3, (1, hidden_size), jnp.float32) * 0.01,
            q=jax.random.normal(k4, (1, hidden_size), jnp.float32)
              / jnp.sqrt(float(hidden_size)),
        ))
    key, k1, k2, k3 = jax.random.split(key, 4)
    params["pw1"] = jax.random.normal(k1, (hidden_size, 250), jnp.float32) / jnp.sqrt(float(hidden_size))
    params["pb1"] = jnp.zeros((1, 250), jnp.float32)
    params["pw2"] = jax.random.normal(k2, (250, 75), jnp.float32) / jnp.sqrt(250.0)
    params["pb2"] = jnp.zeros((1, 75), jnp.float32)
    params["pw3"] = jax.random.normal(k3, (75, out_size), jnp.float32) / jnp.sqrt(75.0)
    params["pb3"] = jnp.zeros((1, out_size), jnp.float32)
    # deterministic stand-in for the global `num` tensor in the reference script
    params["num"] = jnp.linspace(0.5, 1.5, 11, dtype=jnp.float32).reshape(1, 11)
    return params


def hcan_forward(params, adjs, h):
    M, N, _ = adjs.shape
    L = len(params["layers"])
    hid = params["layers"][0]["sw1"].shape[0]
    out_size = params["pw3"].shape[-1]
    assert hid >= 10, "numscale folding requires hidden_size >= 10"

    bf16 = jnp.bfloat16

    # ---- big operands -> bf16 (halve HBM traffic, native-rate MXU) ----------
    adjs_bf = adjs.astype(bf16)
    h_bf = h.astype(bf16)
    w_list = [lp["W"].astype(bf16) for lp in params["layers"]]        # (M, d_in, hid)
    sw1_all = jnp.stack([lp["sw1"] for lp in params["layers"]], 0).astype(bf16)
    # pack per-layer small vectors: rows 0..M-1 = gcn bias, row M = sb1, row M+1 = q
    vecs_all = jnp.stack(
        [jnp.concatenate([lp["b"], lp["sb1"], lp["q"]], axis=0)
         for lp in params["layers"]], axis=0)                          # (L, M+2, hid) f32

    # ---- head: fold numscale into pw1 (exact), pad widths to lane tiles -----
    scale_idx = jnp.arange(hid) // (hid // 10)                         # torch.floor_divide
    numscale = params["num"][:, scale_idx]                             # (1, hid)
    pw1 = jnp.transpose(numscale) * params["pw1"]                      # (hid, 250)

    P1 = _round_up(250, 128)                                           # 256
    P2 = _round_up(75, 128)                                            # 128
    PO = _round_up(out_size, 128)                                      # 128
    pw1_p = jnp.zeros((hid, P1), jnp.float32).at[:, :250].set(pw1).astype(bf16)
    pw2_p = jnp.zeros((250 if False else P1, P2), jnp.float32) \
        .at[:250, :75].set(params["pw2"]).astype(bf16)
    pw3_p = jnp.zeros((P2, PO), jnp.float32) \
        .at[:75, :out_size].set(params["pw3"]).astype(bf16)
    pbias = jnp.zeros((3, P1), jnp.float32)
    pbias = pbias.at[0, :250].set(params["pb1"][0])
    pbias = pbias.at[1, :75].set(params["pb2"][0])
    pbias = pbias.at[2, :out_size].set(params["pb3"][0])

    operands = [adjs_bf, h_bf] + w_list + [sw1_all, vecs_all,
                                           pw1_p, pw2_p, pw3_p, pbias]

    # ---- advisory cost estimate ---------------------------------------------
    flops = 0
    for w in w_list:
        d_in = w.shape[1]
        flops += M * (2 * N * d_in * hid + 2 * N * N * hid + 2 * N * hid * hid)
    flops += 2 * N * hid * P1 + 2 * N * P1 * P2 + 2 * N * P2 * PO
    transc = L * M * 2 * N * hid + L * M
    bytes_acc = sum(op.size * op.dtype.itemsize for op in operands) + N * PO * 4

    kernel = make_hcan_kernel(M, L, N, hid)
    out = pl.pallas_call(
        kernel,
        out_shape=jax.ShapeDtypeStruct((N, PO), jnp.float32),
        in_specs=[pl.BlockSpec(memory_space=pltpu.MemorySpace.VMEM)] * len(operands),
        out_specs=pl.BlockSpec(memory_space=pltpu.MemorySpace.VMEM),
        compiler_params=pltpu.CompilerParams(vmem_limit_bytes=32 * 1024 * 1024),
        cost_estimate=pl.CostEstimate(flops=int(flops),
                                      transcendentals=int(transc),
                                      bytes_accessed=int(bytes_acc)),
    )(*operands)
    return out[:, :out_size]


if __name__ == "__main__":
    key = jax.random.PRNGKey(0)
    N, M = 64, 3
    in_size, hidden_size, num_layers, out_size = 32, 32, 2, 8

    key, ka, kh, kp = jax.random.split(key, 4)
    # build M symmetric normalized adjacency matrices with self loops
    raw = jax.random.bernoulli(ka, 0.2, (M, N, N)).astype(jnp.float32)
    adj = jnp.maximum(raw, jnp.transpose(raw, (0, 2, 1)))
    adj = jnp.minimum(adj + jnp.eye(N, dtype=jnp.float32)[None], 1.0)
    deg = adj.sum(-1)
    dinv = 1.0 / jnp.sqrt(deg)
    adjs = adj * dinv[:, :, None] * dinv[:, None, :]     # D^-1/2 A D^-1/2

    h = jax.random.normal(kh, (N, in_size), jnp.float32)
    params = init_params(kp, M, in_size, hidden_size, num_layers, out_size)

    out = hcan_forward(params, adjs, h)
    out = jax.block_until_ready(out)
    assert out.shape == (N, out_size)
    assert jnp.all(jnp.isfinite(out))
    print("KERNEL_OK")
</pallas_src>

<mosaic_0001>
module attributes {stable_mosaic.version = 11 : i64} {
  func.func @kernel(%arg0: memref<3x64x64xbf16, #tpu.memory_space<vmem>>, %arg1: memref<64x32xbf16, #tpu.memory_space<vmem>>, %arg2: memref<3x32x32xbf16, #tpu.memory_space<vmem>>, %arg3: memref<3x32x32xbf16, #tpu.memory_space<vmem>>, %arg4: memref<2x32x32xbf16, #tpu.memory_space<vmem>>, %arg5: memref<2x5x32xf32, #tpu.memory_space<vmem>>, %arg6: memref<32x256xbf16, #tpu.memory_space<vmem>>, %arg7: memref<256x128xbf16, #tpu.memory_space<vmem>>, %arg8: memref<128x128xbf16, #tpu.memory_space<vmem>>, %arg9: memref<3x256xf32, #tpu.memory_space<vmem>>, %arg10: memref<64x128xf32, #tpu.memory_space<vmem>>) attributes {dimension_semantics = [], scalar_prefetch = 0 : i64, scratch_operands = 0 : i64, tpu.core_type = #tpu.core_type<tc>} {
    %c0 = arith.constant 0 : index
    %c0_0 = arith.constant 0 : index
    %0 = vector.load %arg1[%c0, %c0_0] : memref<64x32xbf16, #tpu.memory_space<vmem>>, vector<64x32xbf16>
    %c0_1 = arith.constant 0 : index
    %c0_2 = arith.constant 0 : index
    %c0_3 = arith.constant 0 : index
    %1 = vector.load %arg4[%c0_1, %c0_2, %c0_3] : memref<2x32x32xbf16, #tpu.memory_space<vmem>>, vector<1x32x32xbf16>
    %2 = vector.shape_cast %1 : vector<1x32x32xbf16> to vector<32x32xbf16>
    %c0_4 = arith.constant 0 : index
    %c0_5 = arith.constant 0 : index
    %c0_6 = arith.constant 0 : index
    %3 = vector.load %arg5[%c0_4, %c0_5, %c0_6] : memref<2x5x32xf32, #tpu.memory_space<vmem>>, vector<1x5x32xf32>
    %4 = vector.shape_cast %3 : vector<1x5x32xf32> to vector<5x32xf32>
    %5 = vector.extract_strided_slice %4 {offsets = [3, 0], sizes = [1, 32], strides = [1, 1]} : vector<5x32xf32> to vector<1x32xf32>
    %6 = vector.extract_strided_slice %4 {offsets = [4, 0], sizes = [1, 32], strides = [1, 1]} : vector<5x32xf32> to vector<1x32xf32>
    %c0_7 = arith.constant 0 : index
    %c0_8 = arith.constant 0 : index
    %c0_9 = arith.constant 0 : index
    %7 = vector.load %arg2[%c0_7, %c0_8, %c0_9] : memref<3x32x32xbf16, #tpu.memory_space<vmem>>, vector<1x32x32xbf16>
    %8 = vector.shape_cast %7 : vector<1x32x32xbf16> to vector<32x32xbf16>
    %cst = arith.constant dense<0.000000e+00> : vector<64x32xf32>
    %9 = tpu.matmul %0, %8, %cst {dimension_numbers = #tpu.dot_dimension_numbers<[1], [0], [0], [1], [0, 0, 1, 1], [], []>} : vector<64x32xbf16>, vector<32x32xbf16>, vector<64x32xf32> -> vector<64x32xf32>
    %c0_10 = arith.constant 0 : index
    %c0_11 = arith.constant 0 : index
    %c0_12 = arith.constant 0 : index
    %10 = vector.load %arg0[%c0_10, %c0_11, %c0_12] : memref<3x64x64xbf16, #tpu.memory_space<vmem>>, vector<1x64x64xbf16>
    %11 = vector.shape_cast %10 : vector<1x64x64xbf16> to vector<64x64xbf16>
    %12 = arith.truncf %9 : vector<64x32xf32> to vector<64x32xbf16>
    %cst_13 = arith.constant dense<0.000000e+00> : vector<64x32xf32>
    %13 = tpu.matmul %11, %12, %cst_13 {dimension_numbers = #tpu.dot_dimension_numbers<[1], [0], [0], [1], [0, 0, 1, 1], [], []>} : vector<64x64xbf16>, vector<64x32xbf16>, vector<64x32xf32> -> vector<64x32xf32>
    %14 = vector.extract_strided_slice %4 {offsets = [0, 0], sizes = [1, 32], strides = [1, 1]} : vector<5x32xf32> to vector<1x32xf32>
    %15 = vector.broadcast %14 : vector<1x32xf32> to vector<64x32xf32>
    %16 = arith.addf %13, %15 : vector<64x32xf32>
    %cst_14 = arith.constant 0.000000e+00 : f32
    %17 = vector.broadcast %cst_14 : f32 to vector<64x32xf32>
    %18 = arith.minimumf %16, %17 : vector<64x32xf32>
    %19 = math.exp %18 : vector<64x32xf32>
    %cst_15 = arith.constant 1.000000e+00 : f32
    %20 = vector.broadcast %cst_15 : f32 to vector<64x32xf32>
    %21 = arith.subf %19, %20 : vector<64x32xf32>
    %cst_16 = arith.constant 0.000000e+00 : f32
    %22 = vector.broadcast %cst_16 : f32 to vector<64x32xf32>
    %23 = arith.cmpf ogt, %16, %22 : vector<64x32xf32>
    %24 = arith.select %23, %16, %21 : vector<64x32xi1>, vector<64x32xf32>
    %25 = arith.truncf %24 : vector<64x32xf32> to vector<64x32xbf16>
    %cst_17 = arith.constant dense<0.000000e+00> : vector<64x32xf32>
    %26 = tpu.matmul %25, %2, %cst_17 {dimension_numbers = #tpu.dot_dimension_numbers<[1], [0], [0], [1], [0, 0, 1, 1], [], []>} : vector<64x32xbf16>, vector<32x32xbf16>, vector<64x32xf32> -> vector<64x32xf32>
    %27 = vector.broadcast %5 : vector<1x32xf32> to vector<64x32xf32>
    %28 = arith.addf %26, %27 : vector<64x32xf32>
    %29 = math.tanh %28 : vector<64x32xf32>
    %cst_18 = arith.constant dense<0.000000e+00> : vector<32xf32>
    %30 = vector.multi_reduction <add>, %29, %cst_18 [0] : vector<64x32xf32> to vector<32xf32>
    %31 = vector.shape_cast %30 : vector<32xf32> to vector<1x32xf32>
    %cst_19 = arith.constant 1.562500e-02 : f32
    %32 = vector.broadcast %cst_19 : f32 to vector<1x32xf32>
    %33 = arith.mulf %31, %32 : vector<1x32xf32>
    %c1 = arith.constant 1 : index
    %c0_20 = arith.constant 0 : index
    %c0_21 = arith.constant 0 : index
    %34 = vector.load %arg2[%c1, %c0_20, %c0_21] : memref<3x32x32xbf16, #tpu.memory_space<vmem>>, vector<1x32x32xbf16>
    %35 = vector.shape_cast %34 : vector<1x32x32xbf16> to vector<32x32xbf16>
    %cst_22 = arith.constant dense<0.000000e+00> : vector<64x32xf32>
    %36 = tpu.matmul %0, %35, %cst_22 {dimension_numbers = #tpu.dot_dimension_numbers<[1], [0], [0], [1], [0, 0, 1, 1], [], []>} : vector<64x32xbf16>, vector<32x32xbf16>, vector<64x32xf32> -> vector<64x32xf32>
    %c1_23 = arith.constant 1 : index
    %c0_24 = arith.constant 0 : index
    %c0_25 = arith.constant 0 : index
    %37 = vector.load %arg0[%c1_23, %c0_24, %c0_25] : memref<3x64x64xbf16, #tpu.memory_space<vmem>>, vector<1x64x64xbf16>
    %38 = vector.shape_cast %37 : vector<1x64x64xbf16> to vector<64x64xbf16>
    %39 = arith.truncf %36 : vector<64x32xf32> to vector<64x32xbf16>
    %cst_26 = arith.constant dense<0.000000e+00> : vector<64x32xf32>
    %40 = tpu.matmul %38, %39, %cst_26 {dimension_numbers = #tpu.dot_dimension_numbers<[1], [0], [0], [1], [0, 0, 1, 1], [], []>} : vector<64x64xbf16>, vector<64x32xbf16>, vector<64x32xf32> -> vector<64x32xf32>
    %41 = vector.extract_strided_slice %4 {offsets = [1, 0], sizes = [1, 32], strides = [1, 1]} : vector<5x32xf32> to vector<1x32xf32>
    %42 = vector.broadcast %41 : vector<1x32xf32> to vector<64x32xf32>
    %43 = arith.addf %40, %42 : vector<64x32xf32>
    %cst_27 = arith.constant 0.000000e+00 : f32
    %44 = vector.broadcast %cst_27 : f32 to vector<64x32xf32>
    %45 = arith.minimumf %43, %44 : vector<64x32xf32>
    %46 = math.exp %45 : vector<64x32xf32>
    %cst_28 = arith.constant 1.000000e+00 : f32
    %47 = vector.broadcast %cst_28 : f32 to vector<64x32xf32>
    %48 = arith.subf %46, %47 : vector<64x32xf32>
    %cst_29 = arith.constant 0.000000e+00 : f32
    %49 = vector.broadcast %cst_29 : f32 to vector<64x32xf32>
    %50 = arith.cmpf ogt, %43, %49 : vector<64x32xf32>
    %51 = arith.select %50, %43, %48 : vector<64x32xi1>, vector<64x32xf32>
    %52 = arith.truncf %51 : vector<64x32xf32> to vector<64x32xbf16>
    %cst_30 = arith.constant dense<0.000000e+00> : vector<64x32xf32>
    %53 = tpu.matmul %52, %2, %cst_30 {dimension_numbers = #tpu.dot_dimension_numbers<[1], [0], [0], [1], [0, 0, 1, 1], [], []>} : vector<64x32xbf16>, vector<32x32xbf16>, vector<64x32xf32> -> vector<64x32xf32>
    %54 = vector.broadcast %5 : vector<1x32xf32> to vector<64x32xf32>
    %55 = arith.addf %53, %54 : vector<64x32xf32>
    %56 = math.tanh %55 : vector<64x32xf32>
    %cst_31 = arith.constant dense<0.000000e+00> : vector<32xf32>
    %57 = vector.multi_reduction <add>, %56, %cst_31 [0] : vector<64x32xf32> to vector<32xf32>
    %58 = vector.shape_cast %57 : vector<32xf32> to vector<1x32xf32>
    %cst_32 = arith.constant 1.562500e-02 : f32
    %59 = vector.broadcast %cst_32 : f32 to vector<1x32xf32>
    %60 = arith.mulf %58, %59 : vector<1x32xf32>
    %c2 = arith.constant 2 : index
    %c0_33 = arith.constant 0 : index
    %c0_34 = arith.constant 0 : index
    %61 = vector.load %arg2[%c2, %c0_33, %c0_34] : memref<3x32x32xbf16, #tpu.memory_space<vmem>>, vector<1x32x32xbf16>
    %62 = vector.shape_cast %61 : vector<1x32x32xbf16> to vector<32x32xbf16>
    %cst_35 = arith.constant dense<0.000000e+00> : vector<64x32xf32>
    %63 = tpu.matmul %0, %62, %cst_35 {dimension_numbers = #tpu.dot_dimension_numbers<[1], [0], [0], [1], [0, 0, 1, 1], [], []>} : vector<64x32xbf16>, vector<32x32xbf16>, vector<64x32xf32> -> vector<64x32xf32>
    %c2_36 = arith.constant 2 : index
    %c0_37 = arith.constant 0 : index
    %c0_38 = arith.constant 0 : index
    %64 = vector.load %arg0[%c2_36, %c0_37, %c0_38] : memref<3x64x64xbf16, #tpu.memory_space<vmem>>, vector<1x64x64xbf16>
    %65 = vector.shape_cast %64 : vector<1x64x64xbf16> to vector<64x64xbf16>
    %66 = arith.truncf %63 : vector<64x32xf32> to vector<64x32xbf16>
    %cst_39 = arith.constant dense<0.000000e+00> : vector<64x32xf32>
    %67 = tpu.matmul %65, %66, %cst_39 {dimension_numbers = #tpu.dot_dimension_numbers<[1], [0], [0], [1], [0, 0, 1, 1], [], []>} : vector<64x64xbf16>, vector<64x32xbf16>, vector<64x32xf32> -> vector<64x32xf32>
    %68 = vector.extract_strided_slice %4 {offsets = [2, 0], sizes = [1, 32], strides = [1, 1]} : vector<5x32xf32> to vector<1x32xf32>
    %69 = vector.broadcast %68 : vector<1x32xf32> to vector<64x32xf32>
    %70 = arith.addf %67, %69 : vector<64x32xf32>
    %cst_40 = arith.constant 0.000000e+00 : f32
    %71 = vector.broadcast %cst_40 : f32 to vector<64x32xf32>
    %72 = arith.minimumf %70, %71 : vector<64x32xf32>
    %73 = math.exp %72 : vector<64x32xf32>
    %cst_41 = arith.constant 1.000000e+00 : f32
    %74 = vector.broadcast %cst_41 : f32 to vector<64x32xf32>
    %75 = arith.subf %73, %74 : vector<64x32xf32>
    %cst_42 = arith.constant 0.000000e+00 : f32
    %76 = vector.broadcast %cst_42 : f32 to vector<64x32xf32>
    %77 = arith.cmpf ogt, %70, %76 : vector<64x32xf32>
    %78 = arith.select %77, %70, %75 : vector<64x32xi1>, vector<64x32xf32>
    %79 = arith.truncf %78 : vector<64x32xf32> to vector<64x32xbf16>
    %cst_43 = arith.constant dense<0.000000e+00> : vector<64x32xf32>
    %80 = tpu.matmul %79, %2, %cst_43 {dimension_numbers = #tpu.dot_dimension_numbers<[1], [0], [0], [1], [0, 0, 1, 1], [], []>} : vector<64x32xbf16>, vector<32x32xbf16>, vector<64x32xf32> -> vector<64x32xf32>
    %81 = vector.broadcast %5 : vector<1x32xf32> to vector<64x32xf32>
    %82 = arith.addf %80, %81 : vector<64x32xf32>
    %83 = math.tanh %82 : vector<64x32xf32>
    %cst_44 = arith.constant dense<0.000000e+00> : vector<32xf32>
    %84 = vector.multi_reduction <add>, %83, %cst_44 [0] : vector<64x32xf32> to vector<32xf32>
    %85 = vector.shape_cast %84 : vector<32xf32> to vector<1x32xf32>
    %cst_45 = arith.constant 1.562500e-02 : f32
    %86 = vector.broadcast %cst_45 : f32 to vector<1x32xf32>
    %87 = arith.mulf %85, %86 : vector<1x32xf32>
    %88 = tpu.concatenate %33, %60, %87 in 0 : vector<1x32xf32>, vector<1x32xf32>, vector<1x32xf32> -> vector<3x32xf32>
    %89 = vector.broadcast %6 : vector<1x32xf32> to vector<3x32xf32>
    %90 = arith.mulf %88, %89 : vector<3x32xf32>
    %cst_46 = arith.constant dense<0.000000e+00> : vector<3xf32>
    %91 = vector.multi_reduction <add>, %90, %cst_46 [1] : vector<3x32xf32> to vector<3xf32>
    %92 = vector.shape_cast %91 : vector<3xf32> to vector<3x1xf32>
    %cst_47 = arith.constant dense<0xFF800000> : vector<1xf32>
    %93 = vector.multi_reduction <maximumf>, %92, %cst_47 [0] : vector<3x1xf32> to vector<1xf32>
    %94 = vector.shape_cast %93 : vector<1xf32> to vector<1x1xf32>
    %95 = vector.broadcast %94 : vector<1x1xf32> to vector<3x1xf32>
    %96 = arith.subf %92, %95 : vector<3x1xf32>
    %97 = math.exp %96 : vector<3x1xf32>
    %cst_48 = arith.constant dense<0.000000e+00> : vector<1xf32>
    %98 = vector.multi_reduction <add>, %97, %cst_48 [0] : vector<3x1xf32> to vector<1xf32>
    %99 = vector.shape_cast %98 : vector<1xf32> to vector<1x1xf32>
    %100 = vector.broadcast %99 : vector<1x1xf32> to vector<3x1xf32>
    %101 = arith.divf %97, %100 : vector<3x1xf32>
    %102 = vector.extract_strided_slice %101 {offsets = [0, 0], sizes = [1, 1], strides = [1, 1]} : vector<3x1xf32> to vector<1x1xf32>
    %103 = vector.broadcast %102 : vector<1x1xf32> to vector<64x32xf32>
    %104 = arith.mulf %103, %24 : vector<64x32xf32>
    %105 = vector.extract_strided_slice %101 {offsets = [1, 0], sizes = [1, 1], strides = [1, 1]} : vector<3x1xf32> to vector<1x1xf32>
    %106 = vector.broadcast %105 : vector<1x1xf32> to vector<64x32xf32>
    %107 = arith.mulf %106, %51 : vector<64x32xf32>
    %108 = arith.addf %104, %107 : vector<64x32xf32>
    %109 = vector.extract_strided_slice %101 {offsets = [2, 0], sizes = [1, 1], strides = [1, 1]} : vector<3x1xf32> to vector<1x1xf32>
    %110 = vector.broadcast %109 : vector<1x1xf32> to vector<64x32xf32>
    %111 = arith.mulf %110, %78 : vector<64x32xf32>
    %112 = arith.addf %108, %111 : vector<64x32xf32>
    %113 = arith.truncf %112 : vector<64x32xf32> to vector<64x32xbf16>
    %c1_49 = arith.constant 1 : index
    %c0_50 = arith.constant 0 : index
    %c0_51 = arith.constant 0 : index
    %114 = vector.load %arg4[%c1_49, %c0_50, %c0_51] : memref<2x32x32xbf16, #tpu.memory_space<vmem>>, vector<1x32x32xbf16>
    %115 = vector.shape_cast %114 : vector<1x32x32xbf16> to vector<32x32xbf16>
    %c1_52 = arith.constant 1 : index
    %c0_53 = arith.constant 0 : index
    %c0_54 = arith.constant 0 : index
    %116 = vector.load %arg5[%c1_52, %c0_53, %c0_54] : memref<2x5x32xf32, #tpu.memory_space<vmem>>, vector<1x5x32xf32>
    %117 = vector.shape_cast %116 : vector<1x5x32xf32> to vector<5x32xf32>
    %118 = vector.extract_strided_slice %117 {offsets = [3, 0], sizes = [1, 32], strides = [1, 1]} : vector<5x32xf32> to vector<1x32xf32>
    %119 = vector.extract_strided_slice %117 {offsets = [4, 0], sizes = [1, 32], strides = [1, 1]} : vector<5x32xf32> to vector<1x32xf32>
    %c0_55 = arith.constant 0 : index
    %c0_56 = arith.constant 0 : index
    %c0_57 = arith.constant 0 : index
    %120 = vector.load %arg3[%c0_55, %c0_56, %c0_57] : memref<3x32x32xbf16, #tpu.memory_space<vmem>>, vector<1x32x32xbf16>
    %121 = vector.shape_cast %120 : vector<1x32x32xbf16> to vector<32x32xbf16>
    %cst_58 = arith.constant dense<0.000000e+00> : vector<64x32xf32>
    %122 = tpu.matmul %113, %121, %cst_58 {dimension_numbers = #tpu.dot_dimension_numbers<[1], [0], [0], [1], [0, 0, 1, 1], [], []>} : vector<64x32xbf16>, vector<32x32xbf16>, vector<64x32xf32> -> vector<64x32xf32>
    %c0_59 = arith.constant 0 : index
    %c0_60 = arith.constant 0 : index
    %c0_61 = arith.constant 0 : index
    %123 = vector.load %arg0[%c0_59, %c0_60, %c0_61] : memref<3x64x64xbf16, #tpu.memory_space<vmem>>, vector<1x64x64xbf16>
    %124 = vector.shape_cast %123 : vector<1x64x64xbf16> to vector<64x64xbf16>
    %125 = arith.truncf %122 : vector<64x32xf32> to vector<64x32xbf16>
    %cst_62 = arith.constant dense<0.000000e+00> : vector<64x32xf32>
    %126 = tpu.matmul %124, %125, %cst_62 {dimension_numbers = #tpu.dot_dimension_numbers<[1], [0], [0], [1], [0, 0, 1, 1], [], []>} : vector<64x64xbf16>, vector<64x32xbf16>, vector<64x32xf32> -> vector<64x32xf32>
    %127 = vector.extract_strided_slice %117 {offsets = [0, 0], sizes = [1, 32], strides = [1, 1]} : vector<5x32xf32> to vector<1x32xf32>
    %128 = vector.broadcast %127 : vector<1x32xf32> to vector<64x32xf32>
    %129 = arith.addf %126, %128 : vector<64x32xf32>
    %cst_63 = arith.constant 0.000000e+00 : f32
    %130 = vector.broadcast %cst_63 : f32 to vector<64x32xf32>
    %131 = arith.minimumf %129, %130 : vector<64x32xf32>
    %132 = math.exp %131 : vector<64x32xf32>
    %cst_64 = arith.constant 1.000000e+00 : f32
    %133 = vector.broadcast %cst_64 : f32 to vector<64x32xf32>
    %134 = arith.subf %132, %133 : vector<64x32xf32>
    %cst_65 = arith.constant 0.000000e+00 : f32
    %135 = vector.broadcast %cst_65 : f32 to vector<64x32xf32>
    %136 = arith.cmpf ogt, %129, %135 : vector<64x32xf32>
    %137 = arith.select %136, %129, %134 : vector<64x32xi1>, vector<64x32xf32>
    %138 = arith.truncf %137 : vector<64x32xf32> to vector<64x32xbf16>
    %cst_66 = arith.constant dense<0.000000e+00> : vector<64x32xf32>
    %139 = tpu.matmul %138, %115, %cst_66 {dimension_numbers = #tpu.dot_dimension_numbers<[1], [0], [0], [1], [0, 0, 1, 1], [], []>} : vector<64x32xbf16>, vector<32x32xbf16>, vector<64x32xf32> -> vector<64x32xf32>
    %140 = vector.broadcast %118 : vector<1x32xf32> to vector<64x32xf32>
    %141 = arith.addf %139, %140 : vector<64x32xf32>
    %142 = math.tanh %141 : vector<64x32xf32>
    %cst_67 = arith.constant dense<0.000000e+00> : vector<32xf32>
    %143 = vector.multi_reduction <add>, %142, %cst_67 [0] : vector<64x32xf32> to vector<32xf32>
    %144 = vector.shape_cast %143 : vector<32xf32> to vector<1x32xf32>
    %cst_68 = arith.constant 1.562500e-02 : f32
    %145 = vector.broadcast %cst_68 : f32 to vector<1x32xf32>
    %146 = arith.mulf %144, %145 : vector<1x32xf32>
    %c1_69 = arith.constant 1 : index
    %c0_70 = arith.constant 0 : index
    %c0_71 = arith.constant 0 : index
    %147 = vector.load %arg3[%c1_69, %c0_70, %c0_71] : memref<3x32x32xbf16, #tpu.memory_space<vmem>>, vector<1x32x32xbf16>
    %148 = vector.shape_cast %147 : vector<1x32x32xbf16> to vector<32x32xbf16>
    %cst_72 = arith.constant dense<0.000000e+00> : vector<64x32xf32>
    %149 = tpu.matmul %113, %148, %cst_72 {dimension_numbers = #tpu.dot_dimension_numbers<[1], [0], [0], [1], [0, 0, 1, 1], [], []>} : vector<64x32xbf16>, vector<32x32xbf16>, vector<64x32xf32> -> vector<64x32xf32>
    %c1_73 = arith.constant 1 : index
    %c0_74 = arith.constant 0 : index
    %c0_75 = arith.constant 0 : index
    %150 = vector.load %arg0[%c1_73, %c0_74, %c0_75] : memref<3x64x64xbf16, #tpu.memory_space<vmem>>, vector<1x64x64xbf16>
    %151 = vector.shape_cast %150 : vector<1x64x64xbf16> to vector<64x64xbf16>
    %152 = arith.truncf %149 : vector<64x32xf32> to vector<64x32xbf16>
    %cst_76 = arith.constant dense<0.000000e+00> : vector<64x32xf32>
    %153 = tpu.matmul %151, %152, %cst_76 {dimension_numbers = #tpu.dot_dimension_numbers<[1], [0], [0], [1], [0, 0, 1, 1], [], []>} : vector<64x64xbf16>, vector<64x32xbf16>, vector<64x32xf32> -> vector<64x32xf32>
    %154 = vector.extract_strided_slice %117 {offsets = [1, 0], sizes = [1, 32], strides = [1, 1]} : vector<5x32xf32> to vector<1x32xf32>
    %155 = vector.broadcast %154 : vector<1x32xf32> to vector<64x32xf32>
    %156 = arith.addf %153, %155 : vector<64x32xf32>
    %cst_77 = arith.constant 0.000000e+00 : f32
    %157 = vector.broadcast %cst_77 : f32 to vector<64x32xf32>
    %158 = arith.minimumf %156, %157 : vector<64x32xf32>
    %159 = math.exp %158 : vector<64x32xf32>
    %cst_78 = arith.constant 1.000000e+00 : f32
    %160 = vector.broadcast %cst_78 : f32 to vector<64x32xf32>
    %161 = arith.subf %159, %160 : vector<64x32xf32>
    %cst_79 = arith.constant 0.000000e+00 : f32
    %162 = vector.broadcast %cst_79 : f32 to vector<64x32xf32>
    %163 = arith.cmpf ogt, %156, %162 : vector<64x32xf32>
    %164 = arith.select %163, %156, %161 : vector<64x32xi1>, vector<64x32xf32>
    %165 = arith.truncf %164 : vector<64x32xf32> to vector<64x32xbf16>
    %cst_80 = arith.constant dense<0.000000e+00> : vector<64x32xf32>
    %166 = tpu.matmul %165, %115, %cst_80 {dimension_numbers = #tpu.dot_dimension_numbers<[1], [0], [0], [1], [0, 0, 1, 1], [], []>} : vector<64x32xbf16>, vector<32x32xbf16>, vector<64x32xf32> -> vector<64x32xf32>
    %167 = vector.broadcast %118 : vector<1x32xf32> to vector<64x32xf32>
    %168 = arith.addf %166, %167 : vector<64x32xf32>
    %169 = math.tanh %168 : vector<64x32xf32>
    %cst_81 = arith.constant dense<0.000000e+00> : vector<32xf32>
    %170 = vector.multi_reduction <add>, %169, %cst_81 [0] : vector<64x32xf32> to vector<32xf32>
    %171 = vector.shape_cast %170 : vector<32xf32> to vector<1x32xf32>
    %cst_82 = arith.constant 1.562500e-02 : f32
    %172 = vector.broadcast %cst_82 : f32 to vector<1x32xf32>
    %173 = arith.mulf %171, %172 : vector<1x32xf32>
    %c2_83 = arith.constant 2 : index
    %c0_84 = arith.constant 0 : index
    %c0_85 = arith.constant 0 : index
    %174 = vector.load %arg3[%c2_83, %c0_84, %c0_85] : memref<3x32x32xbf16, #tpu.memory_space<vmem>>, vector<1x32x32xbf16>
    %175 = vector.shape_cast %174 : vector<1x32x32xbf16> to vector<32x32xbf16>
    %cst_86 = arith.constant dense<0.000000e+00> : vector<64x32xf32>
    %176 = tpu.matmul %113, %175, %cst_86 {dimension_numbers = #tpu.dot_dimension_numbers<[1], [0], [0], [1], [0, 0, 1, 1], [], []>} : vector<64x32xbf16>, vector<32x32xbf16>, vector<64x32xf32> -> vector<64x32xf32>
    %c2_87 = arith.constant 2 : index
    %c0_88 = arith.constant 0 : index
    %c0_89 = arith.constant 0 : index
    %177 = vector.load %arg0[%c2_87, %c0_88, %c0_89] : memref<3x64x64xbf16, #tpu.memory_space<vmem>>, vector<1x64x64xbf16>
    %178 = vector.shape_cast %177 : vector<1x64x64xbf16> to vector<64x64xbf16>
    %179 = arith.truncf %176 : vector<64x32xf32> to vector<64x32xbf16>
    %cst_90 = arith.constant dense<0.000000e+00> : vector<64x32xf32>
    %180 = tpu.matmul %178, %179, %cst_90 {dimension_numbers = #tpu.dot_dimension_numbers<[1], [0], [0], [1], [0, 0, 1, 1], [], []>} : vector<64x64xbf16>, vector<64x32xbf16>, vector<64x32xf32> -> vector<64x32xf32>
    %181 = vector.extract_strided_slice %117 {offsets = [2, 0], sizes = [1, 32], strides = [1, 1]} : vector<5x32xf32> to vector<1x32xf32>
    %182 = vector.broadcast %181 : vector<1x32xf32> to vector<64x32xf32>
    %183 = arith.addf %180, %182 : vector<64x32xf32>
    %cst_91 = arith.constant 0.000000e+00 : f32
    %184 = vector.broadcast %cst_91 : f32 to vector<64x32xf32>
    %185 = arith.minimumf %183, %184 : vector<64x32xf32>
    %186 = math.exp %185 : vector<64x32xf32>
    %cst_92 = arith.constant 1.000000e+00 : f32
    %187 = vector.broadcast %cst_92 : f32 to vector<64x32xf32>
    %188 = arith.subf %186, %187 : vector<64x32xf32>
    %cst_93 = arith.constant 0.000000e+00 : f32
    %189 = vector.broadcast %cst_93 : f32 to vector<64x32xf32>
    %190 = arith.cmpf ogt, %183, %189 : vector<64x32xf32>
    %191 = arith.select %190, %183, %188 : vector<64x32xi1>, vector<64x32xf32>
    %192 = arith.truncf %191 : vector<64x32xf32> to vector<64x32xbf16>
    %cst_94 = arith.constant dense<0.000000e+00> : vector<64x32xf32>
    %193 = tpu.matmul %192, %115, %cst_94 {dimension_numbers = #tpu.dot_dimension_numbers<[1], [0], [0], [1], [0, 0, 1, 1], [], []>} : vector<64x32xbf16>, vector<32x32xbf16>, vector<64x32xf32> -> vector<64x32xf32>
    %194 = vector.broadcast %118 : vector<1x32xf32> to vector<64x32xf32>
    %195 = arith.addf %193, %194 : vector<64x32xf32>
    %196 = math.tanh %195 : vector<64x32xf32>
    %cst_95 = arith.constant dense<0.000000e+00> : vector<32xf32>
    %197 = vector.multi_reduction <add>, %196, %cst_95 [0] : vector<64x32xf32> to vector<32xf32>
    %198 = vector.shape_cast %197 : vector<32xf32> to vector<1x32xf32>
    %cst_96 = arith.constant 1.562500e-02 : f32
    %199 = vector.broadcast %cst_96 : f32 to vector<1x32xf32>
    %200 = arith.mulf %198, %199 : vector<1x32xf32>
    %201 = tpu.concatenate %146, %173, %200 in 0 : vector<1x32xf32>, vector<1x32xf32>, vector<1x32xf32> -> vector<3x32xf32>
    %202 = vector.broadcast %119 : vector<1x32xf32> to vector<3x32xf32>
    %203 = arith.mulf %201, %202 : vector<3x32xf32>
    %cst_97 = arith.constant dense<0.000000e+00> : vector<3xf32>
    %204 = vector.multi_reduction <add>, %203, %cst_97 [1] : vector<3x32xf32> to vector<3xf32>
    %205 = vector.shape_cast %204 : vector<3xf32> to vector<3x1xf32>
    %cst_98 = arith.constant dense<0xFF800000> : vector<1xf32>
    %206 = vector.multi_reduction <maximumf>, %205, %cst_98 [0] : vector<3x1xf32> to vector<1xf32>
    %207 = vector.shape_cast %206 : vector<1xf32> to vector<1x1xf32>
    %208 = vector.broadcast %207 : vector<1x1xf32> to vector<3x1xf32>
    %209 = arith.subf %205, %208 : vector<3x1xf32>
    %210 = math.exp %209 : vector<3x1xf32>
    %cst_99 = arith.constant dense<0.000000e+00> : vector<1xf32>
    %211 = vector.multi_reduction <add>, %210, %cst_99 [0] : vector<3x1xf32> to vector<1xf32>
    %212 = vector.shape_cast %211 : vector<1xf32> to vector<1x1xf32>
    %213 = vector.broadcast %212 : vector<1x1xf32> to vector<3x1xf32>
    %214 = arith.divf %210, %213 : vector<3x1xf32>
    %215 = vector.extract_strided_slice %214 {offsets = [0, 0], sizes = [1, 1], strides = [1, 1]} : vector<3x1xf32> to vector<1x1xf32>
    %216 = vector.broadcast %215 : vector<1x1xf32> to vector<64x32xf32>
    %217 = arith.mulf %216, %137 : vector<64x32xf32>
    %218 = vector.extract_strided_slice %214 {offsets = [1, 0], sizes = [1, 1], strides = [1, 1]} : vector<3x1xf32> to vector<1x1xf32>
    %219 = vector.broadcast %218 : vector<1x1xf32> to vector<64x32xf32>
    %220 = arith.mulf %219, %164 : vector<64x32xf32>
    %221 = arith.addf %217, %220 : vector<64x32xf32>
    %222 = vector.extract_strided_slice %214 {offsets = [2, 0], sizes = [1, 1], strides = [1, 1]} : vector<3x1xf32> to vector<1x1xf32>
    %223 = vector.broadcast %222 : vector<1x1xf32> to vector<64x32xf32>
    %224 = arith.mulf %223, %191 : vector<64x32xf32>
    %225 = arith.addf %221, %224 : vector<64x32xf32>
    %226 = arith.truncf %225 : vector<64x32xf32> to vector<64x32xbf16>
    %c0_100 = arith.constant 0 : index
    %c0_101 = arith.constant 0 : index
    %227 = vector.load %arg6[%c0_100, %c0_101] : memref<32x256xbf16, #tpu.memory_space<vmem>>, vector<32x256xbf16>
    %cst_102 = arith.constant dense<0.000000e+00> : vector<64x256xf32>
    %228 = tpu.matmul %226, %227, %cst_102 {dimension_numbers = #tpu.dot_dimension_numbers<[1], [0], [0], [1], [0, 0, 1, 1], [], []>} : vector<64x32xbf16>, vector<32x256xbf16>, vector<64x256xf32> -> vector<64x256xf32>
    %c0_103 = arith.constant 0 : index
    %c0_104 = arith.constant 0 : index
    %229 = vector.load %arg9[%c0_103, %c0_104] : memref<3x256xf32, #tpu.memory_space<vmem>>, vector<1x256xf32>
    %230 = vector.broadcast %229 : vector<1x256xf32> to vector<64x256xf32>
    %231 = arith.addf %228, %230 : vector<64x256xf32>
    %cst_105 = arith.constant 0.000000e+00 : f32
    %232 = vector.broadcast %cst_105 : f32 to vector<64x256xf32>
    %233 = arith.maximumf %231, %232 : vector<64x256xf32>
    %234 = arith.truncf %233 : vector<64x256xf32> to vector<64x256xbf16>
    %c0_106 = arith.constant 0 : index
    %c0_107 = arith.constant 0 : index
    %235 = vector.load %arg7[%c0_106, %c0_107] : memref<256x128xbf16, #tpu.memory_space<vmem>>, vector<256x128xbf16>
    %cst_108 = arith.constant dense<0.000000e+00> : vector<64x128xf32>
    %236 = tpu.matmul %234, %235, %cst_108 {dimension_numbers = #tpu.dot_dimension_numbers<[1], [0], [0], [1], [0, 0, 1, 1], [], []>} : vector<64x256xbf16>, vector<256x128xbf16>, vector<64x128xf32> -> vector<64x128xf32>
    %c1_109 = arith.constant 1 : index
    %c0_110 = arith.constant 0 : index
    %237 = vector.load %arg9[%c1_109, %c0_110] : memref<3x256xf32, #tpu.memory_space<vmem>>, vector<1x128xf32>
    %238 = vector.broadcast %237 : vector<1x128xf32> to vector<64x128xf32>
    %239 = arith.addf %236, %238 : vector<64x128xf32>
    %cst_111 = arith.constant 0.000000e+00 : f32
    %240 = vector.broadcast %cst_111 : f32 to vector<64x128xf32>
    %241 = arith.maximumf %239, %240 : vector<64x128xf32>
    %242 = arith.truncf %241 : vector<64x128xf32> to vector<64x128xbf16>
    %c0_112 = arith.constant 0 : index
    %c0_113 = arith.constant 0 : index
    %243 = vector.load %arg8[%c0_112, %c0_113] : memref<128x128xbf16, #tpu.memory_space<vmem>>, vector<128x128xbf16>
    %cst_114 = arith.constant dense<0.000000e+00> : vector<64x128xf32>
    %244 = tpu.matmul %242, %243, %cst_114 {dimension_numbers = #tpu.dot_dimension_numbers<[1], [0], [0], [1], [0, 0, 1, 1], [], []>} : vector<64x128xbf16>, vector<128x128xbf16>, vector<64x128xf32> -> vector<64x128xf32>
    %c2_115 = arith.constant 2 : index
    %c0_116 = arith.constant 0 : index
    %245 = vector.load %arg9[%c2_115, %c0_116] : memref<3x256xf32, #tpu.memory_space<vmem>>, vector<1x128xf32>
    %246 = vector.broadcast %245 : vector<1x128xf32> to vector<64x128xf32>
    %247 = arith.addf %244, %246 : vector<64x128xf32>
    %c0_117 = arith.constant 0 : index
    %c0_118 = arith.constant 0 : index
    %248 = vector.load %arg10[%c0_117, %c0_118] : memref<64x128xf32, #tpu.memory_space<vmem>>, vector<64x128xf32>
    tpu.vector_store %arg10[%c0_117, %c0_118], %247 {strides = array<i32>} : memref<64x128xf32, #tpu.memory_space<vmem>>, vector<64x128xf32>,
    return
  }
}

</mosaic_0001>

<llo_original>
// kernel: tpu_custom_call.1
$region0: #{tpu_custom_call.1}
  #allocation0 [shape = 'u32[]', space=smem, size = 0x4, offset = 0x4, fixed_abs, tag = 'smem constant byte address 0x4 - core index']
  #allocation1 [shape = 'u32[144,128]{1,0:T(1,128)}', space=vmem, size = 0x12000, scoped, tag = 'internal scratch']
  %s0 = inlined_call_operand.hbm [shape: bf16[3,64,64], index: 0, kind: input, shape index: {}]
  %s1 = inlined_call_operand.vmem [shape: bf16[64,32], index: 1, kind: input, shape index: {}]
  %s2 = inlined_call_operand.hbm [shape: bf16[3,32,32], index: 2, kind: input, shape index: {}]
  %s3 = inlined_call_operand.hbm [shape: bf16[3,32,32], index: 3, kind: input, shape index: {}]
  %s4 = inlined_call_operand.vmem [shape: bf16[2,32,32], index: 4, kind: input, shape index: {}]
  %s5 = inlined_call_operand.vmem [shape: f32[2,5,32], index: 5, kind: input, shape index: {}]
  %s6 = inlined_call_operand.hbm [shape: bf16[32,256], index: 6, kind: input, shape index: {}]
  %s7 = inlined_call_operand.hbm [shape: bf16[256,128], index: 7, kind: input, shape index: {}]
  %s8 = inlined_call_operand.vmem [shape: bf16[128,128], index: 8, kind: input, shape index: {}]
  %s9 = inlined_call_operand.vmem [shape: f32[3,256], index: 9, kind: input, shape index: {}]
  %s10 = inlined_call_operand.hbm [shape: f32[64,128], index: 10, kind: output, shape index: {}]
  %s11 = sld [smem:[#allocation0]]
  $region70: #{tpu_custom_call.1} parent=0
    _
  %s13 = ssub.s32 1, %s11
  %s14 = scalar_select 0, %s13, %s11
  $region1: #{tpu_custom_call.1} parent=0
    #allocation2 [shape = 'u8[49152]{0}', space=vmem, size = 0xc000, scoped, tag = 'input window, operand 0, single buffered']
    #allocation3 [shape = 's32[1]{0}', space=sflag, size = 0x4, scoped, tag = 'scoped memory for tpu_custom_call.1']
    #allocation4 [shape = 's32[1]{0}', space=sflag, size = 0x4, scoped, tag = 'scoped memory for tpu_custom_call.1']
    #allocation5 [shape = 'u8[24576]{0}', space=vmem, size = 0x6000, scoped, tag = 'input window, operand 2, single buffered']
    #allocation6 [shape = 's32[1]{0}', space=sflag, size = 0x4, scoped, tag = 'scoped memory for tpu_custom_call.1']
    #allocation7 [shape = 'u8[24576]{0}', space=vmem, size = 0x6000, scoped, tag = 'input window, operand 3, single buffered']
    #allocation8 [shape = 'u8[16384]{0}', space=vmem, size = 0x4000, scoped, tag = 'input window, operand 6, single buffered']
    #allocation9 [shape = 's32[1]{0}', space=sflag, size = 0x4, scoped, tag = 'scoped memory for tpu_custom_call.1']
    #allocation10 [shape = 'u8[65536]{0}', space=vmem, size = 0x10000, scoped, tag = 'input window, operand 7, single buffered']
    #allocation11 [shape = 'u8[32768]{0}', space=vmem, size = 0x8000, scoped, tag = 'output window, operand 0, single buffered']
    %15 = vsyncpa [#allocation3], 0
    %16 = vsyncpa [#allocation6], 0
    %17 = vsyncpa [#allocation9], 0
    %18 = vsyncpa [#allocation4], 0
    // Predicated region
    $region2: #{tpu_custom_call.1} parent=1 // pred_check
      _
    $region3: #{tpu_custom_call.1} parent=1 // pred_check_branch
      %20 = sbr.rel (0) target = $region5
    $region4: #{tpu_custom_call.1} parent=1 // pred_region
      %s22 = ssub.s32 1536, 1536
      %23 = vsyncadd [#allocation3], %s22
      %s24 = sshll.u32 [#allocation2], 4
      %s25 = int_to_ptr.vmem [resolvable:$true] %s24
      %30 = dma.hbm_to_vmem [thread:$0]  %s0, 1536, %s25, [#allocation3], 64, 64, 4
    $region5: #{tpu_custom_call.1} parent=1 // pred_fallthru
      _
    // Predicated region
    $region6: #{tpu_custom_call.1} parent=1 // pred_check
      _
    $region7: #{tpu_custom_call.1} parent=1 // pred_check_branch
      %32 = sbr.rel (0) target = $region9
    $region8: #{tpu_custom_call.1} parent=1 // pred_region
      _
    $region9: #{tpu_custom_call.1} parent=1 // pred_fallthru
      _
    // Predicated region
    $region10: #{tpu_custom_call.1} parent=1 // pred_check
      _
    $region11: #{tpu_custom_call.1} parent=1 // pred_check_branch
      %34 = sbr.rel (0) target = $region13
    $region12: #{tpu_custom_call.1} parent=1 // pred_region
      %s36 = ssub.s32 768, 768
      %37 = vsyncadd [#allocation6], %s36
      %s38 = sshll.u32 [#allocation5], 4
      %s39 = int_to_ptr.vmem [resolvable:$true] %s38
      %44 = dma.hbm_to_vmem [thread:$0]  %s2, 768, %s39, [#allocation6], 64, 64, 4
    $region13: #{tpu_custom_call.1} parent=1 // pred_fallthru
      _
    // Predicated region
    $region14: #{tpu_custom_call.1} parent=1 // pred_check
      _
    $region15: #{tpu_custom_call.1} parent=1 // pred_check_branch
      %46 = sbr.rel (0) target = $region17
    $region16: #{tpu_custom_call.1} parent=1 // pred_region
      %s48 = ssub.s32 768, 768
      %49 = vsyncadd [#allocation6], %s48
      %s50 = sshll.u32 [#allocation7], 4
      %s51 = int_to_ptr.vmem [resolvable:$true] %s50
      %56 = dma.hbm_to_vmem [thread:$0]  %s3, 768, %s51, [#allocation6], 64, 64, 4
    $region17: #{tpu_custom_call.1} parent=1 // pred_fallthru
      _
    // Predicated region
    $region18: #{tpu_custom_call.1} parent=1 // pred_check
      _
    $region19: #{tpu_custom_call.1} parent=1 // pred_check_branch
      %58 = sbr.rel (0) target = $region21
    $region20: #{tpu_custom_call.1} parent=1 // pred_region
      _
    $region21: #{tpu_custom_call.1} parent=1 // pred_fallthru
      _
    // Predicated region
    $region22: #{tpu_custom_call.1} parent=1 // pred_check
      _
    $region23: #{tpu_custom_call.1} parent=1 // pred_check_branch
      %60 = sbr.rel (0) target = $region25
    $region24: #{tpu_custom_call.1} parent=1 // pred_region
      _
    $region25: #{tpu_custom_call.1} parent=1 // pred_fallthru
      _
    // Predicated region
    $region26: #{tpu_custom_call.1} parent=1 // pred_check
      _
    $region27: #{tpu_custom_call.1} parent=1 // pred_check_branch
      %62 = sbr.rel (0) target = $region29
    $region28: #{tpu_custom_call.1} parent=1 // pred_region
      %s64 = ssub.s32 512, 512
      %65 = vsyncadd [#allocation9], %s64
      %s66 = sshll.u32 [#allocation8], 4
      %s67 = int_to_ptr.vmem [resolvable:$true] %s66
      %72 = dma.hbm_to_vmem [thread:$0]  %s6, 512, %s67, [#allocation9], 128, 128, 8
    $region29: #{tpu_custom_call.1} parent=1 // pred_fallthru
      _
    // Predicated region
    $region30: #{tpu_custom_call.1} parent=1 // pred_check
      _
    $region31: #{tpu_custom_call.1} parent=1 // pred_check_branch
      %74 = sbr.rel (0) target = $region33
    $region32: #{tpu_custom_call.1} parent=1 // pred_region
      %s76 = ssub.s32 2048, 2048
      %77 = vsyncadd [#allocation9], %s76
      %s78 = sshll.u32 [#allocation10], 4
      %s79 = int_to_ptr.vmem [resolvable:$true] %s78
      %84 = dma.hbm_to_vmem [thread:$0]  %s7, 2048, %s79, [#allocation9], 64, 64, 4
    $region33: #{tpu_custom_call.1} parent=1 // pred_fallthru
      _
    // Predicated region
    $region34: #{tpu_custom_call.1} parent=1 // pred_check
      _
    $region35: #{tpu_custom_call.1} parent=1 // pred_check_branch
      %86 = sbr.rel (0) target = $region37
    $region36: #{tpu_custom_call.1} parent=1 // pred_region
      _
    $region37: #{tpu_custom_call.1} parent=1 // pred_fallthru
      _
    // Predicated region
    $region38: #{tpu_custom_call.1} parent=1 // pred_check
      _
    $region39: #{tpu_custom_call.1} parent=1 // pred_check_branch
      %88 = sbr.rel (0) target = $region41
    $region40: #{tpu_custom_call.1} parent=1 // pred_region
      _
    $region41: #{tpu_custom_call.1} parent=1 // pred_fallthru
      _
    // Predicated region
    $region42: #{tpu_custom_call.1} parent=1 // pred_check
      _
    $region43: #{tpu_custom_call.1} parent=1 // pred_check_branch
      %90 = sbr.rel (0) target = $region45
    $region44: #{tpu_custom_call.1} parent=1 // pred_region
      %91 = dma.done [#allocation3], 1536
    $region45: #{tpu_custom_call.1} parent=1 // pred_fallthru
      _
    // Predicated region
    $region46: #{tpu_custom_call.1} parent=1 // pred_check
      _
    $region47: #{tpu_custom_call.1} parent=1 // pred_check_branch
      %93 = sbr.rel (0) target = $region49
    $region48: #{tpu_custom_call.1} parent=1 // pred_region
      %94 = dma.done [#allocation6], 768
    $region49: #{tpu_custom_call.1} parent=1 // pred_fallthru
      _
    // Predicated region
    $region50: #{tpu_custom_call.1} parent=1 // pred_check
      _
    $region51: #{tpu_custom_call.1} parent=1 // pred_check_branch
      %96 = sbr.rel (0) target = $region53
    $region52: #{tpu_custom_call.1} parent=1 // pred_region
      %97 = dma.done [#allocation6], 768
    $region53: #{tpu_custom_call.1} parent=1 // pred_fallthru
      _
    // Predicated region
    $region54: #{tpu_custom_call.1} parent=1 // pred_check
      _
    $region55: #{tpu_custom_call.1} parent=1 // pred_check_branch
      %99 = sbr.rel (0) target = $region57
    $region56: #{tpu_custom_call.1} parent=1 // pred_region
      %100 = dma.done [#allocation9], 512
    $region57: #{tpu_custom_call.1} parent=1 // pred_fallthru
      _
    // Predicated region
    $region58: #{tpu_custom_call.1} parent=1 // pred_check
      _
    $region59: #{tpu_custom_call.1} parent=1 // pred_check_branch
      %102 = sbr.rel (0) target = $region61
    $region60: #{tpu_custom_call.1} parent=1 // pred_region
      %103 = dma.done [#allocation9], 2048
    $region61: #{tpu_custom_call.1} parent=1 // pred_fallthru
      _
    %v105 = vld [vmem:[%s1] sm:$0xf]
    %v106 = vld [vmem:[%s1 + $0x4] sm:$0xf]
    %v107 = vld [vmem:[%s1 + $0x8] sm:$0xf]
    %v108 = vld [vmem:[%s1 + $0xc] sm:$0xf]
    %v109 = vld [vmem:[%s1 + $0x10] sm:$0xf]
    %v110 = vld [vmem:[%s1 + $0x14] sm:$0xf]
    %v111 = vld [vmem:[%s1 + $0x18] sm:$0xf]
    %v112 = vld [vmem:[%s1 + $0x1c] sm:$0xf]
    %v113 = vld [vmem:[%s4] sm:$0xf]
    %v114 = vld [vmem:[%s4 + $0x4] sm:$0xf]
    %v115 = vld [vmem:[%s4 + $0x8] sm:$0xf]
    %v116 = vld [vmem:[%s4 + $0xc] sm:$0xf]
    %v117 = vld [vmem:[%s5] sm:$0x1f]
    %v118 = vld [vmem:[#allocation5] sm:$0xf]
    %v119 = vld [vmem:[#allocation5 + $0x4] sm:$0xf]
    %v120 = vld [vmem:[#allocation5 + $0x8] sm:$0xf]
    %v121 = vld [vmem:[#allocation5 + $0xc] sm:$0xf]
    %v130 = vunpack.c.l.b16 %v105
    %v131 = vunpack.c.l.b16 %v106
    %v132 = vunpack.c.l.b16 %v107
    %v133 = vunpack.c.l.b16 %v108
    %v134 = vunpack.c.l.b16 %v109
    %v135 = vunpack.c.l.b16 %v110
    %v136 = vunpack.c.l.b16 %v111
    %v137 = vunpack.c.l.b16 %v112
    %v138 = vpack.c.b16 %v131, %v130
    %v139 = vpack.c.b16 %v133, %v132
    %v140 = vpack.c.b16 %v135, %v134
    %v141 = vpack.c.b16 %v137, %v136
    %v146 = vunpack.c.l.b16 %v118
    %v147 = vunpack.c.l.b16 %v119
    %v148 = vunpack.c.l.b16 %v120
    %v149 = vunpack.c.l.b16 %v121
    %v150 = vpack.c.b16 %v147, %v146
    %v151 = vpack.c.b16 %v149, %v148
    %vm154 = vcmask 261120
    %v156 = vsel %vm154, %v138, 0
    %v159 = vsel %vm154, %v139, 0
    %v162 = vsel %vm154, %v140, 0
    %v165 = vsel %vm154, %v141, 0
    %167 = vmatprep.subr.bf16.mxu0 0
    %168 = vmatpush1.bf16.msra.mxu0 %v150
    %169 = vmatprep.subr.bf16.mxu0 0
    %170 = vmatpush1.bf16.msra.mxu0 %v151
    %171 = vmatprep.subr.bf16.mxu0 0
    %172 = vmatpush1.bf16.msra.mxu0 0
    %173 = vmatprep.subr.bf16.mxu0 0
    %174 = vmatpush1.bf16.msra.mxu0 0
    %175 = vmatprep.subr.bf16.mxu0 0
    %176 = vmatpush1.bf16.msra.mxu0 0
    %177 = vmatprep.subr.bf16.mxu0 0
    %178 = vmatpush1.bf16.msra.mxu0 0
    %179 = vmatprep.subr.bf16.mxu0 0
    %180 = vmatpush1.bf16.msra.mxu0 0
    %181 = vmatprep.subr.bf16.mxu0 0
    %182 = vmatpush1.bf16.msra.mxu0 0
    %183 = vmatprep.subr.bf16.mxu0 0
    %184 = vmatpush1.bf16.msra.mxu0 0
    %185 = vmatprep.subr.bf16.mxu0 0
    %186 = vmatpush1.bf16.msra.mxu0 0
    %187 = vmatprep.subr.bf16.mxu0 0
    %188 = vmatpush1.bf16.msra.mxu0 0
    %189 = vmatprep.subr.bf16.mxu0 0
    %190 = vmatpush1.bf16.msra.mxu0 0
    %191 = vmatprep.subr.bf16.mxu0 0
    %192 = vmatpush1.bf16.msra.mxu0 0
    %193 = vmatprep.subr.bf16.mxu0 0
    %194 = vmatpush1.bf16.msra.mxu0 0
    %195 = vmatprep.subr.bf16.mxu0 0
    %196 = vmatpush1.bf16.msra.mxu0 0
    %197 = vmatprep.subr.bf16.mxu0 0
    %198 = vmatpush1.bf16.msra.mxu0 0
    %199 = vmatprep.mubr.bf16.mxu0 0
    %200 = vmatmul.mubr.bf16.gmra.mrb[0].mxu0 %v156
    %v201 = vpop.f32.mrb[0].mxu0
    %v202 = vadd.f32 0.0, %v201
    %v203 = vpop.f32.mrb[0].mxu0
    %v204 = vpop.f32.mrb[0].mxu0
    %v205 = vadd.f32 0.0, %v204
    %v206 = vpop.f32.mrb[0].mxu0
    %207 = vmatprep.mubr.bf16.mxu0 0
    %208 = vmatmul.mubr.bf16.gmra.mrb[0].mxu0 %v159
    %v209 = vpop.f32.mrb[0].mxu0
    %v210 = vadd.f32 0.0, %v209
    %v211 = vpop.f32.mrb[0].mxu0
    %v212 = vpop.f32.mrb[0].mxu0
    %v213 = vadd.f32 0.0, %v212
    %v214 = vpop.f32.mrb[0].mxu0
    %215 = vmatprep.mubr.bf16.mxu0 0
    %216 = vmatmul.mubr.bf16.gmra.mrb[0].mxu0 %v162
    %v217 = vpop.f32.mrb[0].mxu0
    %v218 = vadd.f32 0.0, %v217
    %v219 = vpop.f32.mrb[0].mxu0
    %v220 = vpop.f32.mrb[0].mxu0
    %v221 = vadd.f32 0.0, %v220
    %v222 = vpop.f32.mrb[0].mxu0
    %223 = vmatprep.mubr.bf16.mxu0 0
    %224 = vmatmul.mubr.bf16.gmra.mrb[0].mxu0 %v165
    %v225 = vpop.f32.mrb[0].mxu0
    %v226 = vadd.f32 0.0, %v225
    %v227 = vpop.f32.mrb[0].mxu0
    %v228 = vpop.f32.mrb[0].mxu0
    %v229 = vadd.f32 0.0, %v228
    %v230 = vpop.f32.mrb[0].mxu0
    %231 = vdwg.mxu0
    %v232 = vld [vmem:[#allocation2] sm:$0xf]
    %v233 = vld [vmem:[#allocation2 + $0x4] sm:$0xf]
    %v234 = vld [vmem:[#allocation2 + $0x8] sm:$0xf]
    %v235 = vld [vmem:[#allocation2 + $0xc] sm:$0xf]
    %v236 = vld [vmem:[#allocation2 + $0x10] sm:$0xf]
    %v237 = vld [vmem:[#allocation2 + $0x14] sm:$0xf]
    %v238 = vld [vmem:[#allocation2 + $0x18] sm:$0xf]
    %v239 = vld [vmem:[#allocation2 + $0x1c] sm:$0xf]
    %v240 = vpack.c.bf16 %v205, %v202
    %v241 = vpack.c.bf16 %v213, %v210
    %v242 = vpack.c.bf16 %v221, %v218
    %v243 = vpack.c.bf16 %v229, %v226
    %v244 = vlaneseq
    %v245 = vshrl.u32 %v244, 7
    %v246 = vsub.s32 0, %v245
    %v247 = vrot.slane %v117, %v246
    %v256 = vunpack.c.l.b16 %v232
    %v257 = vunpack.c.l.b16 %v233
    %v258 = vunpack.c.l.b16 %v234
    %v259 = vunpack.c.l.b16 %v235
    %v260 = vunpack.c.l.b16 %v236
    %v261 = vunpack.c.l.b16 %v237
    %v262 = vunpack.c.l.b16 %v238
    %v263 = vunpack.c.l.b16 %v239
    %v264 = vpack.c.b16 %v257, %v256
    %v265 = vpack.c.b16 %v259, %v258
    %v266 = vpack.c.b16 %v261, %v260
    %v267 = vpack.c.b16 %v263, %v262
    %vm268 = vcmask 523264
    %v270 = vsel %vm268, %v264, 0
    %v273 = vsel %vm268, %v265, 0
    %v276 = vsel %vm268, %v266, 0
    %v279 = vsel %vm268, %v267, 0
    %281 = vmatprep.subr.bf16.mxu0 0
    %282 = vmatpush1.bf16.msra.mxu0 %v240
    %283 = vmatprep.subr.bf16.mxu0 0
    %284 = vmatpush1.bf16.msra.mxu0 %v241
    %285 = vmatprep.subr.bf16.mxu0 0
    %286 = vmatpush1.bf16.msra.mxu0 %v242
    %287 = vmatprep.subr.bf16.mxu0 0
    %288 = vmatpush1.bf16.msra.mxu0 %v243
    %289 = vmatprep.subr.bf16.mxu0 0
    %290 = vmatpush1.bf16.msra.mxu0 0
    %291 = vmatprep.subr.bf16.mxu0 0
    %292 = vmatpush1.bf16.msra.mxu0 0
    %293 = vmatprep.subr.bf16.mxu0 0
    %294 = vmatpush1.bf16.msra.mxu0 0
    %295 = vmatprep.subr.bf16.mxu0 0
    %296 = vmatpush1.bf16.msra.mxu0 0
    %297 = vmatprep.subr.bf16.mxu0 0
    %298 = vmatpush1.bf16.msra.mxu0 0
    %299 = vmatprep.subr.bf16.mxu0 0
    %300 = vmatpush1.bf16.msra.mxu0 0
    %301 = vmatprep.subr.bf16.mxu0 0
    %302 = vmatpush1.bf16.msra.mxu0 0
    %303 = vmatprep.subr.bf16.mxu0 0
    %304 = vmatpush1.bf16.msra.mxu0 0
    %305 = vmatprep.subr.bf16.mxu0 0
    %306 = vmatpush1.bf16.msra.mxu0 0
    %307 = vmatprep.subr.bf16.mxu0 0
    %308 = vmatpush1.bf16.msra.mxu0 0
    %309 = vmatprep.subr.bf16.mxu0 0
    %310 = vmatpush1.bf16.msra.mxu0 0
    %311 = vmatprep.subr.bf16.mxu0 0
    %312 = vmatpush1.bf16.msra.mxu0 0
    %313 = vmatprep.mubr.bf16.mxu0 0
    %314 = vmatmul.mubr.bf16.gmra.mrb[0].mxu0 %v270
    %v315 = vpop.f32.mrb[0].mxu0
    %v316 = vadd.f32 %v247, %v315
    %v317 = vpop.f32.mrb[0].mxu0
    %v318 = vpop.f32.mrb[0].mxu0
    %v319 = vadd.f32 %v247, %v318
    %v320 = vpop.f32.mrb[0].mxu0
    %321 = vmatprep.mubr.bf16.mxu0 0
    %322 = vmatmul.mubr.bf16.gmra.mrb[0].mxu0 %v273
    %v323 = vpop.f32.mrb[0].mxu0
    %v324 = vadd.f32 %v247, %v323
    %v325 = vpop.f32.mrb[0].mxu0
    %v326 = vpop.f32.mrb[0].mxu0
    %v327 = vadd.f32 %v247, %v326
    %v328 = vpop.f32.mrb[0].mxu0
    %329 = vmatprep.mubr.bf16.mxu0 0
    %330 = vmatmul.mubr.bf16.gmra.mrb[0].mxu0 %v276
    %v331 = vpop.f32.mrb[0].mxu0
    %v332 = vadd.f32 %v247, %v331
    %v333 = vpop.f32.mrb[0].mxu0
    %v334 = vpop.f32.mrb[0].mxu0
    %v335 = vadd.f32 %v247, %v334
    %v336 = vpop.f32.mrb[0].mxu0
    %337 = vmatprep.mubr.bf16.mxu0 0
    %338 = vmatmul.mubr.bf16.gmra.mrb[0].mxu0 %v279
    %v339 = vpop.f32.mrb[0].mxu0
    %v340 = vadd.f32 %v247, %v339
    %v341 = vpop.f32.mrb[0].mxu0
    %v342 = vpop.f32.mrb[0].mxu0
    %v343 = vadd.f32 %v247, %v342
    %v344 = vpop.f32.mrb[0].mxu0
    %345 = vdwg.mxu0
    %v346 = vmin.f32 %v316, 0.0
    %v347 = vmin.f32 %v319, 0.0
    %v348 = vmin.f32 %v324, 0.0
    %v349 = vmin.f32 %v327, 0.0
    %v350 = vmin.f32 %v332, 0.0
    %v351 = vmin.f32 %v335, 0.0
    %v352 = vmin.f32 %v340, 0.0
    %v353 = vmin.f32 %v343, 0.0
    %v354 = vmul.f32 %v346, 1.442695
    %v355 = vpow.pop %v354
    %v356 = vmul.f32 %v347, 1.442695
    %v357 = vpow.pop %v356
    %v358 = vmul.f32 %v348, 1.442695
    %v359 = vpow.pop %v358
    %v360 = vmul.f32 %v349, 1.442695
    %v361 = vpow.pop %v360
    %v362 = vmul.f32 %v350, 1.442695
    %v363 = vpow.pop %v362
    %v364 = vmul.f32 %v351, 1.442695
    %v365 = vpow.pop %v364
    %v366 = vmul.f32 %v352, 1.442695
    %v367 = vpow.pop %v366
    %v368 = vmul.f32 %v353, 1.442695
    %v369 = vpow.pop %v368
    %v370 = vsub.f32 %v355, 1.0
    %v371 = vsub.f32 %v357, 1.0
    %v372 = vsub.f32 %v359, 1.0
    %v373 = vsub.f32 %v361, 1.0
    %v374 = vsub.f32 %v363, 1.0
    %v375 = vsub.f32 %v365, 1.0
    %v376 = vsub.f32 %v367, 1.0
    %v377 = vsub.f32 %v369, 1.0
    %vm378 = vcmp.gt.f32.partialorder %v316, 0.0
    %vm379 = vcmp.gt.f32.partialorder %v319, 0.0
    %vm380 = vcmp.gt.f32.partialorder %v324, 0.0
    %vm381 = vcmp.gt.f32.partialorder %v327, 0.0
    %vm382 = vcmp.gt.f32.partialorder %v332, 0.0
    %vm383 = vcmp.gt.f32.partialorder %v335, 0.0
    %vm384 = vcmp.gt.f32.partialorder %v340, 0.0
    %vm385 = vcmp.gt.f32.partialorder %v343, 0.0
    %v386 = vsel %vm378, %v316, %v370
    %v387 = vsel %vm379, %v319, %v371
    %v388 = vsel %vm380, %v324, %v372
    %v389 = vsel %vm381, %v327, %v373
    %v390 = vsel %vm382, %v332, %v374
    %v391 = vsel %vm383, %v335, %v375
    %v392 = vsel %vm384, %v340, %v376
    %v393 = vsel %vm385, %v343, %v377
    %v394 = vpack.c.bf16 %v387, %v386
    %v395 = vpack.c.bf16 %v389, %v388
    %v396 = vpack.c.bf16 %v391, %v390
    %v397 = vpack.c.bf16 %v393, %v392
    %v398 = vlaneseq
    %v399 = vshrl.u32 %v398, 7
    %v400 = vsub.s32 3, %v399
    %v401 = vrot.slane %v117, %v400
    %v406 = vunpack.c.l.b16 %v113
    %v407 = vunpack.c.l.b16 %v114
    %v408 = vunpack.c.l.b16 %v115
    %v409 = vunpack.c.l.b16 %v116
    %v410 = vpack.c.b16 %v407, %v406
    %v411 = vpack.c.b16 %v409, %v408
    %v415 = vsel %vm154, %v394, 0
    %v418 = vsel %vm154, %v395, 0
    %v421 = vsel %vm154, %v396, 0
    %v424 = vsel %vm154, %v397, 0
    %426 = vmatprep.subr.bf16.mxu0 0
    %427 = vmatpush1.bf16.msra.mxu0 %v410
    %428 = vmatprep.subr.bf16.mxu0 0
    %429 = vmatpush1.bf16.msra.mxu0 %v411
    %430 = vmatprep.subr.bf16.mxu0 0
    %431 = vmatpush1.bf16.msra.mxu0 0
    %432 = vmatprep.subr.bf16.mxu0 0
    %433 = vmatpush1.bf16.msra.mxu0 0
    %434 = vmatprep.subr.bf16.mxu0 0
    %435 = vmatpush1.bf16.msra.mxu0 0
    %436 = vmatprep.subr.bf16.mxu0 0
    %437 = vmatpush1.bf16.msra.mxu0 0
    %438 = vmatprep.subr.bf16.mxu0 0
    %439 = vmatpush1.bf16.msra.mxu0 0
    %440 = vmatprep.subr.bf16.mxu0 0
    %441 = vmatpush1.bf16.msra.mxu0 0
    %442 = vmatprep.subr.bf16.mxu0 0
    %443 = vmatpush1.bf16.msra.mxu0 0
    %444 = vmatprep.subr.bf16.mxu0 0
    %445 = vmatpush1.bf16.msra.mxu0 0
    %446 = vmatprep.subr.bf16.mxu0 0
    %447 = vmatpush1.bf16.msra.mxu0 0
    %448 = vmatprep.subr.bf16.mxu0 0
    %449 = vmatpush1.bf16.msra.mxu0 0
    %450 = vmatprep.subr.bf16.mxu0 0
    %451 = vmatpush1.bf16.msra.mxu0 0
    %452 = vmatprep.subr.bf16.mxu0 0
    %453 = vmatpush1.bf16.msra.mxu0 0
    %454 = vmatprep.subr.bf16.mxu0 0
    %455 = vmatpush1.bf16.msra.mxu0 0
    %456 = vmatprep.subr.bf16.mxu0 0
    %457 = vmatpush1.bf16.msra.mxu0 0
    %458 = vmatprep.mubr.bf16.mxu0 0
    %459 = vmatmul.mubr.bf16.gmra.mrb[0].mxu0 %v415
    %v460 = vpop.f32.mrb[0].mxu0
    %v461 = vadd.f32 %v401, %v460
    %v462 = vpop.f32.mrb[0].mxu0
    %v463 = vpop.f32.mrb[0].mxu0
    %v464 = vadd.f32 %v401, %v463
    %v465 = vpop.f32.mrb[0].mxu0
    %466 = vmatprep.mubr.bf16.mxu0 0
    %467 = vmatmul.mubr.bf16.gmra.mrb[0].mxu0 %v418
    %v468 = vpop.f32.mrb[0].mxu0
    %v469 = vadd.f32 %v401, %v468
    %v470 = vpop.f32.mrb[0].mxu0
    %v471 = vpop.f32.mrb[0].mxu0
    %v472 = vadd.f32 %v401, %v471
    %v473 = vpop.f32.mrb[0].mxu0
    %474 = vmatprep.mubr.bf16.mxu0 0
    %475 = vmatmul.mubr.bf16.gmra.mrb[0].mxu0 %v421
    %v476 = vpop.f32.mrb[0].mxu0
    %v477 = vadd.f32 %v401, %v476
    %v478 = vpop.f32.mrb[0].mxu0
    %v479 = vpop.f32.mrb[0].mxu0
    %v480 = vadd.f32 %v401, %v479
    %v481 = vpop.f32.mrb[0].mxu0
    %482 = vmatprep.mubr.bf16.mxu0 0
    %483 = vmatmul.mubr.bf16.gmra.mrb[0].mxu0 %v424
    %v484 = vpop.f32.mrb[0].mxu0
    %v485 = vadd.f32 %v401, %v484
    %v486 = vpop.f32.mrb[0].mxu0
    %v487 = vpop.f32.mrb[0].mxu0
    %v488 = vadd.f32 %v401, %v487
    %v489 = vpop.f32.mrb[0].mxu0
    %490 = vdwg.mxu0
    %v491 = vtanh.pop %v461
    %v492 = vtanh.pop %v464
    %v493 = vtanh.pop %v469
    %v494 = vtanh.pop %v472
    %v495 = vtanh.pop %v477
    %v496 = vtanh.pop %v480
    %v497 = vtanh.pop %v485
    %v498 = vtanh.pop %v488
    %v499 = vsel %vm154, %v491, 0.0
    %v500 = vsel %vm154, %v492, 0.0
    %v501 = vadd.f32 %v499, %v500
    %v502 = vsel %vm154, %v493, 0.0
    %v503 = vadd.f32 %v501, %v502
    %v504 = vsel %vm154, %v494, 0.0
    %v505 = vadd.f32 %v503, %v504
    %v506 = vsel %vm154, %v495, 0.0
    %v507 = vadd.f32 %v505, %v506
    %v508 = vsel %vm154, %v496, 0.0
    %v509 = vadd.f32 %v507, %v508
    %v510 = vsel %vm154, %v497, 0.0
    %v511 = vadd.f32 %v509, %v510
    %v512 = vsel %vm154, %v498, 0.0
    %v513 = vadd.f32 %v511, %v512
    %v514 = vrot.slane %v513, 4
    %v515 = vadd.f32 %v513, %v514
    %v516 = vrot.slane %v515, 2
    %v517 = vadd.f32 %v515, %v516
    %v518 = vrot.slane %v517, 1
    %v519 = vadd.f32 %v517, %v518
    %v520 = vmul.f32 %v519, 0.015625
    %s521 = scalar_lea.vmem [#allocation5], 16
    %v522 = vld [vmem:[%s521] sm:$0xf]
    %v523 = vld [vmem:[%s521 + $0x4] sm:$0xf]
    %v524 = vld [vmem:[%s521 + $0x8] sm:$0xf]
    %v525 = vld [vmem:[%s521 + $0xc] sm:$0xf]
    %v530 = vunpack.c.l.b16 %v522
    %v531 = vunpack.c.l.b16 %v523
    %v532 = vunpack.c.l.b16 %v524
    %v533 = vunpack.c.l.b16 %v525
    %v534 = vpack.c.b16 %v531, %v530
    %v535 = vpack.c.b16 %v533, %v532
    %538 = vmatprep.subr.bf16.mxu0 0
    %539 = vmatpush1.bf16.msra.mxu0 %v534
    %540 = vmatprep.subr.bf16.mxu0 0
    %541 = vmatpush1.bf16.msra.mxu0 %v535
    %542 = vmatprep.subr.bf16.mxu0 0
    %543 = vmatpush1.bf16.msra.mxu0 0
    %544 = vmatprep.subr.bf16.mxu0 0
    %545 = vmatpush1.bf16.msra.mxu0 0
    %546 = vmatprep.subr.bf16.mxu0 0
    %547 = vmatpush1.bf16.msra.mxu0 0
    %548 = vmatprep.subr.bf16.mxu0 0
    %549 = vmatpush1.bf16.msra.mxu0 0
    %550 = vmatprep.subr.bf16.mxu0 0
    %551 = vmatpush1.bf16.msra.mxu0 0
    %552 = vmatprep.subr.bf16.mxu0 0
    %553 = vmatpush1.bf16.msra.mxu0 0
    %554 = vmatprep.subr.bf16.mxu0 0
    %555 = vmatpush1.bf16.msra.mxu0 0
    %556 = vmatprep.subr.bf16.mxu0 0
    %557 = vmatpush1.bf16.msra.mxu0 0
    %558 = vmatprep.subr.bf16.mxu0 0
    %559 = vmatpush1.bf16.msra.mxu0 0
    %560 = vmatprep.subr.bf16.mxu0 0
    %561 = vmatpush1.bf16.msra.mxu0 0
    %562 = vmatprep.subr.bf16.mxu0 0
    %563 = vmatpush1.bf16.msra.mxu0 0
    %564 = vmatprep.subr.bf16.mxu0 0
    %565 = vmatpush1.bf16.msra.mxu0 0
    %566 = vmatprep.subr.bf16.mxu0 0
    %567 = vmatpush1.bf16.msra.mxu0 0
    %568 = vmatprep.subr.bf16.mxu0 0
    %569 = vmatpush1.bf16.msra.mxu0 0
    %570 = vmatprep.mubr.bf16.mxu0 0
    %571 = vmatmul.mubr.bf16.gmra.mrb[0].mxu0 %v156
    %v572 = vpop.f32.mrb[0].mxu0
    %v573 = vadd.f32 0.0, %v572
    %v574 = vpop.f32.mrb[0].mxu0
    %v575 = vpop.f32.mrb[0].mxu0
    %v576 = vadd.f32 0.0, %v575
    %v577 = vpop.f32.mrb[0].mxu0
    %578 = vmatprep.mubr.bf16.mxu0 0
    %579 = vmatmul.mubr.bf16.gmra.mrb[0].mxu0 %v159
    %v580 = vpop.f32.mrb[0].mxu0
    %v581 = vadd.f32 0.0, %v580
    %v582 = vpop.f32.mrb[0].mxu0
    %v583 = vpop.f32.mrb[0].mxu0
    %v584 = vadd.f32 0.0, %v583
    %v585 = vpop.f32.mrb[0].mxu0
    %586 = vmatprep.mubr.bf16.mxu0 0
    %587 = vmatmul.mubr.bf16.gmra.mrb[0].mxu0 %v162
    %v588 = vpop.f32.mrb[0].mxu0
    %v589 = vadd.f32 0.0, %v588
    %v590 = vpop.f32.mrb[0].mxu0
    %v591 = vpop.f32.mrb[0].mxu0
    %v592 = vadd.f32 0.0, %v591
    %v593 = vpop.f32.mrb[0].mxu0
    %594 = vmatprep.mubr.bf16.mxu0 0
    %595 = vmatmul.mubr.bf16.gmra.mrb[0].mxu0 %v165
    %v596 = vpop.f32.mrb[0].mxu0
    %v597 = vadd.f32 0.0, %v596
    %v598 = vpop.f32.mrb[0].mxu0
    %v599 = vpop.f32.mrb[0].mxu0
    %v600 = vadd.f32 0.0, %v599
    %v601 = vpop.f32.mrb[0].mxu0
    %602 = vdwg.mxu0
    %s603 = scalar_lea.vmem [#allocation2], 32
    %v604 = vld [vmem:[%s603] sm:$0xf]
    %v605 = vld [vmem:[%s603 + $0x4] sm:$0xf]
    %v606 = vld [vmem:[%s603 + $0x8] sm:$0xf]
    %v607 = vld [vmem:[%s603 + $0xc] sm:$0xf]
    %v608 = vld [vmem:[%s603 + $0x10] sm:$0xf]
    %v609 = vld [vmem:[%s603 + $0x14] sm:$0xf]
    %v610 = vld [vmem:[%s603 + $0x18] sm:$0xf]
    %v611 = vld [vmem:[%s603 + $0x1c] sm:$0xf]
    %v612 = vpack.c.bf16 %v576, %v573
    %v613 = vpack.c.bf16 %v584, %v581
    %v614 = vpack.c.bf16 %v592, %v589
    %v615 = vpack.c.bf16 %v600, %v597
    %v616 = vlaneseq
    %v617 = vshrl.u32 %v616, 7
    %v618 = vsub.s32 1, %v617
    %v619 = vrot.slane %v117, %v618
    %v628 = vunpack.c.l.b16 %v604
    %v629 = vunpack.c.l.b16 %v605
    %v630 = vunpack.c.l.b16 %v606
    %v631 = vunpack.c.l.b16 %v607
    %v632 = vunpack.c.l.b16 %v608
    %v633 = vunpack.c.l.b16 %v609
    %v634 = vunpack.c.l.b16 %v610
    %v635 = vunpack.c.l.b16 %v611
    %v636 = vpack.c.b16 %v629, %v628
    %v637 = vpack.c.b16 %v631, %v630
    %v638 = vpack.c.b16 %v633, %v632
    %v639 = vpack.c.b16 %v635, %v634
    %v641 = vsel %vm268, %v636, 0
    %v644 = vsel %vm268, %v637, 0
    %v647 = vsel %vm268, %v638, 0
    %v650 = vsel %vm268, %v639, 0
    %652 = vmatprep.subr.bf16.mxu0 0
    %653 = vmatpush1.bf16.msra.mxu0 %v612
    %654 = vmatprep.subr.bf16.mxu0 0
    %655 = vmatpush1.bf16.msra.mxu0 %v613
    %656 = vmatprep.subr.bf16.mxu0 0
    %657 = vmatpush1.bf16.msra.mxu0 %v614
    %658 = vmatprep.subr.bf16.mxu0 0
    %659 = vmatpush1.bf16.msra.mxu0 %v615
    %660 = vmatprep.subr.bf16.mxu0 0
    %661 = vmatpush1.bf16.msra.mxu0 0
    %662 = vmatprep.subr.bf16.mxu0 0
    %663 = vmatpush1.bf16.msra.mxu0 0
    %664 = vmatprep.subr.bf16.mxu0 0
    %665 = vmatpush1.bf16.msra.mxu0 0
    %666 = vmatprep.subr.bf16.mxu0 0
    %667 = vmatpush1.bf16.msra.mxu0 0
    %668 = vmatprep.subr.bf16.mxu0 0
    %669 = vmatpush1.bf16.msra.mxu0 0
    %670 = vmatprep.subr.bf16.mxu0 0
    %671 = vmatpush1.bf16.msra.mxu0 0
    %672 = vmatprep.subr.bf16.mxu0 0
    %673 = vmatpush1.bf16.msra.mxu0 0
    %674 = vmatprep.subr.bf16.mxu0 0
    %675 = vmatpush1.bf16.msra.mxu0 0
    %676 = vmatprep.subr.bf16.mxu0 0
    %677 = vmatpush1.bf16.msra.mxu0 0
    %678 = vmatprep.subr.bf16.mxu0 0
    %679 = vmatpush1.bf16.msra.mxu0 0
    %680 = vmatprep.subr.bf16.mxu0 0
    %681 = vmatpush1.bf16.msra.mxu0 0
    %682 = vmatprep.subr.bf16.mxu0 0
    %683 = vmatpush1.bf16.msra.mxu0 0
    %684 = vmatprep.mubr.bf16.mxu0 0
    %685 = vmatmul.mubr.bf16.gmra.mrb[0].mxu0 %v641
    %v686 = vpop.f32.mrb[0].mxu0
    %v687 = vadd.f32 %v619, %v686
    %v688 = vpop.f32.mrb[0].mxu0
    %v689 = vpop.f32.mrb[0].mxu0
    %v690 = vadd.f32 %v619, %v689
    %v691 = vpop.f32.mrb[0].mxu0
    %692 = vmatprep.mubr.bf16.mxu0 0
    %693 = vmatmul.mubr.bf16.gmra.mrb[0].mxu0 %v644
    %v694 = vpop.f32.mrb[0].mxu0
    %v695 = vadd.f32 %v619, %v694
    %v696 = vpop.f32.mrb[0].mxu0
    %v697 = vpop.f32.mrb[0].mxu0
    %v698 = vadd.f32 %v619, %v697
    %v699 = vpop.f32.mrb[0].mxu0
    %700 = vmatprep.mubr.bf16.mxu0 0
    %701 = vmatmul.mubr.bf16.gmra.mrb[0].mxu0 %v647
    %v702 = vpop.f32.mrb[0].mxu0
    %v703 = vadd.f32 %v619, %v702
    %v704 = vpop.f32.mrb[0].mxu0
    %v705 = vpop.f32.mrb[0].mxu0
    %v706 = vadd.f32 %v619, %v705
    %v707 = vpop.f32.mrb[0].mxu0
    %708 = vmatprep.mubr.bf16.mxu0 0
    %709 = vmatmul.mubr.bf16.gmra.mrb[0].mxu0 %v650
    %v710 = vpop.f32.mrb[0].mxu0
    %v711 = vadd.f32 %v619, %v710
    %v712 = vpop.f32.mrb[0].mxu0
    %v713 = vpop.f32.mrb[0].mxu0
    %v714 = vadd.f32 %v619, %v713
    %v715 = vpop.f32.mrb[0].mxu0
    %716 = vdwg.mxu0
    %v717 = vmin.f32 %v687, 0.0
    %v718 = vmin.f32 %v690, 0.0
    %v719 = vmin.f32 %v695, 0.0
    %v720 = vmin.f32 %v698, 0.0
    %v721 = vmin.f32 %v703, 0.0
    %v722 = vmin.f32 %v706, 0.0
    %v723 = vmin.f32 %v711, 0.0
    %v724 = vmin.f32 %v714, 0.0
    %v725 = vmul.f32 %v717, 1.442695
    %v726 = vpow.pop %v725
    %v727 = vmul.f32 %v718, 1.442695
    %v728 = vpow.pop %v727
    %v729 = vmul.f32 %v719, 1.442695
    %v730 = vpow.pop %v729
    %v731 = vmul.f32 %v720, 1.442695
    %v732 = vpow.pop %v731
    %v733 = vmul.f32 %v721, 1.442695
    %v734 = vpow.pop %v733
    %v735 = vmul.f32 %v722, 1.442695
    %v736 = vpow.pop %v735
    %v737 = vmul.f32 %v723, 1.442695
    %v738 = vpow.pop %v737
    %v739 = vmul.f32 %v724, 1.442695
    %v740 = vpow.pop %v739
    %v741 = vsub.f32 %v726, 1.0
    %v742 = vsub.f32 %v728, 1.0
    %v743 = vsub.f32 %v730, 1.0
    %v744 = vsub.f32 %v732, 1.0
    %v745 = vsub.f32 %v734, 1.0
    %v746 = vsub.f32 %v736, 1.0
    %v747 = vsub.f32 %v738, 1.0
    %v748 = vsub.f32 %v740, 1.0
    %vm749 = vcmp.gt.f32.partialorder %v687, 0.0
    %vm750 = vcmp.gt.f32.partialorder %v690, 0.0
    %vm751 = vcmp.gt.f32.partialorder %v695, 0.0
    %vm752 = vcmp.gt.f32.partialorder %v698, 0.0
    %vm753 = vcmp.gt.f32.partialorder %v703, 0.0
    %vm754 = vcmp.gt.f32.partialorder %v706, 0.0
    %vm755 = vcmp.gt.f32.partialorder %v711, 0.0
    %vm756 = vcmp.gt.f32.partialorder %v714, 0.0
    %v757 = vsel %vm749, %v687, %v741
    %v758 = vsel %vm750, %v690, %v742
    %v759 = vsel %vm751, %v695, %v743
    %v760 = vsel %vm752, %v698, %v744
    %v761 = vsel %vm753, %v703, %v745
    %v762 = vsel %vm754, %v706, %v746
    %v763 = vsel %vm755, %v711, %v747
    %v764 = vsel %vm756, %v714, %v748
    %v765 = vpack.c.bf16 %v758, %v757
    %v766 = vpack.c.bf16 %v760, %v759
    %v767 = vpack.c.bf16 %v762, %v761
    %v768 = vpack.c.bf16 %v764, %v763
    %v770 = vsel %vm154, %v765, 0
    %v773 = vsel %vm154, %v766, 0
    %v776 = vsel %vm154, %v767, 0
    %v779 = vsel %vm154, %v768, 0
    %781 = vmatprep.subr.bf16.mxu0 0
    %782 = vmatpush1.bf16.msra.mxu0 %v410
    %783 = vmatprep.subr.bf16.mxu0 0
    %784 = vmatpush1.bf16.msra.mxu0 %v411
    %785 = vmatprep.subr.bf16.mxu0 0
    %786 = vmatpush1.bf16.msra.mxu0 0
    %787 = vmatprep.subr.bf16.mxu0 0
    %788 = vmatpush1.bf16.msra.mxu0 0
    %789 = vmatprep.subr.bf16.mxu0 0
    %790 = vmatpush1.bf16.msra.mxu0 0
    %791 = vmatprep.subr.bf16.mxu0 0
    %792 = vmatpush1.bf16.msra.mxu0 0
    %793 = vmatprep.subr.bf16.mxu0 0
    %794 = vmatpush1.bf16.msra.mxu0 0
    %795 = vmatprep.subr.bf16.mxu0 0
    %796 = vmatpush1.bf16.msra.mxu0 0
    %797 = vmatprep.subr.bf16.mxu0 0
    %798 = vmatpush1.bf16.msra.mxu0 0
    %799 = vmatprep.subr.bf16.mxu0 0
    %800 = vmatpush1.bf16.msra.mxu0 0
    %801 = vmatprep.subr.bf16.mxu0 0
    %802 = vmatpush1.bf16.msra.mxu0 0
    %803 = vmatprep.subr.bf16.mxu0 0
    %804 = vmatpush1.bf16.msra.mxu0 0
    %805 = vmatprep.subr.bf16.mxu0 0
    %806 = vmatpush1.bf16.msra.mxu0 0
    %807 = vmatprep.subr.bf16.mxu0 0
    %808 = vmatpush1.bf16.msra.mxu0 0
    %809 = vmatprep.subr.bf16.mxu0 0
    %810 = vmatpush1.bf16.msra.mxu0 0
    %811 = vmatprep.subr.bf16.mxu0 0
    %812 = vmatpush1.bf16.msra.mxu0 0
    %813 = vmatprep.mubr.bf16.mxu0 0
    %814 = vmatmul.mubr.bf16.gmra.mrb[0].mxu0 %v770
    %v815 = vpop.f32.mrb[0].mxu0
    %v816 = vadd.f32 %v401, %v815
    %v817 = vpop.f32.mrb[0].mxu0
    %v818 = vpop.f32.mrb[0].mxu0
    %v819 = vadd.f32 %v401, %v818
    %v820 = vpop.f32.mrb[0].mxu0
    %821 = vmatprep.mubr.bf16.mxu0 0
    %822 = vmatmul.mubr.bf16.gmra.mrb[0].mxu0 %v773
    %v823 = vpop.f32.mrb[0].mxu0
    %v824 = vadd.f32 %v401, %v823
    %v825 = vpop.f32.mrb[0].mxu0
    %v826 = vpop.f32.mrb[0].mxu0
    %v827 = vadd.f32 %v401, %v826
    %v828 = vpop.f32.mrb[0].mxu0
    %829 = vmatprep.mubr.bf16.mxu0 0
    %830 = vmatmul.mubr.bf16.gmra.mrb[0].mxu0 %v776
    %v831 = vpop.f32.mrb[0].mxu0
    %v832 = vadd.f32 %v401, %v831
    %v833 = vpop.f32.mrb[0].mxu0
    %v834 = vpop.f32.mrb[0].mxu0
    %v835 = vadd.f32 %v401, %v834
    %v836 = vpop.f32.mrb[0].mxu0
    %837 = vmatprep.mubr.bf16.mxu0 0
    %838 = vmatmul.mubr.bf16.gmra.mrb[0].mxu0 %v779
    %v839 = vpop.f32.mrb[0].mxu0
    %v840 = vadd.f32 %v401, %v839
    %v841 = vpop.f32.mrb[0].mxu0
    %v842 = vpop.f32.mrb[0].mxu0
    %v843 = vadd.f32 %v401, %v842
    %v844 = vpop.f32.mrb[0].mxu0
    %845 = vdwg.mxu0
    %v846 = vtanh.pop %v816
    %v847 = vtanh.pop %v819
    %v848 = vtanh.pop %v824
    %v849 = vtanh.pop %v827
    %v850 = vtanh.pop %v832
    %v851 = vtanh.pop %v835
    %v852 = vtanh.pop %v840
    %v853 = vtanh.pop %v843
    %v854 = vsel %vm154, %v846, 0.0
    %v855 = vsel %vm154, %v847, 0.0
    %v856 = vadd.f32 %v854, %v855
    %v857 = vsel %vm154, %v848, 0.0
    %v858 = vadd.f32 %v856, %v857
    %v859 = vsel %vm154, %v849, 0.0
    %v860 = vadd.f32 %v858, %v859
    %v861 = vsel %vm154, %v850, 0.0
    %v862 = vadd.f32 %v860, %v861
    %v863 = vsel %vm154, %v851, 0.0
    %v864 = vadd.f32 %v862, %v863
    %v865 = vsel %vm154, %v852, 0.0
    %v866 = vadd.f32 %v864, %v865
    %v867 = vsel %vm154, %v853, 0.0
    %v868 = vadd.f32 %v866, %v867
    %v869 = vrot.slane %v868, 4
    %v870 = vadd.f32 %v868, %v869
    %v871 = vrot.slane %v870, 2
    %v872 = vadd.f32 %v870, %v871
    %v873 = vrot.slane %v872, 1
    %v874 = vadd.f32 %v872, %v873
    %v875 = vmul.f32 %v874, 0.015625
    %s876 = scalar_lea.vmem [#allocation5], 32
    %v877 = vld [vmem:[%s876] sm:$0xf]
    %v878 = vld [vmem:[%s876 + $0x4] sm:$0xf]
    %v879 = vld [vmem:[%s876 + $0x8] sm:$0xf]
    %v880 = vld [vmem:[%s876 + $0xc] sm:$0xf]
    %v885 = vunpack.c.l.b16 %v877
    %v886 = vunpack.c.l.b16 %v878
    %v887 = vunpack.c.l.b16 %v879
    %v888 = vunpack.c.l.b16 %v880
    %v889 = vpack.c.b16 %v886, %v885
    %v890 = vpack.c.b16 %v888, %v887
    %893 = vmatprep.subr.bf16.mxu0 0
    %894 = vmatpush1.bf16.msra.mxu0 %v889
    %895 = vmatprep.subr.bf16.mxu0 0
    %896 = vmatpush1.bf16.msra.mxu0 %v890
    %897 = vmatprep.subr.bf16.mxu0 0
    %898 = vmatpush1.bf16.msra.mxu0 0
    %899 = vmatprep.subr.bf16.mxu0 0
    %900 = vmatpush1.bf16.msra.mxu0 0
    %901 = vmatprep.subr.bf16.mxu0 0
    %902 = vmatpush1.bf16.msra.mxu0 0
    %903 = vmatprep.subr.bf16.mxu0 0
    %904 = vmatpush1.bf16.msra.mxu0 0
    %905 = vmatprep.subr.bf16.mxu0 0
    %906 = vmatpush1.bf16.msra.mxu0 0
    %907 = vmatprep.subr.bf16.mxu0 0
    %908 = vmatpush1.bf16.msra.mxu0 0
    %909 = vmatprep.subr.bf16.mxu0 0
    %910 = vmatpush1.bf16.msra.mxu0 0
    %911 = vmatprep.subr.bf16.mxu0 0
    %912 = vmatpush1.bf16.msra.mxu0 0
    %913 = vmatprep.subr.bf16.mxu0 0
    %914 = vmatpush1.bf16.msra.mxu0 0
    %915 = vmatprep.subr.bf16.mxu0 0
    %916 = vmatpush1.bf16.msra.mxu0 0
    %917 = vmatprep.subr.bf16.mxu0 0
    %918 = vmatpush1.bf16.msra.mxu0 0
    %919 = vmatprep.subr.bf16.mxu0 0
    %920 = vmatpush1.bf16.msra.mxu0 0
    %921 = vmatprep.subr.bf16.mxu0 0
    %922 = vmatpush1.bf16.msra.mxu0 0
    %923 = vmatprep.subr.bf16.mxu0 0
    %924 = vmatpush1.bf16.msra.mxu0 0
    %925 = vmatprep.mubr.bf16.mxu0 0
    %926 = vmatmul.mubr.bf16.gmra.mrb[0].mxu0 %v156
    %v927 = vpop.f32.mrb[0].mxu0
    %v928 = vadd.f32 0.0, %v927
    %v929 = vpop.f32.mrb[0].mxu0
    %v930 = vpop.f32.mrb[0].mxu0
    %v931 = vadd.f32 0.0, %v930
    %v932 = vpop.f32.mrb[0].mxu0
    %933 = vmatprep.mubr.bf16.mxu0 0
    %934 = vmatmul.mubr.bf16.gmra.mrb[0].mxu0 %v159
    %v935 = vpop.f32.mrb[0].mxu0
    %v936 = vadd.f32 0.0, %v935
    %v937 = vpop.f32.mrb[0].mxu0
    %v938 = vpop.f32.mrb[0].mxu0
    %v939 = vadd.f32 0.0, %v938
    %v940 = vpop.f32.mrb[0].mxu0
    %941 = vmatprep.mubr.bf16.mxu0 0
    %942 = vmatmul.mubr.bf16.gmra.mrb[0].mxu0 %v162
    %v943 = vpop.f32.mrb[0].mxu0
    %v944 = vadd.f32 0.0, %v943
    %v945 = vpop.f32.mrb[0].mxu0
    %v946 = vpop.f32.mrb[0].mxu0
    %v947 = vadd.f32 0.0, %v946
    %v948 = vpop.f32.mrb[0].mxu0
    %949 = vmatprep.mubr.bf16.mxu0 0
    %950 = vmatmul.mubr.bf16.gmra.mrb[0].mxu0 %v165
    %v951 = vpop.f32.mrb[0].mxu0
    %v952 = vadd.f32 0.0, %v951
    %v953 = vpop.f32.mrb[0].mxu0
    %v954 = vpop.f32.mrb[0].mxu0
    %v955 = vadd.f32 0.0, %v954
    %v956 = vpop.f32.mrb[0].mxu0
    %957 = vdwg.mxu0
    %s958 = scalar_lea.vmem [#allocation2], 64
    %v959 = vld [vmem:[%s958] sm:$0xf]
    %v960 = vld [vmem:[%s958 + $0x4] sm:$0xf]
    %v961 = vld [vmem:[%s958 + $0x8] sm:$0xf]
    %v962 = vld [vmem:[%s958 + $0xc] sm:$0xf]
    %v963 = vld [vmem:[%s958 + $0x10] sm:$0xf]
    %v964 = vld [vmem:[%s958 + $0x14] sm:$0xf]
    %v965 = vld [vmem:[%s958 + $0x18] sm:$0xf]
    %v966 = vld [vmem:[%s958 + $0x1c] sm:$0xf]
    %v967 = vpack.c.bf16 %v931, %v928
    %v968 = vpack.c.bf16 %v939, %v936
    %v969 = vpack.c.bf16 %v947, %v944
    %v970 = vpack.c.bf16 %v955, %v952
    %v971 = vlaneseq
    %v972 = vshrl.u32 %v971, 7
    %v973 = vsub.s32 2, %v972
    %v974 = vrot.slane %v117, %v973
    %v983 = vunpack.c.l.b16 %v959
    %v984 = vunpack.c.l.b16 %v960
    %v985 = vunpack.c.l.b16 %v961
    %v986 = vunpack.c.l.b16 %v962
    %v987 = vunpack.c.l.b16 %v963
    %v988 = vunpack.c.l.b16 %v964
    %v989 = vunpack.c.l.b16 %v965
    %v990 = vunpack.c.l.b16 %v966
    %v991 = vpack.c.b16 %v984, %v983
    %v992 = vpack.c.b16 %v986, %v985
    %v993 = vpack.c.b16 %v988, %v987
    %v994 = vpack.c.b16 %v990, %v989
    %v996 = vsel %vm268, %v991, 0
    %v999 = vsel %vm268, %v992, 0
    %v1002 = vsel %vm268, %v993, 0
    %v1005 = vsel %vm268, %v994, 0
    %1007 = vmatprep.subr.bf16.mxu0 0
    %1008 = vmatpush1.bf16.msra.mxu0 %v967
    %1009 = vmatprep.subr.bf16.mxu0 0
    %1010 = vmatpush1.bf16.msra.mxu0 %v968
    %1011 = vmatprep.subr.bf16.mxu0 0
    %1012 = vmatpush1.bf16.msra.mxu0 %v969
    %1013 = vmatprep.subr.bf16.mxu0 0
    %1014 = vmatpush1.bf16.msra.mxu0 %v970
    %1015 = vmatprep.subr.bf16.mxu0 0
    %1016 = vmatpush1.bf16.msra.mxu0 0
    %1017 = vmatprep.subr.bf16.mxu0 0
    %1018 = vmatpush1.bf16.msra.mxu0 0
    %1019 = vmatprep.subr.bf16.mxu0 0
    %1020 = vmatpush1.bf16.msra.mxu0 0
    %1021 = vmatprep.subr.bf16.mxu0 0
    %1022 = vmatpush1.bf16.msra.mxu0 0
    %1023 = vmatprep.subr.bf16.mxu0 0
    %1024 = vmatpush1.bf16.msra.mxu0 0
    %1025 = vmatprep.subr.bf16.mxu0 0
    %1026 = vmatpush1.bf16.msra.mxu0 0
    %1027 = vmatprep.subr.bf16.mxu0 0
    %1028 = vmatpush1.bf16.msra.mxu0 0
    %1029 = vmatprep.subr.bf16.mxu0 0
    %1030 = vmatpush1.bf16.msra.mxu0 0
    %1031 = vmatprep.subr.bf16.mxu0 0
    %1032 = vmatpush1.bf16.msra.mxu0 0
    %1033 = vmatprep.subr.bf16.mxu0 0
    %1034 = vmatpush1.bf16.msra.mxu0 0
    %1035 = vmatprep.subr.bf16.mxu0 0
    %1036 = vmatpush1.bf16.msra.mxu0 0
    %1037 = vmatprep.subr.bf16.mxu0 0
    %1038 = vmatpush1.bf16.msra.mxu0 0
    %1039 = vmatprep.mubr.bf16.mxu0 0
    %1040 = vmatmul.mubr.bf16.gmra.mrb[0].mxu0 %v996
    %v1041 = vpop.f32.mrb[0].mxu0
    %v1042 = vadd.f32 %v974, %v1041
    %v1043 = vpop.f32.mrb[0].mxu0
    %v1044 = vpop.f32.mrb[0].mxu0
    %v1045 = vadd.f32 %v974, %v1044
    %v1046 = vpop.f32.mrb[0].mxu0
    %1047 = vmatprep.mubr.bf16.mxu0 0
    %1048 = vmatmul.mubr.bf16.gmra.mrb[0].mxu0 %v999
    %v1049 = vpop.f32.mrb[0].mxu0
    %v1050 = vadd.f32 %v974, %v1049
    %v1051 = vpop.f32.mrb[0].mxu0
    %v1052 = vpop.f32.mrb[0].mxu0
    %v1053 = vadd.f32 %v974, %v1052
    %v1054 = vpop.f32.mrb[0].mxu0
    %1055 = vmatprep.mubr.bf16.mxu0 0
    %1056 = vmatmul.mubr.bf16.gmra.mrb[0].mxu0 %v1002
    %v1057 = vpop.f32.mrb[0].mxu0
    %v1058 = vadd.f32 %v974, %v1057
    %v1059 = vpop.f32.mrb[0].mxu0
    %v1060 = vpop.f32.mrb[0].mxu0
    %v1061 = vadd.f32 %v974, %v1060
    %v1062 = vpop.f32.mrb[0].mxu0
    %1063 = vmatprep.mubr.bf16.mxu0 0
    %1064 = vmatmul.mubr.bf16.gmra.mrb[0].mxu0 %v1005
    %v1065 = vpop.f32.mrb[0].mxu0
    %v1066 = vadd.f32 %v974, %v1065
    %v1067 = vpop.f32.mrb[0].mxu0
    %v1068 = vpop.f32.mrb[0].mxu0
    %v1069 = vadd.f32 %v974, %v1068
    %v1070 = vpop.f32.mrb[0].mxu0
    %1071 = vdwg.mxu0
    %v1072 = vmin.f32 %v1042, 0.0
    %v1073 = vmin.f32 %v1045, 0.0
    %v1074 = vmin.f32 %v1050, 0.0
    %v1075 = vmin.f32 %v1053, 0.0
    %v1076 = vmin.f32 %v1058, 0.0
    %v1077 = vmin.f32 %v1061, 0.0
    %v1078 = vmin.f32 %v1066, 0.0
    %v1079 = vmin.f32 %v1069, 0.0
    %v1080 = vmul.f32 %v1072, 1.442695
    %v1081 = vpow.pop %v1080
    %v1082 = vmul.f32 %v1073, 1.442695
    %v1083 = vpow.pop %v1082
    %v1084 = vmul.f32 %v1074, 1.442695
    %v1085 = vpow.pop %v1084
    %v1086 = vmul.f32 %v1075, 1.442695
    %v1087 = vpow.pop %v1086
    %v1088 = vmul.f32 %v1076, 1.442695
    %v1089 = vpow.pop %v1088
    %v1090 = vmul.f32 %v1077, 1.442695
    %v1091 = vpow.pop %v1090
    %v1092 = vmul.f32 %v1078, 1.442695
    %v1093 = vpow.pop %v1092
    %v1094 = vmul.f32 %v1079, 1.442695
    %v1095 = vpow.pop %v1094
    %v1096 = vsub.f32 %v1081, 1.0
    %v1097 = vsub.f32 %v1083, 1.0
    %v1098 = vsub.f32 %v1085, 1.0
    %v1099 = vsub.f32 %v1087, 1.0
    %v1100 = vsub.f32 %v1089, 1.0
    %v1101 = vsub.f32 %v1091, 1.0
    %v1102 = vsub.f32 %v1093, 1.0
    %v1103 = vsub.f32 %v1095, 1.0
    %vm1104 = vcmp.gt.f32.partialorder %v1042, 0.0
    %vm1105 = vcmp.gt.f32.partialorder %v1045, 0.0
    %vm1106 = vcmp.gt.f32.partialorder %v1050, 0.0
    %vm1107 = vcmp.gt.f32.partialorder %v1053, 0.0
    %vm1108 = vcmp.gt.f32.partialorder %v1058, 0.0
    %vm1109 = vcmp.gt.f32.partialorder %v1061, 0.0
    %vm1110 = vcmp.gt.f32.partialorder %v1066, 0.0
    %vm1111 = vcmp.gt.f32.partialorder %v1069, 0.0
    %v1112 = vsel %vm1104, %v1042, %v1096
    %v1113 = vsel %vm1105, %v1045, %v1097
    %v1114 = vsel %vm1106, %v1050, %v1098
    %v1115 = vsel %vm1107, %v1053, %v1099
    %v1116 = vsel %vm1108, %v1058, %v1100
    %v1117 = vsel %vm1109, %v1061, %v1101
    %v1118 = vsel %vm1110, %v1066, %v1102
    %v1119 = vsel %vm1111, %v1069, %v1103
    %v1120 = vpack.c.bf16 %v1113, %v1112
    %v1121 = vpack.c.bf16 %v1115, %v1114
    %v1122 = vpack.c.bf16 %v1117, %v1116
    %v1123 = vpack.c.bf16 %v1119, %v1118
    %v1125 = vsel %vm154, %v1120, 0
    %v1128 = vsel %vm154, %v1121, 0
    %v1131 = vsel %vm154, %v1122, 0
    %v1134 = vsel %vm154, %v1123, 0
    %1136 = vmatprep.subr.bf16.mxu0 0
    %1137 = vmatpush1.bf16.msra.mxu0 %v410
    %1138 = vmatprep.subr.bf16.mxu0 0
    %1139 = vmatpush1.bf16.msra.mxu0 %v411
    %1140 = vmatprep.subr.bf16.mxu0 0
    %1141 = vmatpush1.bf16.msra.mxu0 0
    %1142 = vmatprep.subr.bf16.mxu0 0
    %1143 = vmatpush1.bf16.msra.mxu0 0
    %1144 = vmatprep.subr.bf16.mxu0 0
    %1145 = vmatpush1.bf16.msra.mxu0 0
    %1146 = vmatprep.subr.bf16.mxu0 0
    %1147 = vmatpush1.bf16.msra.mxu0 0
    %1148 = vmatprep.subr.bf16.mxu0 0
    %1149 = vmatpush1.bf16.msra.mxu0 0
    %1150 = vmatprep.subr.bf16.mxu0 0
    %1151 = vmatpush1.bf16.msra.mxu0 0
    %1152 = vmatprep.subr.bf16.mxu0 0
    %1153 = vmatpush1.bf16.msra.mxu0 0
    %1154 = vmatprep.subr.bf16.mxu0 0
    %1155 = vmatpush1.bf16.msra.mxu0 0
    %1156 = vmatprep.subr.bf16.mxu0 0
    %1157 = vmatpush1.bf16.msra.mxu0 0
    %1158 = vmatprep.subr.bf16.mxu0 0
    %1159 = vmatpush1.bf16.msra.mxu0 0
    %1160 = vmatprep.subr.bf16.mxu0 0
    %1161 = vmatpush1.bf16.msra.mxu0 0
    %1162 = vmatprep.subr.bf16.mxu0 0
    %1163 = vmatpush1.bf16.msra.mxu0 0
    %1164 = vmatprep.subr.bf16.mxu0 0
    %1165 = vmatpush1.bf16.msra.mxu0 0
    %1166 = vmatprep.subr.bf16.mxu0 0
    %1167 = vmatpush1.bf16.msra.mxu0 0
    %1168 = vmatprep.mubr.bf16.mxu0 0
    %1169 = vmatmul.mubr.bf16.gmra.mrb[0].mxu0 %v1125
    %v1170 = vpop.f32.mrb[0].mxu0
    %v1171 = vadd.f32 %v401, %v1170
    %v1172 = vpop.f32.mrb[0].mxu0
    %v1173 = vpop.f32.mrb[0].mxu0
    %v1174 = vadd.f32 %v401, %v1173
    %v1175 = vpop.f32.mrb[0].mxu0
    %1176 = vmatprep.mubr.bf16.mxu0 0
    %1177 = vmatmul.mubr.bf16.gmra.mrb[0].mxu0 %v1128
    %v1178 = vpop.f32.mrb[0].mxu0
    %v1179 = vadd.f32 %v401, %v1178
    %v1180 = vpop.f32.mrb[0].mxu0
    %v1181 = vpop.f32.mrb[0].mxu0
    %v1182 = vadd.f32 %v401, %v1181
    %v1183 = vpop.f32.mrb[0].mxu0
    %1184 = vmatprep.mubr.bf16.mxu0 0
    %1185 = vmatmul.mubr.bf16.gmra.mrb[0].mxu0 %v1131
    %v1186 = vpop.f32.mrb[0].mxu0
    %v1187 = vadd.f32 %v401, %v1186
    %v1188 = vpop.f32.mrb[0].mxu0
    %v1189 = vpop.f32.mrb[0].mxu0
    %v1190 = vadd.f32 %v401, %v1189
    %v1191 = vpop.f32.mrb[0].mxu0
    %1192 = vmatprep.mubr.bf16.mxu0 0
    %1193 = vmatmul.mubr.bf16.gmra.mrb[0].mxu0 %v1134
    %v1194 = vpop.f32.mrb[0].mxu0
    %v1195 = vadd.f32 %v401, %v1194
    %v1196 = vpop.f32.mrb[0].mxu0
    %v1197 = vpop.f32.mrb[0].mxu0
    %v1198 = vadd.f32 %v401, %v1197
    %v1199 = vpop.f32.mrb[0].mxu0
    %1200 = vdwg.mxu0
    %v1201 = vtanh.pop %v1171
    %v1202 = vtanh.pop %v1174
    %v1203 = vtanh.pop %v1179
    %v1204 = vtanh.pop %v1182
    %v1205 = vtanh.pop %v1187
    %v1206 = vtanh.pop %v1190
    %v1207 = vtanh.pop %v1195
    %v1208 = vtanh.pop %v1198
    %v1209 = vsel %vm154, %v1201, 0.0
    %v1210 = vsel %vm154, %v1202, 0.0
    %v1211 = vadd.f32 %v1209, %v1210
    %v1212 = vsel %vm154, %v1203, 0.0
    %v1213 = vadd.f32 %v1211, %v1212
    %v1214 = vsel %vm154, %v1204, 0.0
    %v1215 = vadd.f32 %v1213, %v1214
    %v1216 = vsel %vm154, %v1205, 0.0
    %v1217 = vadd.f32 %v1215, %v1216
    %v1218 = vsel %vm154, %v1206, 0.0
    %v1219 = vadd.f32 %v1217, %v1218
    %v1220 = vsel %vm154, %v1207, 0.0
    %v1221 = vadd.f32 %v1219, %v1220
    %v1222 = vsel %vm154, %v1208, 0.0
    %v1223 = vadd.f32 %v1221, %v1222
    %v1224 = vrot.slane %v1223, 4
    %v1225 = vadd.f32 %v1223, %v1224
    %v1226 = vrot.slane %v1225, 2
    %v1227 = vadd.f32 %v1225, %v1226
    %v1228 = vrot.slane %v1227, 1
    %v1229 = vadd.f32 %v1227, %v1228
    %v1230 = vmul.f32 %v1229, 0.015625
    %vm1231 = vcmask 1040384
    %v1232 = vsel %vm1231, %v520, %v875
    %vm1233 = vcmask 1041408
    %v1234 = vsel %vm1233, %v1232, %v1230
    %v1235 = vlaneseq
    %v1236 = vshrl.u32 %v1235, 7
    %v1237 = vsub.s32 4, %v1236
    %v1238 = vrot.slane %v117, %v1237
    %v1239 = vmul.f32 %v1234, %v1238
    %vm1240 = vcmask 256000
    %v1241 = vsel %vm1240, %v1239, 0.0
    %1242 = vadd.xlane.f32.xlu0 %v1241
    %v1243 = vpop.xlane.xlu0 %1242
    %vm1244 = vcmask 1042432
    %v1245 = vsel %vm1244, %v1243, -inf
    %v1246 = vrot.slane %v1245, 4
    %v1247 = vmax.f32 %v1245, %v1246
    %v1248 = vrot.slane %v1247, 2
    %v1249 = vmax.f32 %v1247, %v1248
    %v1250 = vrot.slane %v1249, 1
    %v1251 = vmax.f32 %v1249, %v1250
    %v1252 = vsub.f32 %v1243, %v1251
    %v1253 = vmul.f32 %v1252, 1.442695
    %v1254 = vpow.pop %v1253
    %v1255 = vsel %vm1244, %v1254, 0.0
    %v1256 = vrot.slane %v1255, 4
    %v1257 = vadd.f32 %v1255, %v1256
    %v1258 = vrot.slane %v1257, 2
    %v1259 = vadd.f32 %v1257, %v1258
    %v1260 = vrot.slane %v1259, 1
    %v1261 = vadd.f32 %v1259, %v1260
    %v1262 = vrcp.pop %v1261
    %v1263 = vmul.f32 %v1254, %v1262
    %v1264 = vlaneseq
    %v1265 = vshrl.u32 %v1264, 7
    %v1266 = vsub.s32 0, %v1265
    %v1267 = vrot.slane %v1263, %v1266
    %v1268 = vmul.f32 %v1267, %v386
    %v1269 = vmul.f32 %v1267, %v387
    %v1270 = vmul.f32 %v1267, %v388
    %v1271 = vmul.f32 %v1267, %v389
    %v1272 = vmul.f32 %v1267, %v390
    %v1273 = vmul.f32 %v1267, %v391
    %v1274 = vmul.f32 %v1267, %v392
    %v1275 = vmul.f32 %v1267, %v393
    %v1276 = vlaneseq
    %v1277 = vshrl.u32 %v1276, 7
    %v1278 = vsub.s32 1, %v1277
    %v1279 = vrot.slane %v1263, %v1278
    %v1280 = vmul.f32 %v1279, %v757
    %v1281 = vmul.f32 %v1279, %v758
    %v1282 = vmul.f32 %v1279, %v759
    %v1283 = vmul.f32 %v1279, %v760
    %v1284 = vmul.f32 %v1279, %v761
    %v1285 = vmul.f32 %v1279, %v762
    %v1286 = vmul.f32 %v1279, %v763
    %v1287 = vmul.f32 %v1279, %v764
    %v1288 = vadd.f32 %v1268, %v1280
    %v1289 = vadd.f32 %v1269, %v1281
    %v1290 = vadd.f32 %v1270, %v1282
    %v1291 = vadd.f32 %v1271, %v1283
    %v1292 = vadd.f32 %v1272, %v1284
    %v1293 = vadd.f32 %v1273, %v1285
    %v1294 = vadd.f32 %v1274, %v1286
    %v1295 = vadd.f32 %v1275, %v1287
    %v1296 = vlaneseq
    %v1297 = vshrl.u32 %v1296, 7
    %v1298 = vsub.s32 2, %v1297
    %v1299 = vrot.slane %v1263, %v1298
    %v1300 = vmul.f32 %v1299, %v1112
    %v1301 = vmul.f32 %v1299, %v1113
    %v1302 = vmul.f32 %v1299, %v1114
    %v1303 = vmul.f32 %v1299, %v1115
    %v1304 = vmul.f32 %v1299, %v1116
    %v1305 = vmul.f32 %v1299, %v1117
    %v1306 = vmul.f32 %v1299, %v1118
    %v1307 = vmul.f32 %v1299, %v1119
    %v1308 = vadd.f32 %v1288, %v1300
    %v1309 = vadd.f32 %v1289, %v1301
    %v1310 = vadd.f32 %v1290, %v1302
    %v1311 = vadd.f32 %v1291, %v1303
    %v1312 = vadd.f32 %v1292, %v1304
    %v1313 = vadd.f32 %v1293, %v1305
    %v1314 = vadd.f32 %v1294, %v1306
    %v1315 = vadd.f32 %v1295, %v1307
    %v1316 = vpack.c.bf16 %v1309, %v1308
    %v1317 = vpack.c.bf16 %v1311, %v1310
    %v1318 = vpack.c.bf16 %v1313, %v1312
    %v1319 = vpack.c.bf16 %v1315, %v1314
    %s1320 = scalar_lea.vmem %s4, 16
    %v1321 = vld [vmem:[%s1320] sm:$0xf]
    %v1322 = vld [vmem:[%s1320 + $0x4] sm:$0xf]
    %v1323 = vld [vmem:[%s1320 + $0x8] sm:$0xf]
    %v1324 = vld [vmem:[%s1320 + $0xc] sm:$0xf]
    %s1325 = scalar_lea.vmem %s5, 8
    %v1326 = vld [vmem:[%s1325] sm:$0x1f]
    %v1327 = vld [vmem:[#allocation7] sm:$0xf]
    %v1328 = vld [vmem:[#allocation7 + $0x4] sm:$0xf]
    %v1329 = vld [vmem:[#allocation7 + $0x8] sm:$0xf]
    %v1330 = vld [vmem:[#allocation7 + $0xc] sm:$0xf]
    %v1335 = vunpack.c.l.b16 %v1327
    %v1336 = vunpack.c.l.b16 %v1328
    %v1337 = vunpack.c.l.b16 %v1329
    %v1338 = vunpack.c.l.b16 %v1330
    %v1339 = vpack.c.b16 %v1336, %v1335
    %v1340 = vpack.c.b16 %v1338, %v1337
    %v1344 = vsel %vm154, %v1316, 0
    %v1347 = vsel %vm154, %v1317, 0
    %v1350 = vsel %vm154, %v1318, 0
    %v1353 = vsel %vm154, %v1319, 0
    %1355 = vmatprep.subr.bf16.mxu0 0
    %1356 = vmatpush1.bf16.msra.mxu0 %v1339
    %1357 = vmatprep.subr.bf16.mxu0 0
    %1358 = vmatpush1.bf16.msra.mxu0 %v1340
    %1359 = vmatprep.subr.bf16.mxu0 0
    %1360 = vmatpush1.bf16.msra.mxu0 0
    %1361 = vmatprep.subr.bf16.mxu0 0
    %1362 = vmatpush1.bf16.msra.mxu0 0
    %1363 = vmatprep.subr.bf16.mxu0 0
    %1364 = vmatpush1.bf16.msra.mxu0 0
    %1365 = vmatprep.subr.bf16.mxu0 0
    %1366 = vmatpush1.bf16.msra.mxu0 0
    %1367 = vmatprep.subr.bf16.mxu0 0
    %1368 = vmatpush1.bf16.msra.mxu0 0
    %1369 = vmatprep.subr.bf16.mxu0 0
    %1370 = vmatpush1.bf16.msra.mxu0 0
    %1371 = vmatprep.subr.bf16.mxu0 0
    %1372 = vmatpush1.bf16.msra.mxu0 0
    %1373 = vmatprep.subr.bf16.mxu0 0
    %1374 = vmatpush1.bf16.msra.mxu0 0
    %1375 = vmatprep.subr.bf16.mxu0 0
    %1376 = vmatpush1.bf16.msra.mxu0 0
    %1377 = vmatprep.subr.bf16.mxu0 0
    %1378 = vmatpush1.bf16.msra.mxu0 0
    %1379 = vmatprep.subr.bf16.mxu0 0
    %1380 = vmatpush1.bf16.msra.mxu0 0
    %1381 = vmatprep.subr.bf16.mxu0 0
    %1382 = vmatpush1.bf16.msra.mxu0 0
    %1383 = vmatprep.subr.bf16.mxu0 0
    %1384 = vmatpush1.bf16.msra.mxu0 0
    %1385 = vmatprep.subr.bf16.mxu0 0
    %1386 = vmatpush1.bf16.msra.mxu0 0
    %1387 = vmatprep.mubr.bf16.mxu0 0
    %1388 = vmatmul.mubr.bf16.gmra.mrb[0].mxu0 %v1344
    %v1389 = vpop.f32.mrb[0].mxu0
    %v1390 = vadd.f32 0.0, %v1389
    %v1391 = vpop.f32.mrb[0].mxu0
    %v1392 = vpop.f32.mrb[0].mxu0
    %v1393 = vadd.f32 0.0, %v1392
    %v1394 = vpop.f32.mrb[0].mxu0
    %1395 = vmatprep.mubr.bf16.mxu0 0
    %1396 = vmatmul.mubr.bf16.gmra.mrb[0].mxu0 %v1347
    %v1397 = vpop.f32.mrb[0].mxu0
    %v1398 = vadd.f32 0.0, %v1397
    %v1399 = vpop.f32.mrb[0].mxu0
    %v1400 = vpop.f32.mrb[0].mxu0
    %v1401 = vadd.f32 0.0, %v1400
    %v1402 = vpop.f32.mrb[0].mxu0
    %1403 = vmatprep.mubr.bf16.mxu0 0
    %1404 = vmatmul.mubr.bf16.gmra.mrb[0].mxu0 %v1350
    %v1405 = vpop.f32.mrb[0].mxu0
    %v1406 = vadd.f32 0.0, %v1405
    %v1407 = vpop.f32.mrb[0].mxu0
    %v1408 = vpop.f32.mrb[0].mxu0
    %v1409 = vadd.f32 0.0, %v1408
    %v1410 = vpop.f32.mrb[0].mxu0
    %1411 = vmatprep.mubr.bf16.mxu0 0
    %1412 = vmatmul.mubr.bf16.gmra.mrb[0].mxu0 %v1353
    %v1413 = vpop.f32.mrb[0].mxu0
    %v1414 = vadd.f32 0.0, %v1413
    %v1415 = vpop.f32.mrb[0].mxu0
    %v1416 = vpop.f32.mrb[0].mxu0
    %v1417 = vadd.f32 0.0, %v1416
    %v1418 = vpop.f32.mrb[0].mxu0
    %1419 = vdwg.mxu0
    %v1420 = vpack.c.bf16 %v1393, %v1390
    %v1421 = vpack.c.bf16 %v1401, %v1398
    %v1422 = vpack.c.bf16 %v1409, %v1406
    %v1423 = vpack.c.bf16 %v1417, %v1414
    %v1424 = vlaneseq
    %v1425 = vshrl.u32 %v1424, 7
    %v1426 = vsub.s32 0, %v1425
    %v1427 = vrot.slane %v1326, %v1426
    %1428 = vmatprep.subr.bf16.mxu0 0
    %1429 = vmatpush1.bf16.msra.mxu0 %v1420
    %1430 = vmatprep.subr.bf16.mxu0 0
    %1431 = vmatpush1.bf16.msra.mxu0 %v1421
    %1432 = vmatprep.subr.bf16.mxu0 0
    %1433 = vmatpush1.bf16.msra.mxu0 %v1422
    %1434 = vmatprep.subr.bf16.mxu0 0
    %1435 = vmatpush1.bf16.msra.mxu0 %v1423
    %1436 = vmatprep.subr.bf16.mxu0 0
    %1437 = vmatpush1.bf16.msra.mxu0 0
    %1438 = vmatprep.subr.bf16.mxu0 0
    %1439 = vmatpush1.bf16.msra.mxu0 0
    %1440 = vmatprep.subr.bf16.mxu0 0
    %1441 = vmatpush1.bf16.msra.mxu0 0
    %1442 = vmatprep.subr.bf16.mxu0 0
    %1443 = vmatpush1.bf16.msra.mxu0 0
    %1444 = vmatprep.subr.bf16.mxu0 0
    %1445 = vmatpush1.bf16.msra.mxu0 0
    %1446 = vmatprep.subr.bf16.mxu0 0
    %1447 = vmatpush1.bf16.msra.mxu0 0
    %1448 = vmatprep.subr.bf16.mxu0 0
    %1449 = vmatpush1.bf16.msra.mxu0 0
    %1450 = vmatprep.subr.bf16.mxu0 0
    %1451 = vmatpush1.bf16.msra.mxu0 0
    %1452 = vmatprep.subr.bf16.mxu0 0
    %1453 = vmatpush1.bf16.msra.mxu0 0
    %1454 = vmatprep.subr.bf16.mxu0 0
    %1455 = vmatpush1.bf16.msra.mxu0 0
    %1456 = vmatprep.subr.bf16.mxu0 0
    %1457 = vmatpush1.bf16.msra.mxu0 0
    %1458 = vmatprep.subr.bf16.mxu0 0
    %1459 = vmatpush1.bf16.msra.mxu0 0
    %1460 = vmatprep.mubr.bf16.mxu0 0
    %1461 = vmatmul.mubr.bf16.gmra.mrb[0].mxu0 %v270
    %v1462 = vpop.f32.mrb[0].mxu0
    %v1463 = vadd.f32 %v1427, %v1462
    %v1464 = vpop.f32.mrb[0].mxu0
    %v1465 = vpop.f32.mrb[0].mxu0
    %v1466 = vadd.f32 %v1427, %v1465
    %v1467 = vpop.f32.mrb[0].mxu0
    %1468 = vmatprep.mubr.bf16.mxu0 0
    %1469 = vmatmul.mubr.bf16.gmra.mrb[0].mxu0 %v273
    %v1470 = vpop.f32.mrb[0].mxu0
    %v1471 = vadd.f32 %v1427, %v1470
    %v1472 = vpop.f32.mrb[0].mxu0
    %v1473 = vpop.f32.mrb[0].mxu0
    %v1474 = vadd.f32 %v1427, %v1473
    %v1475 = vpop.f32.mrb[0].mxu0
    %1476 = vmatprep.mubr.bf16.mxu0 0
    %1477 = vmatmul.mubr.bf16.gmra.mrb[0].mxu0 %v276
    %v1478 = vpop.f32.mrb[0].mxu0
    %v1479 = vadd.f32 %v1427, %v1478
    %v1480 = vpop.f32.mrb[0].mxu0
    %v1481 = vpop.f32.mrb[0].mxu0
    %v1482 = vadd.f32 %v1427, %v1481
    %v1483 = vpop.f32.mrb[0].mxu0
    %1484 = vmatprep.mubr.bf16.mxu0 0
    %1485 = vmatmul.mubr.bf16.gmra.mrb[0].mxu0 %v279
    %v1486 = vpop.f32.mrb[0].mxu0
    %v1487 = vadd.f32 %v1427, %v1486
    %v1488 = vpop.f32.mrb[0].mxu0
    %v1489 = vpop.f32.mrb[0].mxu0
    %v1490 = vadd.f32 %v1427, %v1489
    %v1491 = vpop.f32.mrb[0].mxu0
    %1492 = vdwg.mxu0
    %v1493 = vmin.f32 %v1463, 0.0
    %v1494 = vmin.f32 %v1466, 0.0
    %v1495 = vmin.f32 %v1471, 0.0
    %v1496 = vmin.f32 %v1474, 0.0
    %v1497 = vmin.f32 %v1479, 0.0
    %v1498 = vmin.f32 %v1482, 0.0
    %v1499 = vmin.f32 %v1487, 0.0
    %v1500 = vmin.f32 %v1490, 0.0
    %v1501 = vmul.f32 %v1493, 1.442695
    %v1502 = vpow.pop %v1501
    %v1503 = vmul.f32 %v1494, 1.442695
    %v1504 = vpow.pop %v1503
    %v1505 = vmul.f32 %v1495, 1.442695
    %v1506 = vpow.pop %v1505
    %v1507 = vmul.f32 %v1496, 1.442695
    %v1508 = vpow.pop %v1507
    %v1509 = vmul.f32 %v1497, 1.442695
    %v1510 = vpow.pop %v1509
    %v1511 = vmul.f32 %v1498, 1.442695
    %v1512 = vpow.pop %v1511
    %v1513 = vmul.f32 %v1499, 1.442695
    %v1514 = vpow.pop %v1513
    %v1515 = vmul.f32 %v1500, 1.442695
    %v1516 = vpow.pop %v1515
    %v1517 = vsub.f32 %v1502, 1.0
    %v1518 = vsub.f32 %v1504, 1.0
    %v1519 = vsub.f32 %v1506, 1.0
    %v1520 = vsub.f32 %v1508, 1.0
    %v1521 = vsub.f32 %v1510, 1.0
    %v1522 = vsub.f32 %v1512, 1.0
    %v1523 = vsub.f32 %v1514, 1.0
    %v1524 = vsub.f32 %v1516, 1.0
    %vm1525 = vcmp.gt.f32.partialorder %v1463, 0.0
    %vm1526 = vcmp.gt.f32.partialorder %v1466, 0.0
    %vm1527 = vcmp.gt.f32.partialorder %v1471, 0.0
    %vm1528 = vcmp.gt.f32.partialorder %v1474, 0.0
    %vm1529 = vcmp.gt.f32.partialorder %v1479, 0.0
    %vm1530 = vcmp.gt.f32.partialorder %v1482, 0.0
    %vm1531 = vcmp.gt.f32.partialorder %v1487, 0.0
    %vm1532 = vcmp.gt.f32.partialorder %v1490, 0.0
    %v1533 = vsel %vm1525, %v1463, %v1517
    %v1534 = vsel %vm1526, %v1466, %v1518
    %v1535 = vsel %vm1527, %v1471, %v1519
    %v1536 = vsel %vm1528, %v1474, %v1520
    %v1537 = vsel %vm1529, %v1479, %v1521
    %v1538 = vsel %vm1530, %v1482, %v1522
    %v1539 = vsel %vm1531, %v1487, %v1523
    %v1540 = vsel %vm1532, %v1490, %v1524
    %v1541 = vpack.c.bf16 %v1534, %v1533
    %v1542 = vpack.c.bf16 %v1536, %v1535
    %v1543 = vpack.c.bf16 %v1538, %v1537
    %v1544 = vpack.c.bf16 %v1540, %v1539
    %v1545 = vlaneseq
    %v1546 = vshrl.u32 %v1545, 7
    %v1547 = vsub.s32 3, %v1546
    %v1548 = vrot.slane %v1326, %v1547
    %v1553 = vunpack.c.l.b16 %v1321
    %v1554 = vunpack.c.l.b16 %v1322
    %v1555 = vunpack.c.l.b16 %v1323
    %v1556 = vunpack.c.l.b16 %v1324
    %v1557 = vpack.c.b16 %v1554, %v1553
    %v1558 = vpack.c.b16 %v1556, %v1555
    %v1562 = vsel %vm154, %v1541, 0
    %v1565 = vsel %vm154, %v1542, 0
    %v1568 = vsel %vm154, %v1543, 0
    %v1571 = vsel %vm154, %v1544, 0
    %1573 = vmatprep.subr.bf16.mxu0 0
    %1574 = vmatpush1.bf16.msra.mxu0 %v1557
    %1575 = vmatprep.subr.bf16.mxu0 0
    %1576 = vmatpush1.bf16.msra.mxu0 %v1558
    %1577 = vmatprep.subr.bf16.mxu0 0
    %1578 = vmatpush1.bf16.msra.mxu0 0
    %1579 = vmatprep.subr.bf16.mxu0 0
    %1580 = vmatpush1.bf16.msra.mxu0 0
    %1581 = vmatprep.subr.bf16.mxu0 0
    %1582 = vmatpush1.bf16.msra.mxu0 0
    %1583 = vmatprep.subr.bf16.mxu0 0
    %1584 = vmatpush1.bf16.msra.mxu0 0
    %1585 = vmatprep.subr.bf16.mxu0 0
    %1586 = vmatpush1.bf16.msra.mxu0 0
    %1587 = vmatprep.subr.bf16.mxu0 0
    %1588 = vmatpush1.bf16.msra.mxu0 0
    %1589 = vmatprep.subr.bf16.mxu0 0
    %1590 = vmatpush1.bf16.msra.mxu0 0
    %1591 = vmatprep.subr.bf16.mxu0 0
    %1592 = vmatpush1.bf16.msra.mxu0 0
    %1593 = vmatprep.subr.bf16.mxu0 0
    %1594 = vmatpush1.bf16.msra.mxu0 0
    %1595 = vmatprep.subr.bf16.mxu0 0
    %1596 = vmatpush1.bf16.msra.mxu0 0
    %1597 = vmatprep.subr.bf16.mxu0 0
    %1598 = vmatpush1.bf16.msra.mxu0 0
    %1599 = vmatprep.subr.bf16.mxu0 0
    %1600 = vmatpush1.bf16.msra.mxu0 0
    %1601 = vmatprep.subr.bf16.mxu0 0
    %1602 = vmatpush1.bf16.msra.mxu0 0
    %1603 = vmatprep.subr.bf16.mxu0 0
    %1604 = vmatpush1.bf16.msra.mxu0 0
    %1605 = vmatprep.mubr.bf16.mxu0 0
    %1606 = vmatmul.mubr.bf16.gmra.mrb[0].mxu0 %v1562
    %v1607 = vpop.f32.mrb[0].mxu0
    %v1608 = vadd.f32 %v1548, %v1607
    %v1609 = vpop.f32.mrb[0].mxu0
    %v1610 = vpop.f32.mrb[0].mxu0
    %v1611 = vadd.f32 %v1548, %v1610
    %v1612 = vpop.f32.mrb[0].mxu0
    %1613 = vmatprep.mubr.bf16.mxu0 0
    %1614 = vmatmul.mubr.bf16.gmra.mrb[0].mxu0 %v1565
    %v1615 = vpop.f32.mrb[0].mxu0
    %v1616 = vadd.f32 %v1548, %v1615
    %v1617 = vpop.f32.mrb[0].mxu0
    %v1618 = vpop.f32.mrb[0].mxu0
    %v1619 = vadd.f32 %v1548, %v1618
    %v1620 = vpop.f32.mrb[0].mxu0
    %1621 = vmatprep.mubr.bf16.mxu0 0
    %1622 = vmatmul.mubr.bf16.gmra.mrb[0].mxu0 %v1568
    %v1623 = vpop.f32.mrb[0].mxu0
    %v1624 = vadd.f32 %v1548, %v1623
    %v1625 = vpop.f32.mrb[0].mxu0
    %v1626 = vpop.f32.mrb[0].mxu0
    %v1627 = vadd.f32 %v1548, %v1626
    %v1628 = vpop.f32.mrb[0].mxu0
    %1629 = vmatprep.mubr.bf16.mxu0 0
    %1630 = vmatmul.mubr.bf16.gmra.mrb[0].mxu0 %v1571
    %v1631 = vpop.f32.mrb[0].mxu0
    %v1632 = vadd.f32 %v1548, %v1631
    %v1633 = vpop.f32.mrb[0].mxu0
    %v1634 = vpop.f32.mrb[0].mxu0
    %v1635 = vadd.f32 %v1548, %v1634
    %v1636 = vpop.f32.mrb[0].mxu0
    %1637 = vdwg.mxu0
    %v1638 = vtanh.pop %v1608
    %v1639 = vtanh.pop %v1611
    %v1640 = vtanh.pop %v1616
    %v1641 = vtanh.pop %v1619
    %v1642 = vtanh.pop %v1624
    %v1643 = vtanh.pop %v1627
    %v1644 = vtanh.pop %v1632
    %v1645 = vtanh.pop %v1635
    %v1646 = vsel %vm154, %v1638, 0.0
    %v1647 = vsel %vm154, %v1639, 0.0
    %v1648 = vadd.f32 %v1646, %v1647
    %v1649 = vsel %vm154, %v1640, 0.0
    %v1650 = vadd.f32 %v1648, %v1649
    %v1651 = vsel %vm154, %v1641, 0.0
    %v1652 = vadd.f32 %v1650, %v1651
    %v1653 = vsel %vm154, %v1642, 0.0
    %v1654 = vadd.f32 %v1652, %v1653
    %v1655 = vsel %vm154, %v1643, 0.0
    %v1656 = vadd.f32 %v1654, %v1655
    %v1657 = vsel %vm154, %v1644, 0.0
    %v1658 = vadd.f32 %v1656, %v1657
    %v1659 = vsel %vm154, %v1645, 0.0
    %v1660 = vadd.f32 %v1658, %v1659
    %v1661 = vrot.slane %v1660, 4
    %v1662 = vadd.f32 %v1660, %v1661
    %v1663 = vrot.slane %v1662, 2
    %v1664 = vadd.f32 %v1662, %v1663
    %v1665 = vrot.slane %v1664, 1
    %v1666 = vadd.f32 %v1664, %v1665
    %v1667 = vmul.f32 %v1666, 0.015625
    %s1668 = scalar_lea.vmem [#allocation7], 16
    %v1669 = vld [vmem:[%s1668] sm:$0xf]
    %v1670 = vld [vmem:[%s1668 + $0x4] sm:$0xf]
    %v1671 = vld [vmem:[%s1668 + $0x8] sm:$0xf]
    %v1672 = vld [vmem:[%s1668 + $0xc] sm:$0xf]
    %v1677 = vunpack.c.l.b16 %v1669
    %v1678 = vunpack.c.l.b16 %v1670
    %v1679 = vunpack.c.l.b16 %v1671
    %v1680 = vunpack.c.l.b16 %v1672
    %v1681 = vpack.c.b16 %v1678, %v1677
    %v1682 = vpack.c.b16 %v1680, %v1679
    %1685 = vmatprep.subr.bf16.mxu0 0
    %1686 = vmatpush1.bf16.msra.mxu0 %v1681
    %1687 = vmatprep.subr.bf16.mxu0 0
    %1688 = vmatpush1.bf16.msra.mxu0 %v1682
    %1689 = vmatprep.subr.bf16.mxu0 0
    %1690 = vmatpush1.bf16.msra.mxu0 0
    %1691 = vmatprep.subr.bf16.mxu0 0
    %1692 = vmatpush1.bf16.msra.mxu0 0
    %1693 = vmatprep.subr.bf16.mxu0 0
    %1694 = vmatpush1.bf16.msra.mxu0 0
    %1695 = vmatprep.subr.bf16.mxu0 0
    %1696 = vmatpush1.bf16.msra.mxu0 0
    %1697 = vmatprep.subr.bf16.mxu0 0
    %1698 = vmatpush1.bf16.msra.mxu0 0
    %1699 = vmatprep.subr.bf16.mxu0 0
    %1700 = vmatpush1.bf16.msra.mxu0 0
    %1701 = vmatprep.subr.bf16.mxu0 0
    %1702 = vmatpush1.bf16.msra.mxu0 0
    %1703 = vmatprep.subr.bf16.mxu0 0
    %1704 = vmatpush1.bf16.msra.mxu0 0
    %1705 = vmatprep.subr.bf16.mxu0 0
    %1706 = vmatpush1.bf16.msra.mxu0 0
    %1707 = vmatprep.subr.bf16.mxu0 0
    %1708 = vmatpush1.bf16.msra.mxu0 0
    %1709 = vmatprep.subr.bf16.mxu0 0
    %1710 = vmatpush1.bf16.msra.mxu0 0
    %1711 = vmatprep.subr.bf16.mxu0 0
    %1712 = vmatpush1.bf16.msra.mxu0 0
    %1713 = vmatprep.subr.bf16.mxu0 0
    %1714 = vmatpush1.bf16.msra.mxu0 0
    %1715 = vmatprep.subr.bf16.mxu0 0
    %1716 = vmatpush1.bf16.msra.mxu0 0
    %1717 = vmatprep.mubr.bf16.mxu0 0
    %1718 = vmatmul.mubr.bf16.gmra.mrb[0].mxu0 %v1344
    %v1719 = vpop.f32.mrb[0].mxu0
    %v1720 = vadd.f32 0.0, %v1719
    %v1721 = vpop.f32.mrb[0].mxu0
    %v1722 = vpop.f32.mrb[0].mxu0
    %v1723 = vadd.f32 0.0, %v1722
    %v1724 = vpop.f32.mrb[0].mxu0
    %1725 = vmatprep.mubr.bf16.mxu0 0
    %1726 = vmatmul.mubr.bf16.gmra.mrb[0].mxu0 %v1347
    %v1727 = vpop.f32.mrb[0].mxu0
    %v1728 = vadd.f32 0.0, %v1727
    %v1729 = vpop.f32.mrb[0].mxu0
    %v1730 = vpop.f32.mrb[0].mxu0
    %v1731 = vadd.f32 0.0, %v1730
    %v1732 = vpop.f32.mrb[0].mxu0
    %1733 = vmatprep.mubr.bf16.mxu0 0
    %1734 = vmatmul.mubr.bf16.gmra.mrb[0].mxu0 %v1350
    %v1735 = vpop.f32.mrb[0].mxu0
    %v1736 = vadd.f32 0.0, %v1735
    %v1737 = vpop.f32.mrb[0].mxu0
    %v1738 = vpop.f32.mrb[0].mxu0
    %v1739 = vadd.f32 0.0, %v1738
    %v1740 = vpop.f32.mrb[0].mxu0
    %1741 = vmatprep.mubr.bf16.mxu0 0
    %1742 = vmatmul.mubr.bf16.gmra.mrb[0].mxu0 %v1353
    %v1743 = vpop.f32.mrb[0].mxu0
    %v1744 = vadd.f32 0.0, %v1743
    %v1745 = vpop.f32.mrb[0].mxu0
    %v1746 = vpop.f32.mrb[0].mxu0
    %v1747 = vadd.f32 0.0, %v1746
    %v1748 = vpop.f32.mrb[0].mxu0
    %1749 = vdwg.mxu0
    %v1750 = vpack.c.bf16 %v1723, %v1720
    %v1751 = vpack.c.bf16 %v1731, %v1728
    %v1752 = vpack.c.bf16 %v1739, %v1736
    %v1753 = vpack.c.bf16 %v1747, %v1744
    %v1754 = vlaneseq
    %v1755 = vshrl.u32 %v1754, 7
    %v1756 = vsub.s32 1, %v1755
    %v1757 = vrot.slane %v1326, %v1756
    %1758 = vmatprep.subr.bf16.mxu0 0
    %1759 = vmatpush1.bf16.msra.mxu0 %v1750
    %1760 = vmatprep.subr.bf16.mxu0 0
    %1761 = vmatpush1.bf16.msra.mxu0 %v1751
    %1762 = vmatprep.subr.bf16.mxu0 0
    %1763 = vmatpush1.bf16.msra.mxu0 %v1752
    %1764 = vmatprep.subr.bf16.mxu0 0
    %1765 = vmatpush1.bf16.msra.mxu0 %v1753
    %1766 = vmatprep.subr.bf16.mxu0 0
    %1767 = vmatpush1.bf16.msra.mxu0 0
    %1768 = vmatprep.subr.bf16.mxu0 0
    %1769 = vmatpush1.bf16.msra.mxu0 0
    %1770 = vmatprep.subr.bf16.mxu0 0
    %1771 = vmatpush1.bf16.msra.mxu0 0
    %1772 = vmatprep.subr.bf16.mxu0 0
    %1773 = vmatpush1.bf16.msra.mxu0 0
    %1774 = vmatprep.subr.bf16.mxu0 0
    %1775 = vmatpush1.bf16.msra.mxu0 0
    %1776 = vmatprep.subr.bf16.mxu0 0
    %1777 = vmatpush1.bf16.msra.mxu0 0
    %1778 = vmatprep.subr.bf16.mxu0 0
    %1779 = vmatpush1.bf16.msra.mxu0 0
    %1780 = vmatprep.subr.bf16.mxu0 0
    %1781 = vmatpush1.bf16.msra.mxu0 0
    %1782 = vmatprep.subr.bf16.mxu0 0
    %1783 = vmatpush1.bf16.msra.mxu0 0
    %1784 = vmatprep.subr.bf16.mxu0 0
    %1785 = vmatpush1.bf16.msra.mxu0 0
    %1786 = vmatprep.subr.bf16.mxu0 0
    %1787 = vmatpush1.bf16.msra.mxu0 0
    %1788 = vmatprep.subr.bf16.mxu0 0
    %1789 = vmatpush1.bf16.msra.mxu0 0
    %1790 = vmatprep.mubr.bf16.mxu0 0
    %1791 = vmatmul.mubr.bf16.gmra.mrb[0].mxu0 %v641
    %v1792 = vpop.f32.mrb[0].mxu0
    %v1793 = vadd.f32 %v1757, %v1792
    %v1794 = vpop.f32.mrb[0].mxu0
    %v1795 = vpop.f32.mrb[0].mxu0
    %v1796 = vadd.f32 %v1757, %v1795
    %v1797 = vpop.f32.mrb[0].mxu0
    %1798 = vmatprep.mubr.bf16.mxu0 0
    %1799 = vmatmul.mubr.bf16.gmra.mrb[0].mxu0 %v644
    %v1800 = vpop.f32.mrb[0].mxu0
    %v1801 = vadd.f32 %v1757, %v1800
    %v1802 = vpop.f32.mrb[0].mxu0
    %v1803 = vpop.f32.mrb[0].mxu0
    %v1804 = vadd.f32 %v1757, %v1803
    %v1805 = vpop.f32.mrb[0].mxu0
    %1806 = vmatprep.mubr.bf16.mxu0 0
    %1807 = vmatmul.mubr.bf16.gmra.mrb[0].mxu0 %v647
    %v1808 = vpop.f32.mrb[0].mxu0
    %v1809 = vadd.f32 %v1757, %v1808
    %v1810 = vpop.f32.mrb[0].mxu0
    %v1811 = vpop.f32.mrb[0].mxu0
    %v1812 = vadd.f32 %v1757, %v1811
    %v1813 = vpop.f32.mrb[0].mxu0
    %1814 = vmatprep.mubr.bf16.mxu0 0
    %1815 = vmatmul.mubr.bf16.gmra.mrb[0].mxu0 %v650
    %v1816 = vpop.f32.mrb[0].mxu0
    %v1817 = vadd.f32 %v1757, %v1816
    %v1818 = vpop.f32.mrb[0].mxu0
    %v1819 = vpop.f32.mrb[0].mxu0
    %v1820 = vadd.f32 %v1757, %v1819
    %v1821 = vpop.f32.mrb[0].mxu0
    %1822 = vdwg.mxu0
    %v1823 = vmin.f32 %v1793, 0.0
    %v1824 = vmin.f32 %v1796, 0.0
    %v1825 = vmin.f32 %v1801, 0.0
    %v1826 = vmin.f32 %v1804, 0.0
    %v1827 = vmin.f32 %v1809, 0.0
    %v1828 = vmin.f32 %v1812, 0.0
    %v1829 = vmin.f32 %v1817, 0.0
    %v1830 = vmin.f32 %v1820, 0.0
    %v1831 = vmul.f32 %v1823, 1.442695
    %v1832 = vpow.pop %v1831
    %v1833 = vmul.f32 %v1824, 1.442695
    %v1834 = vpow.pop %v1833
    %v1835 = vmul.f32 %v1825, 1.442695
    %v1836 = vpow.pop %v1835
    %v1837 = vmul.f32 %v1826, 1.442695
    %v1838 = vpow.pop %v1837
    %v1839 = vmul.f32 %v1827, 1.442695
    %v1840 = vpow.pop %v1839
    %v1841 = vmul.f32 %v1828, 1.442695
    %v1842 = vpow.pop %v1841
    %v1843 = vmul.f32 %v1829, 1.442695
    %v1844 = vpow.pop %v1843
    %v1845 = vmul.f32 %v1830, 1.442695
    %v1846 = vpow.pop %v1845
    %v1847 = vsub.f32 %v1832, 1.0
    %v1848 = vsub.f32 %v1834, 1.0
    %v1849 = vsub.f32 %v1836, 1.0
    %v1850 = vsub.f32 %v1838, 1.0
    %v1851 = vsub.f32 %v1840, 1.0
    %v1852 = vsub.f32 %v1842, 1.0
    %v1853 = vsub.f32 %v1844, 1.0
    %v1854 = vsub.f32 %v1846, 1.0
    %vm1855 = vcmp.gt.f32.partialorder %v1793, 0.0
    %vm1856 = vcmp.gt.f32.partialorder %v1796, 0.0
    %vm1857 = vcmp.gt.f32.partialorder %v1801, 0.0
    %vm1858 = vcmp.gt.f32.partialorder %v1804, 0.0
    %vm1859 = vcmp.gt.f32.partialorder %v1809, 0.0
    %vm1860 = vcmp.gt.f32.partialorder %v1812, 0.0
    %vm1861 = vcmp.gt.f32.partialorder %v1817, 0.0
    %vm1862 = vcmp.gt.f32.partialorder %v1820, 0.0
    %v1863 = vsel %vm1855, %v1793, %v1847
    %v1864 = vsel %vm1856, %v1796, %v1848
    %v1865 = vsel %vm1857, %v1801, %v1849
    %v1866 = vsel %vm1858, %v1804, %v1850
    %v1867 = vsel %vm1859, %v1809, %v1851
    %v1868 = vsel %vm1860, %v1812, %v1852
    %v1869 = vsel %vm1861, %v1817, %v1853
    %v1870 = vsel %vm1862, %v1820, %v1854
    %v1871 = vpack.c.bf16 %v1864, %v1863
    %v1872 = vpack.c.bf16 %v1866, %v1865
    %v1873 = vpack.c.bf16 %v1868, %v1867
    %v1874 = vpack.c.bf16 %v1870, %v1869
    %v1876 = vsel %vm154, %v1871, 0
    %v1879 = vsel %vm154, %v1872, 0
    %v1882 = vsel %vm154, %v1873, 0
    %v1885 = vsel %vm154, %v1874, 0
    %1887 = vmatprep.subr.bf16.mxu0 0
    %1888 = vmatpush1.bf16.msra.mxu0 %v1557
    %1889 = vmatprep.subr.bf16.mxu0 0
    %1890 = vmatpush1.bf16.msra.mxu0 %v1558
    %1891 = vmatprep.subr.bf16.mxu0 0
    %1892 = vmatpush1.bf16.msra.mxu0 0
    %1893 = vmatprep.subr.bf16.mxu0 0
    %1894 = vmatpush1.bf16.msra.mxu0 0
    %1895 = vmatprep.subr.bf16.mxu0 0
    %1896 = vmatpush1.bf16.msra.mxu0 0
    %1897 = vmatprep.subr.bf16.mxu0 0
    %1898 = vmatpush1.bf16.msra.mxu0 0
    %1899 = vmatprep.subr.bf16.mxu0 0
    %1900 = vmatpush1.bf16.msra.mxu0 0
    %1901 = vmatprep.subr.bf16.mxu0 0
    %1902 = vmatpush1.bf16.msra.mxu0 0
    %1903 = vmatprep.subr.bf16.mxu0 0
    %1904 = vmatpush1.bf16.msra.mxu0 0
    %1905 = vmatprep.subr.bf16.mxu0 0
    %1906 = vmatpush1.bf16.msra.mxu0 0
    %1907 = vmatprep.subr.bf16.mxu0 0
    %1908 = vmatpush1.bf16.msra.mxu0 0
    %1909 = vmatprep.subr.bf16.mxu0 0
    %1910 = vmatpush1.bf16.msra.mxu0 0
    %1911 = vmatprep.subr.bf16.mxu0 0
    %1912 = vmatpush1.bf16.msra.mxu0 0
    %1913 = vmatprep.subr.bf16.mxu0 0
    %1914 = vmatpush1.bf16.msra.mxu0 0
    %1915 = vmatprep.subr.bf16.mxu0 0
    %1916 = vmatpush1.bf16.msra.mxu0 0
    %1917 = vmatprep.subr.bf16.mxu0 0
    %1918 = vmatpush1.bf16.msra.mxu0 0
    %1919 = vmatprep.mubr.bf16.mxu0 0
    %1920 = vmatmul.mubr.bf16.gmra.mrb[0].mxu0 %v1876
    %v1921 = vpop.f32.mrb[0].mxu0
    %v1922 = vadd.f32 %v1548, %v1921
    %v1923 = vpop.f32.mrb[0].mxu0
    %v1924 = vpop.f32.mrb[0].mxu0
    %v1925 = vadd.f32 %v1548, %v1924
    %v1926 = vpop.f32.mrb[0].mxu0
    %1927 = vmatprep.mubr.bf16.mxu0 0
    %1928 = vmatmul.mubr.bf16.gmra.mrb[0].mxu0 %v1879
    %v1929 = vpop.f32.mrb[0].mxu0
    %v1930 = vadd.f32 %v1548, %v1929
    %v1931 = vpop.f32.mrb[0].mxu0
    %v1932 = vpop.f32.mrb[0].mxu0
    %v1933 = vadd.f32 %v1548, %v1932
    %v1934 = vpop.f32.mrb[0].mxu0
    %1935 = vmatprep.mubr.bf16.mxu0 0
    %1936 = vmatmul.mubr.bf16.gmra.mrb[0].mxu0 %v1882
    %v1937 = vpop.f32.mrb[0].mxu0
    %v1938 = vadd.f32 %v1548, %v1937
    %v1939 = vpop.f32.mrb[0].mxu0
    %v1940 = vpop.f32.mrb[0].mxu0
    %v1941 = vadd.f32 %v1548, %v1940
    %v1942 = vpop.f32.mrb[0].mxu0
    %1943 = vmatprep.mubr.bf16.mxu0 0
    %1944 = vmatmul.mubr.bf16.gmra.mrb[0].mxu0 %v1885
    %v1945 = vpop.f32.mrb[0].mxu0
    %v1946 = vadd.f32 %v1548, %v1945
    %v1947 = vpop.f32.mrb[0].mxu0
    %v1948 = vpop.f32.mrb[0].mxu0
    %v1949 = vadd.f32 %v1548, %v1948
    %v1950 = vpop.f32.mrb[0].mxu0
    %1951 = vdwg.mxu0
    %v1952 = vtanh.pop %v1922
    %v1953 = vtanh.pop %v1925
    %v1954 = vtanh.pop %v1930
    %v1955 = vtanh.pop %v1933
    %v1956 = vtanh.pop %v1938
    %v1957 = vtanh.pop %v1941
    %v1958 = vtanh.pop %v1946
    %v1959 = vtanh.pop %v1949
    %v1960 = vsel %vm154, %v1952, 0.0
    %v1961 = vsel %vm154, %v1953, 0.0
    %v1962 = vadd.f32 %v1960, %v1961
    %v1963 = vsel %vm154, %v1954, 0.0
    %v1964 = vadd.f32 %v1962, %v1963
    %v1965 = vsel %vm154, %v1955, 0.0
    %v1966 = vadd.f32 %v1964, %v1965
    %v1967 = vsel %vm154, %v1956, 0.0
    %v1968 = vadd.f32 %v1966, %v1967
    %v1969 = vsel %vm154, %v1957, 0.0
    %v1970 = vadd.f32 %v1968, %v1969
    %v1971 = vsel %vm154, %v1958, 0.0
    %v1972 = vadd.f32 %v1970, %v1971
    %v1973 = vsel %vm154, %v1959, 0.0
    %v1974 = vadd.f32 %v1972, %v1973
    %v1975 = vrot.slane %v1974, 4
    %v1976 = vadd.f32 %v1974, %v1975
    %v1977 = vrot.slane %v1976, 2
    %v1978 = vadd.f32 %v1976, %v1977
    %v1979 = vrot.slane %v1978, 1
    %v1980 = vadd.f32 %v1978, %v1979
    %v1981 = vmul.f32 %v1980, 0.015625
    %s1982 = scalar_lea.vmem [#allocation7], 32
    %v1983 = vld [vmem:[%s1982] sm:$0xf]
    %v1984 = vld [vmem:[%s1982 + $0x4] sm:$0xf]
    %v1985 = vld [vmem:[%s1982 + $0x8] sm:$0xf]
    %v1986 = vld [vmem:[%s1982 + $0xc] sm:$0xf]
    %v1991 = vunpack.c.l.b16 %v1983
    %v1992 = vunpack.c.l.b16 %v1984
    %v1993 = vunpack.c.l.b16 %v1985
    %v1994 = vunpack.c.l.b16 %v1986
    %v1995 = vpack.c.b16 %v1992, %v1991
    %v1996 = vpack.c.b16 %v1994, %v1993
    %1999 = vmatprep.subr.bf16.mxu0 0
    %2000 = vmatpush1.bf16.msra.mxu0 %v1995
    %2001 = vmatprep.subr.bf16.mxu0 0
    %2002 = vmatpush1.bf16.msra.mxu0 %v1996
    %2003 = vmatprep.subr.bf16.mxu0 0
    %2004 = vmatpush1.bf16.msra.mxu0 0
    %2005 = vmatprep.subr.bf16.mxu0 0
    %2006 = vmatpush1.bf16.msra.mxu0 0
    %2007 = vmatprep.subr.bf16.mxu0 0
    %2008 = vmatpush1.bf16.msra.mxu0 0
    %2009 = vmatprep.subr.bf16.mxu0 0
    %2010 = vmatpush1.bf16.msra.mxu0 0
    %2011 = vmatprep.subr.bf16.mxu0 0
    %2012 = vmatpush1.bf16.msra.mxu0 0
    %2013 = vmatprep.subr.bf16.mxu0 0
    %2014 = vmatpush1.bf16.msra.mxu0 0
    %2015 = vmatprep.subr.bf16.mxu0 0
    %2016 = vmatpush1.bf16.msra.mxu0 0
    %2017 = vmatprep.subr.bf16.mxu0 0
    %2018 = vmatpush1.bf16.msra.mxu0 0
    %2019 = vmatprep.subr.bf16.mxu0 0
    %2020 = vmatpush1.bf16.msra.mxu0 0
    %2021 = vmatprep.subr.bf16.mxu0 0
    %2022 = vmatpush1.bf16.msra.mxu0 0
    %2023 = vmatprep.subr.bf16.mxu0 0
    %2024 = vmatpush1.bf16.msra.mxu0 0
    %2025 = vmatprep.subr.bf16.mxu0 0
    %2026 = vmatpush1.bf16.msra.mxu0 0
    %2027 = vmatprep.subr.bf16.mxu0 0
    %2028 = vmatpush1.bf16.msra.mxu0 0
    %2029 = vmatprep.subr.bf16.mxu0 0
    %2030 = vmatpush1.bf16.msra.mxu0 0
    %2031 = vmatprep.mubr.bf16.mxu0 0
    %2032 = vmatmul.mubr.bf16.gmra.mrb[0].mxu0 %v1344
    %v2033 = vpop.f32.mrb[0].mxu0
    %v2034 = vadd.f32 0.0, %v2033
    %v2035 = vpop.f32.mrb[0].mxu0
    %v2036 = vpop.f32.mrb[0].mxu0
    %v2037 = vadd.f32 0.0, %v2036
    %v2038 = vpop.f32.mrb[0].mxu0
    %2039 = vmatprep.mubr.bf16.mxu0 0
    %2040 = vmatmul.mubr.bf16.gmra.mrb[0].mxu0 %v1347
    %v2041 = vpop.f32.mrb[0].mxu0
    %v2042 = vadd.f32 0.0, %v2041
    %v2043 = vpop.f32.mrb[0].mxu0
    %v2044 = vpop.f32.mrb[0].mxu0
    %v2045 = vadd.f32 0.0, %v2044
    %v2046 = vpop.f32.mrb[0].mxu0
    %2047 = vmatprep.mubr.bf16.mxu0 0
    %2048 = vmatmul.mubr.bf16.gmra.mrb[0].mxu0 %v1350
    %v2049 = vpop.f32.mrb[0].mxu0
    %v2050 = vadd.f32 0.0, %v2049
    %v2051 = vpop.f32.mrb[0].mxu0
    %v2052 = vpop.f32.mrb[0].mxu0
    %v2053 = vadd.f32 0.0, %v2052
    %v2054 = vpop.f32.mrb[0].mxu0
    %2055 = vmatprep.mubr.bf16.mxu0 0
    %2056 = vmatmul.mubr.bf16.gmra.mrb[0].mxu0 %v1353
    %v2057 = vpop.f32.mrb[0].mxu0
    %v2058 = vadd.f32 0.0, %v2057
    %v2059 = vpop.f32.mrb[0].mxu0
    %v2060 = vpop.f32.mrb[0].mxu0
    %v2061 = vadd.f32 0.0, %v2060
    %v2062 = vpop.f32.mrb[0].mxu0
    %2063 = vdwg.mxu0
    %v2064 = vpack.c.bf16 %v2037, %v2034
    %v2065 = vpack.c.bf16 %v2045, %v2042
    %v2066 = vpack.c.bf16 %v2053, %v2050
    %v2067 = vpack.c.bf16 %v2061, %v2058
    %v2068 = vlaneseq
    %v2069 = vshrl.u32 %v2068, 7
    %v2070 = vsub.s32 2, %v2069
    %v2071 = vrot.slane %v1326, %v2070
    %2072 = vmatprep.subr.bf16.mxu0 0
    %2073 = vmatpush1.bf16.msra.mxu0 %v2064
    %2074 = vmatprep.subr.bf16.mxu0 0
    %2075 = vmatpush1.bf16.msra.mxu0 %v2065
    %2076 = vmatprep.subr.bf16.mxu0 0
    %2077 = vmatpush1.bf16.msra.mxu0 %v2066
    %2078 = vmatprep.subr.bf16.mxu0 0
    %2079 = vmatpush1.bf16.msra.mxu0 %v2067
    %2080 = vmatprep.subr.bf16.mxu0 0
    %2081 = vmatpush1.bf16.msra.mxu0 0
    %2082 = vmatprep.subr.bf16.mxu0 0
    %2083 = vmatpush1.bf16.msra.mxu0 0
    %2084 = vmatprep.subr.bf16.mxu0 0
    %2085 = vmatpush1.bf16.msra.mxu0 0
    %2086 = vmatprep.subr.bf16.mxu0 0
    %2087 = vmatpush1.bf16.msra.mxu0 0
    %2088 = vmatprep.subr.bf16.mxu0 0
    %2089 = vmatpush1.bf16.msra.mxu0 0
    %2090 = vmatprep.subr.bf16.mxu0 0
    %2091 = vmatpush1.bf16.msra.mxu0 0
    %2092 = vmatprep.subr.bf16.mxu0 0
    %2093 = vmatpush1.bf16.msra.mxu0 0
    %2094 = vmatprep.subr.bf16.mxu0 0
    %2095 = vmatpush1.bf16.msra.mxu0 0
    %2096 = vmatprep.subr.bf16.mxu0 0
    %2097 = vmatpush1.bf16.msra.mxu0 0
    %2098 = vmatprep.subr.bf16.mxu0 0
    %2099 = vmatpush1.bf16.msra.mxu0 0
    %2100 = vmatprep.subr.bf16.mxu0 0
    %2101 = vmatpush1.bf16.msra.mxu0 0
    %2102 = vmatprep.subr.bf16.mxu0 0
    %2103 = vmatpush1.bf16.msra.mxu0 0
    %2104 = vmatprep.mubr.bf16.mxu0 0
    %2105 = vmatmul.mubr.bf16.gmra.mrb[0].mxu0 %v996
    %v2106 = vpop.f32.mrb[0].mxu0
    %v2107 = vadd.f32 %v2071, %v2106
    %v2108 = vpop.f32.mrb[0].mxu0
    %v2109 = vpop.f32.mrb[0].mxu0
    %v2110 = vadd.f32 %v2071, %v2109
    %v2111 = vpop.f32.mrb[0].mxu0
    %2112 = vmatprep.mubr.bf16.mxu0 0
    %2113 = vmatmul.mubr.bf16.gmra.mrb[0].mxu0 %v999
    %v2114 = vpop.f32.mrb[0].mxu0
    %v2115 = vadd.f32 %v2071, %v2114
    %v2116 = vpop.f32.mrb[0].mxu0
    %v2117 = vpop.f32.mrb[0].mxu0
    %v2118 = vadd.f32 %v2071, %v2117
    %v2119 = vpop.f32.mrb[0].mxu0
    %2120 = vmatprep.mubr.bf16.mxu0 0
    %2121 = vmatmul.mubr.bf16.gmra.mrb[0].mxu0 %v1002
    %v2122 = vpop.f32.mrb[0].mxu0
    %v2123 = vadd.f32 %v2071, %v2122
    %v2124 = vpop.f32.mrb[0].mxu0
    %v2125 = vpop.f32.mrb[0].mxu0
    %v2126 = vadd.f32 %v2071, %v2125
    %v2127 = vpop.f32.mrb[0].mxu0
    %2128 = vmatprep.mubr.bf16.mxu0 0
    %2129 = vmatmul.mubr.bf16.gmra.mrb[0].mxu0 %v1005
    %v2130 = vpop.f32.mrb[0].mxu0
    %v2131 = vadd.f32 %v2071, %v2130
    %v2132 = vpop.f32.mrb[0].mxu0
    %v2133 = vpop.f32.mrb[0].mxu0
    %v2134 = vadd.f32 %v2071, %v2133
    %v2135 = vpop.f32.mrb[0].mxu0
    %2136 = vdwg.mxu0
    %v2137 = vmin.f32 %v2107, 0.0
    %v2138 = vmin.f32 %v2110, 0.0
    %v2139 = vmin.f32 %v2115, 0.0
    %v2140 = vmin.f32 %v2118, 0.0
    %v2141 = vmin.f32 %v2123, 0.0
    %v2142 = vmin.f32 %v2126, 0.0
    %v2143 = vmin.f32 %v2131, 0.0
    %v2144 = vmin.f32 %v2134, 0.0
    %v2145 = vmul.f32 %v2137, 1.442695
    %v2146 = vpow.pop %v2145
    %v2147 = vmul.f32 %v2138, 1.442695
    %v2148 = vpow.pop %v2147
    %v2149 = vmul.f32 %v2139, 1.442695
    %v2150 = vpow.pop %v2149
    %v2151 = vmul.f32 %v2140, 1.442695
    %v2152 = vpow.pop %v2151
    %v2153 = vmul.f32 %v2141, 1.442695
    %v2154 = vpow.pop %v2153
    %v2155 = vmul.f32 %v2142, 1.442695
    %v2156 = vpow.pop %v2155
    %v2157 = vmul.f32 %v2143, 1.442695
    %v2158 = vpow.pop %v2157
    %v2159 = vmul.f32 %v2144, 1.442695
    %v2160 = vpow.pop %v2159
    %v2161 = vsub.f32 %v2146, 1.0
    %v2162 = vsub.f32 %v2148, 1.0
    %v2163 = vsub.f32 %v2150, 1.0
    %v2164 = vsub.f32 %v2152, 1.0
    %v2165 = vsub.f32 %v2154, 1.0
    %v2166 = vsub.f32 %v2156, 1.0
    %v2167 = vsub.f32 %v2158, 1.0
    %v2168 = vsub.f32 %v2160, 1.0
    %vm2169 = vcmp.gt.f32.partialorder %v2107, 0.0
    %vm2170 = vcmp.gt.f32.partialorder %v2110, 0.0
    %vm2171 = vcmp.gt.f32.partialorder %v2115, 0.0
    %vm2172 = vcmp.gt.f32.partialorder %v2118, 0.0
    %vm2173 = vcmp.gt.f32.partialorder %v2123, 0.0
    %vm2174 = vcmp.gt.f32.partialorder %v2126, 0.0
    %vm2175 = vcmp.gt.f32.partialorder %v2131, 0.0
    %vm2176 = vcmp.gt.f32.partialorder %v2134, 0.0
    %v2177 = vsel %vm2169, %v2107, %v2161
    %v2178 = vsel %vm2170, %v2110, %v2162
    %v2179 = vsel %vm2171, %v2115, %v2163
    %v2180 = vsel %vm2172, %v2118, %v2164
    %v2181 = vsel %vm2173, %v2123, %v2165
    %v2182 = vsel %vm2174, %v2126, %v2166
    %v2183 = vsel %vm2175, %v2131, %v2167
    %v2184 = vsel %vm2176, %v2134, %v2168
    %v2185 = vpack.c.bf16 %v2178, %v2177
    %v2186 = vpack.c.bf16 %v2180, %v2179
    %v2187 = vpack.c.bf16 %v2182, %v2181
    %v2188 = vpack.c.bf16 %v2184, %v2183
    %v2190 = vsel %vm154, %v2185, 0
    %v2193 = vsel %vm154, %v2186, 0
    %v2196 = vsel %vm154, %v2187, 0
    %v2199 = vsel %vm154, %v2188, 0
    %2201 = vmatprep.subr.bf16.mxu0 0
    %2202 = vmatpush1.bf16.msra.mxu0 %v1557
    %2203 = vmatprep.subr.bf16.mxu0 0
    %2204 = vmatpush1.bf16.msra.mxu0 %v1558
    %2205 = vmatprep.subr.bf16.mxu0 0
    %2206 = vmatpush1.bf16.msra.mxu0 0
    %2207 = vmatprep.subr.bf16.mxu0 0
    %2208 = vmatpush1.bf16.msra.mxu0 0
    %2209 = vmatprep.subr.bf16.mxu0 0
    %2210 = vmatpush1.bf16.msra.mxu0 0
    %2211 = vmatprep.subr.bf16.mxu0 0
    %2212 = vmatpush1.bf16.msra.mxu0 0
    %2213 = vmatprep.subr.bf16.mxu0 0
    %2214 = vmatpush1.bf16.msra.mxu0 0
    %2215 = vmatprep.subr.bf16.mxu0 0
    %2216 = vmatpush1.bf16.msra.mxu0 0
    %2217 = vmatprep.subr.bf16.mxu0 0
    %2218 = vmatpush1.bf16.msra.mxu0 0
    %2219 = vmatprep.subr.bf16.mxu0 0
    %2220 = vmatpush1.bf16.msra.mxu0 0
    %2221 = vmatprep.subr.bf16.mxu0 0
    %2222 = vmatpush1.bf16.msra.mxu0 0
    %2223 = vmatprep.subr.bf16.mxu0 0
    %2224 = vmatpush1.bf16.msra.mxu0 0
    %2225 = vmatprep.subr.bf16.mxu0 0
    %2226 = vmatpush1.bf16.msra.mxu0 0
    %2227 = vmatprep.subr.bf16.mxu0 0
    %2228 = vmatpush1.bf16.msra.mxu0 0
    %2229 = vmatprep.subr.bf16.mxu0 0
    %2230 = vmatpush1.bf16.msra.mxu0 0
    %2231 = vmatprep.subr.bf16.mxu0 0
    %2232 = vmatpush1.bf16.msra.mxu0 0
    %2233 = vmatprep.mubr.bf16.mxu0 0
    %2234 = vmatmul.mubr.bf16.gmra.mrb[0].mxu0 %v2190
    %v2235 = vpop.f32.mrb[0].mxu0
    %v2236 = vadd.f32 %v1548, %v2235
    %v2237 = vpop.f32.mrb[0].mxu0
    %v2238 = vpop.f32.mrb[0].mxu0
    %v2239 = vadd.f32 %v1548, %v2238
    %v2240 = vpop.f32.mrb[0].mxu0
    %2241 = vmatprep.mubr.bf16.mxu0 0
    %2242 = vmatmul.mubr.bf16.gmra.mrb[0].mxu0 %v2193
    %v2243 = vpop.f32.mrb[0].mxu0
    %v2244 = vadd.f32 %v1548, %v2243
    %v2245 = vpop.f32.mrb[0].mxu0
    %v2246 = vpop.f32.mrb[0].mxu0
    %v2247 = vadd.f32 %v1548, %v2246
    %v2248 = vpop.f32.mrb[0].mxu0
    %2249 = vmatprep.mubr.bf16.mxu0 0
    %2250 = vmatmul.mubr.bf16.gmra.mrb[0].mxu0 %v2196
    %v2251 = vpop.f32.mrb[0].mxu0
    %v2252 = vadd.f32 %v1548, %v2251
    %v2253 = vpop.f32.mrb[0].mxu0
    %v2254 = vpop.f32.mrb[0].mxu0
    %v2255 = vadd.f32 %v1548, %v2254
    %v2256 = vpop.f32.mrb[0].mxu0
    %2257 = vmatprep.mubr.bf16.mxu0 0
    %2258 = vmatmul.mubr.bf16.gmra.mrb[0].mxu0 %v2199
    %v2259 = vpop.f32.mrb[0].mxu0
    %v2260 = vadd.f32 %v1548, %v2259
    %v2261 = vpop.f32.mrb[0].mxu0
    %v2262 = vpop.f32.mrb[0].mxu0
    %v2263 = vadd.f32 %v1548, %v2262
    %v2264 = vpop.f32.mrb[0].mxu0
    %2265 = vdwg.mxu0
    %v2266 = vtanh.pop %v2236
    %v2267 = vtanh.pop %v2239
    %v2268 = vtanh.pop %v2244
    %v2269 = vtanh.pop %v2247
    %v2270 = vtanh.pop %v2252
    %v2271 = vtanh.pop %v2255
    %v2272 = vtanh.pop %v2260
    %v2273 = vtanh.pop %v2263
    %v2274 = vsel %vm154, %v2266, 0.0
    %v2275 = vsel %vm154, %v2267, 0.0
    %v2276 = vadd.f32 %v2274, %v2275
    %v2277 = vsel %vm154, %v2268, 0.0
    %v2278 = vadd.f32 %v2276, %v2277
    %v2279 = vsel %vm154, %v2269, 0.0
    %v2280 = vadd.f32 %v2278, %v2279
    %v2281 = vsel %vm154, %v2270, 0.0
    %v2282 = vadd.f32 %v2280, %v2281
    %v2283 = vsel %vm154, %v2271, 0.0
    %v2284 = vadd.f32 %v2282, %v2283
    %v2285 = vsel %vm154, %v2272, 0.0
    %v2286 = vadd.f32 %v2284, %v2285
    %v2287 = vsel %vm154, %v2273, 0.0
    %v2288 = vadd.f32 %v2286, %v2287
    %v2289 = vrot.slane %v2288, 4
    %v2290 = vadd.f32 %v2288, %v2289
    %v2291 = vrot.slane %v2290, 2
    %v2292 = vadd.f32 %v2290, %v2291
    %v2293 = vrot.slane %v2292, 1
    %v2294 = vadd.f32 %v2292, %v2293
    %v2295 = vmul.f32 %v2294, 0.015625
    %v2296 = vsel %vm1231, %v1667, %v1981
    %v2297 = vsel %vm1233, %v2296, %v2295
    %v2298 = vlaneseq
    %v2299 = vshrl.u32 %v2298, 7
    %v2300 = vsub.s32 4, %v2299
    %v2301 = vrot.slane %v1326, %v2300
    %v2302 = vmul.f32 %v2297, %v2301
    %v2303 = vsel %vm1240, %v2302, 0.0
    %2304 = vadd.xlane.f32.xlu0 %v2303
    %v2305 = vpop.xlane.xlu0 %2304
    %v2306 = vsel %vm1244, %v2305, -inf
    %v2307 = vrot.slane %v2306, 4
    %v2308 = vmax.f32 %v2306, %v2307
    %v2309 = vrot.slane %v2308, 2
    %v2310 = vmax.f32 %v2308, %v2309
    %v2311 = vrot.slane %v2310, 1
    %v2312 = vmax.f32 %v2310, %v2311
    %v2313 = vsub.f32 %v2305, %v2312
    %v2314 = vmul.f32 %v2313, 1.442695
    %v2315 = vpow.pop %v2314
    %v2316 = vsel %vm1244, %v2315, 0.0
    %v2317 = vrot.slane %v2316, 4
    %v2318 = vadd.f32 %v2316, %v2317
    %v2319 = vrot.slane %v2318, 2
    %v2320 = vadd.f32 %v2318, %v2319
    %v2321 = vrot.slane %v2320, 1
    %v2322 = vadd.f32 %v2320, %v2321
    %v2323 = vrcp.pop %v2322
    %v2324 = vmul.f32 %v2315, %v2323
    %v2325 = vlaneseq
    %v2326 = vshrl.u32 %v2325, 7
    %v2327 = vsub.s32 0, %v2326
    %v2328 = vrot.slane %v2324, %v2327
    %v2329 = vmul.f32 %v2328, %v1533
    %v2330 = vmul.f32 %v2328, %v1534
    %v2331 = vmul.f32 %v2328, %v1535
    %v2332 = vmul.f32 %v2328, %v1536
    %v2333 = vmul.f32 %v2328, %v1537
    %v2334 = vmul.f32 %v2328, %v1538
    %v2335 = vmul.f32 %v2328, %v1539
    %v2336 = vmul.f32 %v2328, %v1540
    %v2337 = vlaneseq
    %v2338 = vshrl.u32 %v2337, 7
    %v2339 = vsub.s32 1, %v2338
    %v2340 = vrot.slane %v2324, %v2339
    %v2341 = vmul.f32 %v2340, %v1863
    %v2342 = vmul.f32 %v2340, %v1864
    %v2343 = vmul.f32 %v2340, %v1865
    %v2344 = vmul.f32 %v2340, %v1866
    %v2345 = vmul.f32 %v2340, %v1867
    %v2346 = vmul.f32 %v2340, %v1868
    %v2347 = vmul.f32 %v2340, %v1869
    %v2348 = vmul.f32 %v2340, %v1870
    %v2349 = vadd.f32 %v2329, %v2341
    %v2350 = vadd.f32 %v2330, %v2342
    %v2351 = vadd.f32 %v2331, %v2343
    %v2352 = vadd.f32 %v2332, %v2344
    %v2353 = vadd.f32 %v2333, %v2345
    %v2354 = vadd.f32 %v2334, %v2346
    %v2355 = vadd.f32 %v2335, %v2347
    %v2356 = vadd.f32 %v2336, %v2348
    %v2357 = vlaneseq
    %v2358 = vshrl.u32 %v2357, 7
    %v2359 = vsub.s32 2, %v2358
    %v2360 = vrot.slane %v2324, %v2359
    %v2361 = vmul.f32 %v2360, %v2177
    %v2362 = vmul.f32 %v2360, %v2178
    %v2363 = vmul.f32 %v2360, %v2179
    %v2364 = vmul.f32 %v2360, %v2180
    %v2365 = vmul.f32 %v2360, %v2181
    %v2366 = vmul.f32 %v2360, %v2182
    %v2367 = vmul.f32 %v2360, %v2183
    %v2368 = vmul.f32 %v2360, %v2184
    %v2369 = vadd.f32 %v2349, %v2361
    %v2370 = vadd.f32 %v2350, %v2362
    %v2371 = vadd.f32 %v2351, %v2363
    %v2372 = vadd.f32 %v2352, %v2364
    %v2373 = vadd.f32 %v2353, %v2365
    %v2374 = vadd.f32 %v2354, %v2366
    %v2375 = vadd.f32 %v2355, %v2367
    %v2376 = vadd.f32 %v2356, %v2368
    %v2377 = vpack.c.bf16 %v2370, %v2369
    %v2378 = vpack.c.bf16 %v2372, %v2371
    %v2379 = vpack.c.bf16 %v2374, %v2373
    %v2380 = vpack.c.bf16 %v2376, %v2375
    %v2381 = vld [vmem:[#allocation8] sm:$0xff]
    %v2382 = vld [vmem:[#allocation8 + $0x8] sm:$0xff]
    %v2383 = vld [vmem:[#allocation8 + $0x10] sm:$0xff]
    %v2384 = vld [vmem:[#allocation8 + $0x18] sm:$0xff]
    %v2385 = vld [vmem:[%s9] ss:$4 sm:$0x3]
    %v2387 = vlaneseq
    %v2388 = vshrl.u32 %v2387, 7
    %v2389 = vsub.s32 0, %v2388
    %v2390 = vrot.slane %v2385, %v2389
    %v2391 = vlaneseq
    %v2392 = vshrl.u32 %v2391, 7
    %v2393 = vsub.s32 1, %v2392
    %v2394 = vrot.slane %v2385, %v2393
    %v2401 = vunpack.c.l.b16 %v2381
    %v2402 = vunpack.c.h.b16 %v2381
    %v2403 = vunpack.c.l.b16 %v2382
    %v2404 = vunpack.c.h.b16 %v2382
    %v2405 = vunpack.c.l.b16 %v2383
    %v2406 = vunpack.c.h.b16 %v2383
    %v2407 = vunpack.c.l.b16 %v2384
    %v2408 = vunpack.c.h.b16 %v2384
    %v2409 = vpack.c.b16 %v2403, %v2401
    %v2410 = vpack.c.b16 %v2404, %v2402
    %v2411 = vpack.c.b16 %v2407, %v2405
    %v2412 = vpack.c.b16 %v2408, %v2406
    %v2418 = vsel %vm154, %v2377, 0
    %v2421 = vsel %vm154, %v2378, 0
    %v2424 = vsel %vm154, %v2379, 0
    %v2427 = vsel %vm154, %v2380, 0
    %2429 = vmatprep.subr.bf16.mxu0 %v2410
    %2430 = vmatpush1.bf16.msra.mxu0 %v2409
    %2431 = vmatprep.subr.bf16.mxu0 %v2412
    %2432 = vmatpush1.bf16.msra.mxu0 %v2411
    %2433 = vmatprep.subr.bf16.mxu0 0
    %2434 = vmatpush1.bf16.msra.mxu0 0
    %2435 = vmatprep.subr.bf16.mxu0 0
    %2436 = vmatpush1.bf16.msra.mxu0 0
    %2437 = vmatprep.subr.bf16.mxu0 0
    %2438 = vmatpush1.bf16.msra.mxu0 0
    %2439 = vmatprep.subr.bf16.mxu0 0
    %2440 = vmatpush1.bf16.msra.mxu0 0
    %2441 = vmatprep.subr.bf16.mxu0 0
    %2442 = vmatpush1.bf16.msra.mxu0 0
    %2443 = vmatprep.subr.bf16.mxu0 0
    %2444 = vmatpush1.bf16.msra.mxu0 0
    %2445 = vmatprep.subr.bf16.mxu0 0
    %2446 = vmatpush1.bf16.msra.mxu0 0
    %2447 = vmatprep.subr.bf16.mxu0 0
    %2448 = vmatpush1.bf16.msra.mxu0 0
    %2449 = vmatprep.subr.bf16.mxu0 0
    %2450 = vmatpush1.bf16.msra.mxu0 0
    %2451 = vmatprep.subr.bf16.mxu0 0
    %2452 = vmatpush1.bf16.msra.mxu0 0
    %2453 = vmatprep.subr.bf16.mxu0 0
    %2454 = vmatpush1.bf16.msra.mxu0 0
    %2455 = vmatprep.subr.bf16.mxu0 0
    %2456 = vmatpush1.bf16.msra.mxu0 0
    %2457 = vmatprep.subr.bf16.mxu0 0
    %2458 = vmatpush1.bf16.msra.mxu0 0
    %2459 = vmatprep.subr.bf16.mxu0 0
    %2460 = vmatpush1.bf16.msra.mxu0 0
    %2461 = vmatprep.mubr.bf16.mxu0 0
    %2462 = vmatmul.mubr.bf16.gmra.mrb[0].mxu0 %v2418
    %v2463 = vpop.f32.mrb[0].mxu0
    %v2464 = vadd.f32 %v2390, %v2463
    %v2465 = vpop.f32.mrb[0].mxu0
    %v2466 = vadd.f32 %v2394, %v2465
    %v2467 = vpop.f32.mrb[0].mxu0
    %v2468 = vadd.f32 %v2390, %v2467
    %v2469 = vpop.f32.mrb[0].mxu0
    %v2470 = vadd.f32 %v2394, %v2469
    %2471 = vmatprep.mubr.bf16.mxu0 0
    %2472 = vmatmul.mubr.bf16.gmra.mrb[0].mxu0 %v2421
    %v2473 = vpop.f32.mrb[0].mxu0
    %v2474 = vadd.f32 %v2390, %v2473
    %v2475 = vpop.f32.mrb[0].mxu0
    %v2476 = vadd.f32 %v2394, %v2475
    %v2477 = vpop.f32.mrb[0].mxu0
    %v2478 = vadd.f32 %v2390, %v2477
    %v2479 = vpop.f32.mrb[0].mxu0
    %v2480 = vadd.f32 %v2394, %v2479
    %2481 = vmatprep.mubr.bf16.mxu0 0
    %2482 = vmatmul.mubr.bf16.gmra.mrb[0].mxu0 %v2424
    %v2483 = vpop.f32.mrb[0].mxu0
    %v2484 = vadd.f32 %v2390, %v2483
    %v2485 = vpop.f32.mrb[0].mxu0
    %v2486 = vadd.f32 %v2394, %v2485
    %v2487 = vpop.f32.mrb[0].mxu0
    %v2488 = vadd.f32 %v2390, %v2487
    %v2489 = vpop.f32.mrb[0].mxu0
    %v2490 = vadd.f32 %v2394, %v2489
    %2491 = vmatprep.mubr.bf16.mxu0 0
    %2492 = vmatmul.mubr.bf16.gmra.mrb[0].mxu0 %v2427
    %v2493 = vpop.f32.mrb[0].mxu0
    %v2494 = vadd.f32 %v2390, %v2493
    %v2495 = vpop.f32.mrb[0].mxu0
    %v2496 = vadd.f32 %v2394, %v2495
    %v2497 = vpop.f32.mrb[0].mxu0
    %v2498 = vadd.f32 %v2390, %v2497
    %v2499 = vpop.f32.mrb[0].mxu0
    %v2500 = vadd.f32 %v2394, %v2499
    %2501 = vdwg.mxu0
    %v2502 = vmax.f32 %v2464, 0.0
    %v2503 = vmax.f32 %v2466, 0.0
    %v2504 = vmax.f32 %v2468, 0.0
    %v2505 = vmax.f32 %v2470, 0.0
    %v2506 = vmax.f32 %v2474, 0.0
    %v2507 = vmax.f32 %v2476, 0.0
    %v2508 = vmax.f32 %v2478, 0.0
    %v2509 = vmax.f32 %v2480, 0.0
    %v2510 = vmax.f32 %v2484, 0.0
    %v2511 = vmax.f32 %v2486, 0.0
    %v2512 = vmax.f32 %v2488, 0.0
    %v2513 = vmax.f32 %v2490, 0.0
    %v2514 = vmax.f32 %v2494, 0.0
    %v2515 = vmax.f32 %v2496, 0.0
    %v2516 = vmax.f32 %v2498, 0.0
    %v2517 = vmax.f32 %v2500, 0.0
    %v2518 = vpack.c.bf16 %v2504, %v2502
    %v2519 = vpack.c.bf16 %v2505, %v2503
    %v2520 = vpack.c.bf16 %v2508, %v2506
    %v2521 = vpack.c.bf16 %v2509, %v2507
    %v2522 = vpack.c.bf16 %v2512, %v2510
    %v2523 = vpack.c.bf16 %v2513, %v2511
    %v2524 = vpack.c.bf16 %v2516, %v2514
    %v2525 = vpack.c.bf16 %v2517, %v2515
    %v2526 = vld [vmem:[#allocation10] sm:$0xf]
    %v2527 = vld [vmem:[#allocation10 + $0x4] sm:$0xf]
    %v2528 = vld [vmem:[#allocation10 + $0x8] sm:$0xf]
    %v2529 = vld [vmem:[#allocation10 + $0xc] sm:$0xf]
    %v2530 = vld [vmem:[#allocation10 + $0x10] sm:$0xf]
    %v2531 = vld [vmem:[#allocation10 + $0x14] sm:$0xf]
    %v2532 = vld [vmem:[#allocation10 + $0x18] sm:$0xf]
    %v2533 = vld [vmem:[#allocation10 + $0x1c] sm:$0xf]
    %v2534 = vld [vmem:[#allocation10 + $0x20] sm:$0xf]
    %v2535 = vld [vmem:[#allocation10 + $0x24] sm:$0xf]
    %v2536 = vld [vmem:[#allocation10 + $0x28] sm:$0xf]
    %v2537 = vld [vmem:[#allocation10 + $0x2c] sm:$0xf]
    %v2538 = vld [vmem:[#allocation10 + $0x30] sm:$0xf]
    %v2539 = vld [vmem:[#allocation10 + $0x34] sm:$0xf]
    %v2540 = vld [vmem:[#allocation10 + $0x38] sm:$0xf]
    %v2541 = vld [vmem:[#allocation10 + $0x3c] sm:$0xf]
    %v2542 = vld [vmem:[#allocation10 + $0x40] sm:$0xf]
    %v2543 = vld [vmem:[#allocation10 + $0x44] sm:$0xf]
    %v2544 = vld [vmem:[#allocation10 + $0x48] sm:$0xf]
    %v2545 = vld [vmem:[#allocation10 + $0x4c] sm:$0xf]
    %v2546 = vld [vmem:[#allocation10 + $0x50] sm:$0xf]
    %v2547 = vld [vmem:[#allocation10 + $0x54] sm:$0xf]
    %v2548 = vld [vmem:[#allocation10 + $0x58] sm:$0xf]
    %v2549 = vld [vmem:[#allocation10 + $0x5c] sm:$0xf]
    %v2550 = vld [vmem:[#allocation10 + $0x60] sm:$0xf]
    %v2551 = vld [vmem:[#allocation10 + $0x64] sm:$0xf]
    %v2552 = vld [vmem:[#allocation10 + $0x68] sm:$0xf]
    %v2553 = vld [vmem:[#allocation10 + $0x6c] sm:$0xf]
    %v2554 = vld [vmem:[#allocation10 + $0x70] sm:$0xf]
    %v2555 = vld [vmem:[#allocation10 + $0x74] sm:$0xf]
    %v2556 = vld [vmem:[#allocation10 + $0x78] sm:$0xf]
    %v2557 = vld [vmem:[#allocation10 + $0x7c] sm:$0xf]
    %v2558 = vld [vmem:[%s9 + $0x1] sm:$0x1]
    %v2559 = vlaneseq
    %v2560 = vshrl.u32 %v2559, 7
    %v2561 = vsub.s32 0, %v2560
    %v2562 = vrot.slane %v2558, %v2561
    %v2595 = vunpack.c.l.b16 %v2526
    %v2596 = vunpack.c.l.b16 %v2527
    %v2597 = vunpack.c.l.b16 %v2528
    %v2598 = vunpack.c.l.b16 %v2529
    %v2599 = vunpack.c.l.b16 %v2530
    %v2600 = vunpack.c.l.b16 %v2531
    %v2601 = vunpack.c.l.b16 %v2532
    %v2602 = vunpack.c.l.b16 %v2533
    %v2603 = vunpack.c.l.b16 %v2534
    %v2604 = vunpack.c.l.b16 %v2535
    %v2605 = vunpack.c.l.b16 %v2536
    %v2606 = vunpack.c.l.b16 %v2537
    %v2607 = vunpack.c.l.b16 %v2538
    %v2608 = vunpack.c.l.b16 %v2539
    %v2609 = vunpack.c.l.b16 %v2540
    %v2610 = vunpack.c.l.b16 %v2541
    %v2611 = vunpack.c.l.b16 %v2542
    %v2612 = vunpack.c.l.b16 %v2543
    %v2613 = vunpack.c.l.b16 %v2544
    %v2614 = vunpack.c.l.b16 %v2545
    %v2615 = vunpack.c.l.b16 %v2546
    %v2616 = vunpack.c.l.b16 %v2547
    %v2617 = vunpack.c.l.b16 %v2548
    %v2618 = vunpack.c.l.b16 %v2549
    %v2619 = vunpack.c.l.b16 %v2550
    %v2620 = vunpack.c.l.b16 %v2551
    %v2621 = vunpack.c.l.b16 %v2552
    %v2622 = vunpack.c.l.b16 %v2553
    %v2623 = vunpack.c.l.b16 %v2554
    %v2624 = vunpack.c.l.b16 %v2555
    %v2625 = vunpack.c.l.b16 %v2556
    %v2626 = vunpack.c.l.b16 %v2557
    %v2627 = vpack.c.b16 %v2596, %v2595
    %v2628 = vpack.c.b16 %v2598, %v2597
    %v2629 = vpack.c.b16 %v2600, %v2599
    %v2630 = vpack.c.b16 %v2602, %v2601
    %v2631 = vpack.c.b16 %v2604, %v2603
    %v2632 = vpack.c.b16 %v2606, %v2605
    %v2633 = vpack.c.b16 %v2608, %v2607
    %v2634 = vpack.c.b16 %v2610, %v2609
    %v2635 = vpack.c.b16 %v2612, %v2611
    %v2636 = vpack.c.b16 %v2614, %v2613
    %v2637 = vpack.c.b16 %v2616, %v2615
    %v2638 = vpack.c.b16 %v2618, %v2617
    %v2639 = vpack.c.b16 %v2620, %v2619
    %v2640 = vpack.c.b16 %v2622, %v2621
    %v2641 = vpack.c.b16 %v2624, %v2623
    %v2642 = vpack.c.b16 %v2626, %v2625
    %2659 = vmatprep.subr.bf16.mxu0 0
    %2660 = vmatpush1.bf16.msra.mxu0 %v2627
    %2661 = vmatprep.subr.bf16.mxu0 0
    %2662 = vmatpush1.bf16.msra.mxu0 %v2628
    %2663 = vmatprep.subr.bf16.mxu0 0
    %2664 = vmatpush1.bf16.msra.mxu0 %v2629
    %2665 = vmatprep.subr.bf16.mxu0 0
    %2666 = vmatpush1.bf16.msra.mxu0 %v2630
    %2667 = vmatprep.subr.bf16.mxu0 0
    %2668 = vmatpush1.bf16.msra.mxu0 %v2631
    %2669 = vmatprep.subr.bf16.mxu0 0
    %2670 = vmatpush1.bf16.msra.mxu0 %v2632
    %2671 = vmatprep.subr.bf16.mxu0 0
    %2672 = vmatpush1.bf16.msra.mxu0 %v2633
    %2673 = vmatprep.subr.bf16.mxu0 0
    %2674 = vmatpush1.bf16.msra.mxu0 %v2634
    %2675 = vmatprep.subr.bf16.mxu0 0
    %2676 = vmatpush1.bf16.msra.mxu0 %v2635
    %2677 = vmatprep.subr.bf16.mxu0 0
    %2678 = vmatpush1.bf16.msra.mxu0 %v2636
    %2679 = vmatprep.subr.bf16.mxu0 0
    %2680 = vmatpush1.bf16.msra.mxu0 %v2637
    %2681 = vmatprep.subr.bf16.mxu0 0
    %2682 = vmatpush1.bf16.msra.mxu0 %v2638
    %2683 = vmatprep.subr.bf16.mxu0 0
    %2684 = vmatpush1.bf16.msra.mxu0 %v2639
    %2685 = vmatprep.subr.bf16.mxu0 0
    %2686 = vmatpush1.bf16.msra.mxu0 %v2640
    %2687 = vmatprep.subr.bf16.mxu0 0
    %2688 = vmatpush1.bf16.msra.mxu0 %v2641
    %2689 = vmatprep.subr.bf16.mxu0 0
    %2690 = vmatpush1.bf16.msra.mxu0 %v2642
    %2691 = vmatprep.mubr.bf16.mxu0 %v2519
    %2692 = vmatmul.mubr.bf16.gmra.mrb[0].mxu0 %v2518
    %v2693 = vpop.f32.mrb[0].mxu0
    %v2694 = vadd.f32 %v2562, %v2693
    %v2695 = vpop.f32.mrb[0].mxu0
    %v2696 = vpop.f32.mrb[0].mxu0
    %v2697 = vadd.f32 %v2562, %v2696
    %v2698 = vpop.f32.mrb[0].mxu0
    %2699 = vmatprep.mubr.bf16.mxu0 %v2521
    %2700 = vmatmul.mubr.bf16.gmra.mrb[0].mxu0 %v2520
    %v2701 = vpop.f32.mrb[0].mxu0
    %v2702 = vadd.f32 %v2562, %v2701
    %v2703 = vpop.f32.mrb[0].mxu0
    %v2704 = vpop.f32.mrb[0].mxu0
    %v2705 = vadd.f32 %v2562, %v2704
    %v2706 = vpop.f32.mrb[0].mxu0
    %2707 = vmatprep.mubr.bf16.mxu0 %v2523
    %2708 = vmatmul.mubr.bf16.gmra.mrb[0].mxu0 %v2522
    %v2709 = vpop.f32.mrb[0].mxu0
    %v2710 = vadd.f32 %v2562, %v2709
    %v2711 = vpop.f32.mrb[0].mxu0
    %v2712 = vpop.f32.mrb[0].mxu0
    %v2713 = vadd.f32 %v2562, %v2712
    %v2714 = vpop.f32.mrb[0].mxu0
    %2715 = vmatprep.mubr.bf16.mxu0 %v2525
    %2716 = vmatmul.mubr.bf16.gmra.mrb[0].mxu0 %v2524
    %v2717 = vpop.f32.mrb[0].mxu0
    %v2718 = vadd.f32 %v2562, %v2717
    %v2719 = vpop.f32.mrb[0].mxu0
    %v2720 = vpop.f32.mrb[0].mxu0
    %v2721 = vadd.f32 %v2562, %v2720
    %v2722 = vpop.f32.mrb[0].mxu0
    %2723 = vdwg.mxu0
    %v2724 = vmax.f32 %v2694, 0.0
    %v2725 = vmax.f32 %v2697, 0.0
    %v2726 = vmax.f32 %v2702, 0.0
    %v2727 = vmax.f32 %v2705, 0.0
    %v2728 = vmax.f32 %v2710, 0.0
    %v2729 = vmax.f32 %v2713, 0.0
    %v2730 = vmax.f32 %v2718, 0.0
    %v2731 = vmax.f32 %v2721, 0.0
    %v2732 = vpack.c.bf16 %v2725, %v2724
    %v2733 = vpack.c.bf16 %v2727, %v2726
    %v2734 = vpack.c.bf16 %v2729, %v2728
    %v2735 = vpack.c.bf16 %v2731, %v2730
    %v2736 = vld [vmem:[%s8] sm:$0xf]
    %v2737 = vld [vmem:[%s8 + $0x4] sm:$0xf]
    %v2738 = vld [vmem:[%s8 + $0x8] sm:$0xf]
    %v2739 = vld [vmem:[%s8 + $0xc] sm:$0xf]
    %v2740 = vld [vmem:[%s8 + $0x10] sm:$0xf]
    %v2741 = vld [vmem:[%s8 + $0x14] sm:$0xf]
    %v2742 = vld [vmem:[%s8 + $0x18] sm:$0xf]
    %v2743 = vld [vmem:[%s8 + $0x1c] sm:$0xf]
    %v2744 = vld [vmem:[%s8 + $0x20] sm:$0xf]
    %v2745 = vld [vmem:[%s8 + $0x24] sm:$0xf]
    %v2746 = vld [vmem:[%s8 + $0x28] sm:$0xf]
    %v2747 = vld [vmem:[%s8 + $0x2c] sm:$0xf]
    %v2748 = vld [vmem:[%s8 + $0x30] sm:$0xf]
    %v2749 = vld [vmem:[%s8 + $0x34] sm:$0xf]
    %v2750 = vld [vmem:[%s8 + $0x38] sm:$0xf]
    %v2751 = vld [vmem:[%s8 + $0x3c] sm:$0xf]
    %v2752 = vld [vmem:[%s9 + $0x2] sm:$0x1]
    %v2753 = vlaneseq
    %v2754 = vshrl.u32 %v2753, 7
    %v2755 = vsub.s32 0, %v2754
    %v2756 = vrot.slane %v2752, %v2755
    %v2773 = vunpack.c.l.b16 %v2736
    %v2774 = vunpack.c.l.b16 %v2737
    %v2775 = vunpack.c.l.b16 %v2738
    %v2776 = vunpack.c.l.b16 %v2739
    %v2777 = vunpack.c.l.b16 %v2740
    %v2778 = vunpack.c.l.b16 %v2741
    %v2779 = vunpack.c.l.b16 %v2742
    %v2780 = vunpack.c.l.b16 %v2743
    %v2781 = vunpack.c.l.b16 %v2744
    %v2782 = vunpack.c.l.b16 %v2745
    %v2783 = vunpack.c.l.b16 %v2746
    %v2784 = vunpack.c.l.b16 %v2747
    %v2785 = vunpack.c.l.b16 %v2748
    %v2786 = vunpack.c.l.b16 %v2749
    %v2787 = vunpack.c.l.b16 %v2750
    %v2788 = vunpack.c.l.b16 %v2751
    %v2789 = vpack.c.b16 %v2774, %v2773
    %v2790 = vpack.c.b16 %v2776, %v2775
    %v2791 = vpack.c.b16 %v2778, %v2777
    %v2792 = vpack.c.b16 %v2780, %v2779
    %v2793 = vpack.c.b16 %v2782, %v2781
    %v2794 = vpack.c.b16 %v2784, %v2783
    %v2795 = vpack.c.b16 %v2786, %v2785
    %v2796 = vpack.c.b16 %v2788, %v2787
    %2805 = vmatprep.subr.bf16.mxu0 0
    %2806 = vmatpush1.bf16.msra.mxu0 %v2789
    %2807 = vmatprep.subr.bf16.mxu0 0
    %2808 = vmatpush1.bf16.msra.mxu0 %v2790
    %2809 = vmatprep.subr.bf16.mxu0 0
    %2810 = vmatpush1.bf16.msra.mxu0 %v2791
    %2811 = vmatprep.subr.bf16.mxu0 0
    %2812 = vmatpush1.bf16.msra.mxu0 %v2792
    %2813 = vmatprep.subr.bf16.mxu0 0
    %2814 = vmatpush1.bf16.msra.mxu0 %v2793
    %2815 = vmatprep.subr.bf16.mxu0 0
    %2816 = vmatpush1.bf16.msra.mxu0 %v2794
    %2817 = vmatprep.subr.bf16.mxu0 0
    %2818 = vmatpush1.bf16.msra.mxu0 %v2795
    %2819 = vmatprep.subr.bf16.mxu0 0
    %2820 = vmatpush1.bf16.msra.mxu0 %v2796
    %2821 = vmatprep.subr.bf16.mxu0 0
    %2822 = vmatpush1.bf16.msra.mxu0 0
    %2823 = vmatprep.subr.bf16.mxu0 0
    %2824 = vmatpush1.bf16.msra.mxu0 0
    %2825 = vmatprep.subr.bf16.mxu0 0
    %2826 = vmatpush1.bf16.msra.mxu0 0
    %2827 = vmatprep.subr.bf16.mxu0 0
    %2828 = vmatpush1.bf16.msra.mxu0 0
    %2829 = vmatprep.subr.bf16.mxu0 0
    %2830 = vmatpush1.bf16.msra.mxu0 0
    %2831 = vmatprep.subr.bf16.mxu0 0
    %2832 = vmatpush1.bf16.msra.mxu0 0
    %2833 = vmatprep.subr.bf16.mxu0 0
    %2834 = vmatpush1.bf16.msra.mxu0 0
    %2835 = vmatprep.subr.bf16.mxu0 0
    %2836 = vmatpush1.bf16.msra.mxu0 0
    %2837 = vmatprep.mubr.bf16.mxu0 0
    %2838 = vmatmul.mubr.bf16.gmra.mrb[0].mxu0 %v2732
    %v2839 = vpop.f32.mrb[0].mxu0
    %v2840 = vadd.f32 %v2756, %v2839
    %v2841 = vpop.f32.mrb[0].mxu0
    %v2842 = vpop.f32.mrb[0].mxu0
    %v2843 = vadd.f32 %v2756, %v2842
    %v2844 = vpop.f32.mrb[0].mxu0
    %2845 = vmatprep.mubr.bf16.mxu0 0
    %2846 = vmatmul.mubr.bf16.gmra.mrb[0].mxu0 %v2733
    %v2847 = vpop.f32.mrb[0].mxu0
    %v2848 = vadd.f32 %v2756, %v2847
    %v2849 = vpop.f32.mrb[0].mxu0
    %v2850 = vpop.f32.mrb[0].mxu0
    %v2851 = vadd.f32 %v2756, %v2850
    %v2852 = vpop.f32.mrb[0].mxu0
    %2853 = vmatprep.mubr.bf16.mxu0 0
    %2854 = vmatmul.mubr.bf16.gmra.mrb[0].mxu0 %v2734
    %v2855 = vpop.f32.mrb[0].mxu0
    %v2856 = vadd.f32 %v2756, %v2855
    %v2857 = vpop.f32.mrb[0].mxu0
    %v2858 = vpop.f32.mrb[0].mxu0
    %v2859 = vadd.f32 %v2756, %v2858
    %v2860 = vpop.f32.mrb[0].mxu0
    %2861 = vmatprep.mubr.bf16.mxu0 0
    %2862 = vmatmul.mubr.bf16.gmra.mrb[0].mxu0 %v2735
    %v2863 = vpop.f32.mrb[0].mxu0
    %v2864 = vadd.f32 %v2756, %v2863
    %v2865 = vpop.f32.mrb[0].mxu0
    %v2866 = vpop.f32.mrb[0].mxu0
    %v2867 = vadd.f32 %v2756, %v2866
    %v2868 = vpop.f32.mrb[0].mxu0
    %2869 = vdwg.mxu0
    %2870 = vst [vmem:[#allocation11] sm:$0xff] %v2840
    %2871 = vst [vmem:[#allocation11 + $0x8] sm:$0xff] %v2843
    %2872 = vst [vmem:[#allocation11 + $0x10] sm:$0xff] %v2848
    %2873 = vst [vmem:[#allocation11 + $0x18] sm:$0xff] %v2851
    %2874 = vst [vmem:[#allocation11 + $0x20] sm:$0xff] %v2856
    %2875 = vst [vmem:[#allocation11 + $0x28] sm:$0xff] %v2859
    %2876 = vst [vmem:[#allocation11 + $0x30] sm:$0xff] %v2864
    %2877 = vst [vmem:[#allocation11 + $0x38] sm:$0xff] %v2867
    // Predicated region
    $region62: #{tpu_custom_call.1} parent=1 // pred_check
      _
    $region63: #{tpu_custom_call.1} parent=1 // pred_check_branch
      %2879 = sbr.rel (0) target = $region65
    $region64: #{tpu_custom_call.1} parent=1 // pred_region
      %s2881 = ssub.s32 1024, 1024
      %2882 = vsyncadd [#allocation4], %s2881
      %s2883 = sshll.u32 [#allocation11], 4
      %s2884 = int_to_ptr.vmem [resolvable:$true] %s2883
      %2889 = dma.vmem_to_hbm [thread:$0]  %s2884, 1024, %s10, [#allocation4], 128, 128, 8
    $region65: #{tpu_custom_call.1} parent=1 // pred_fallthru
      _
    // Predicated region
    $region66: #{tpu_custom_call.1} parent=1 // pred_check
      _
    $region67: #{tpu_custom_call.1} parent=1 // pred_check_branch
      %2891 = sbr.rel (0) target = $region69
    $region68: #{tpu_custom_call.1} parent=1 // pred_region
      %2892 = dma.done [#allocation4], 1024
    $region69: #{tpu_custom_call.1} parent=1 // pred_fallthru
      _
    %2893 = vsyncpa [#allocation3], 1
    %2894 = vsyncpa [#allocation6], 1
    %2895 = vsyncpa [#allocation9], 1
    %2896 = vsyncpa [#allocation4], 1

</llo_original>
